<compile_context>
chip_gen: v5e
topology: v5e:2x2
jax: 0.10.0
libtpu: 0.0.40
codegen_flags: <defaults>
</compile_context>

<pallas_src>
import jax
import jax.numpy as jnp
from jax.experimental import pallas as pl
from jax.experimental.pallas import tpu as pltpu

IN_X = 784          # flattened 28x28 image
IN_C = 10           # label embedding dim
H1, H2, H3 = 1024, 512, 256


def _round_up(n, m):
    return ((n + m - 1) // m) * m


def _leaky_relu(x, slope=0.2):
    return jnp.where(x > 0, x, slope * x)


def _const_spec(block_shape):
    """Weight/bias spec: constant block index -> resident in VMEM, single-buffered."""
    const_map = lambda i: (0, 0)
    try:
        return pl.BlockSpec(block_shape, const_map, pipeline_mode=pl.Buffered(1))
    except Exception:                      # older JAX without pipeline_mode/Buffered
        return pl.BlockSpec(block_shape, const_map)


def discriminator_kernel(x_ref, c_ref,
                         w1x_ref, w1c_ref, b1_ref,
                         w2_ref, b2_ref,
                         w3_ref, b3_ref,
                         w4_ref, b4_ref,
                         o_ref):
    """One batch tile of the 4-layer MLP. Weights bf16, accumulate in f32."""
    x = x_ref[...].astype(jnp.bfloat16)                       # [BT, 784]
    c = c_ref[...].astype(jnp.bfloat16)                       # [BT, 10]

    # Layer 1: split matmul (image part + label-embedding part), f32 accumulate.
    h = (jnp.dot(x, w1x_ref[...], preferred_element_type=jnp.float32)
         + jnp.dot(c, w1c_ref[...], preferred_element_type=jnp.float32)
         + b1_ref[...])
    h = _leaky_relu(h)                                        # Dropout(0.4): eval = identity

    h = jnp.dot(h.astype(jnp.bfloat16), w2_ref[...],
                preferred_element_type=jnp.float32) + b2_ref[...]
    h = _leaky_relu(h)

    h = jnp.dot(h.astype(jnp.bfloat16), w3_ref[...],
                preferred_element_type=jnp.float32) + b3_ref[...]
    h = _leaky_relu(h)

    # Layer 4: contract over H3 directly into a lane-dense [1, BT] row
    # (w4 is stored as a [1, H3] row; this is the q @ k^T contraction pattern).
    logit_row = jax.lax.dot_general(
        w4_ref[...], h.astype(jnp.bfloat16),
        dimension_numbers=(((1,), (1,)), ((), ())),
        preferred_element_type=jnp.float32) + b4_ref[...]     # [1, BT]
    o_ref[...] = jax.nn.sigmoid(logit_row)                    # f32, [1, BT]


def _pick_bt(B):
    """Batch tile: big enough to amortize per-step overhead, >=2 tiles when B is large."""
    if B >= 1024:
        return 512
    return min(256, _round_up(B, 8))


@jax.jit
def discriminator_forward(x, labels, params):
    """x: [B, 1, 28, 28] float32 (NCHW), labels: [B] int32 -> [B] probabilities."""
    B = x.shape[0]

    # --- glue (plain JAX, no HBM copies beyond the gather): flatten + embedding ---
    x_flat = x.reshape(B, IN_X).astype(jnp.float32)           # [B, 784] (free reshape)
    c = params["label_emb"][labels]                           # [B, 10] f32

    BT = _pick_bt(B)
    n_tiles = pl.cdiv(B, BT)                                  # ragged last tile is masked

    batch_map = lambda i: (i, 0)                              # activation tiles move with grid

    # Advisory cost estimate so XLA overlaps the surrounding gather/reshape/slice.
    flops = 2 * B * ((IN_X + IN_C) * H1 + H1 * H2 + H2 * H3 + H3 * 1)
    weight_bytes = (2 * (IN_X * H1 + IN_C * H1 + H1 * H2 + H2 * H3 + H3)
                    + 4 * (H1 + H2 + H3 + 1))
    bytes_accessed = weight_bytes + B * (IN_X * 4 + IN_C * 4 + 4)
    cost = pl.CostEstimate(flops=flops, transcendentals=B,
                           bytes_accessed=bytes_accessed)

    out = pl.pallas_call(
        discriminator_kernel,
        out_shape=jax.ShapeDtypeStruct((1, n_tiles * BT), jnp.float32),
        grid=(n_tiles,),
        in_specs=[
            pl.BlockSpec((BT, IN_X), batch_map),              # x_flat tile
            pl.BlockSpec((BT, IN_C), batch_map),              # label-embedding tile
            _const_spec((IN_X, H1)),                          # w1x (bf16, resident)
            _const_spec((IN_C, H1)),                          # w1c (bf16)
            _const_spec((1, H1)),                             # b1  (f32)
            _const_spec((H1, H2)),                            # w2
            _const_spec((1, H2)),                             # b2
            _const_spec((H2, H3)),                            # w3
            _const_spec((1, H3)),                             # b3
            _const_spec((1, H3)),                             # w4 row
            _const_spec((1, 1)),                              # b4 scalar
        ],
        out_specs=pl.BlockSpec((1, BT), lambda i: (0, i)),    # lane-dense output row
        compiler_params=pltpu.CompilerParams(
            dimension_semantics=("parallel",),                # batch tiles shard across TCs
            vmem_limit_bytes=32 * 1024 * 1024),               # v5e default (16 MiB) is too low
        cost_estimate=cost,
    )(x_flat, c,
      params["w1x"], params["w1c"], params["b1"],
      params["w2"], params["b2"],
      params["w3"], params["b3"],
      params["w4"], params["b4"])

    # valid columns only; matches PyTorch's .squeeze() -> [B]
    return out[0, :B]


def _reference_forward(x, labels, params):
    """Pure-JAX f32 reference (same bf16-stored weights upcast) for tolerance checks."""
    B = x.shape[0]
    xf = x.reshape(B, IN_X).astype(jnp.float32)
    c = params["label_emb"][labels]
    w1 = jnp.concatenate([params["w1x"], params["w1c"]], axis=0).astype(jnp.float32)
    h = jnp.concatenate([xf, c], axis=1) @ w1 + params["b1"]
    h = jnp.where(h > 0, h, 0.2 * h)
    h = h @ params["w2"].astype(jnp.float32) + params["b2"]
    h = jnp.where(h > 0, h, 0.2 * h)
    h = h @ params["w3"].astype(jnp.float32) + params["b3"]
    h = jnp.where(h > 0, h, 0.2 * h)
    logit = h @ params["w4"].astype(jnp.float32).T + params["b4"]
    return jax.nn.sigmoid(logit)[:, 0]


def init_params(key):
    """Deterministic init mimicking PyTorch defaults (shapes from __init__).

    Weights stored bf16 (HBM-bandwidth optimization); biases / embedding f32.
    w4 is stored as a [1, 256] row (lane-dense final contraction).
    """
    ks = jax.random.split(key, 9)

    def linear(kw, kb, fan_in, fan_out):
        bound = 1.0 / float(fan_in) ** 0.5
        w = jax.random.uniform(kw, (fan_in, fan_out), jnp.float32, -bound, bound)
        b = jax.random.uniform(kb, (fan_out,), jnp.float32, -bound, bound)
        return w, b.reshape(1, -1)

    w1, b1 = linear(ks[0], ks[1], IN_X + IN_C, H1)            # [794,1024], [1,1024]
    w2, b2 = linear(ks[2], ks[3], H1, H2)                     # [1024,512]
    w3, b3 = linear(ks[4], ks[5], H2, H3)                     # [512,256]
    w4, b4 = linear(ks[6], ks[7], H3, 1)                      # [256,1],   [1,1]
    label_emb = jax.random.normal(ks[8], (10, 10), jnp.float32)  # nn.Embedding(10,10)

    return dict(
        label_emb=label_emb,
        w1x=w1[:IN_X].astype(jnp.bfloat16),                   # [784,1024] bf16
        w1c=w1[IN_X:].astype(jnp.bfloat16),                   # [10,1024]  bf16
        b1=b1,
        w2=w2.astype(jnp.bfloat16), b2=b2,
        w3=w3.astype(jnp.bfloat16), b3=b3,
        w4=w4.T.astype(jnp.bfloat16),                         # [1,256] bf16 row
        b4=b4,                                                # [1,1] f32
    )


if __name__ == "__main__":
    key = jax.random.PRNGKey(0)
    k_x, k_lbl, k_p = jax.random.split(key, 3)

    params = init_params(k_p)

    # Small deterministic example.
    B = 2
    x = jax.random.normal(k_x, (B, 1, 28, 28), jnp.float32)   # NCHW image
    labels = jax.random.randint(k_lbl, (B,), 0, 10, jnp.int32)

    out = discriminator_forward(x, labels, params)
    jax.block_until_ready(out)
    assert out.shape == (B,), out.shape
    assert bool(jnp.all((out >= 0.0) & (out <= 1.0)))
    ref = _reference_forward(x, labels, params)
    assert bool(jnp.allclose(out, ref, atol=5e-2)), (out, ref)

    # Larger batch: exercises the multi-tile grid + ragged (unpadded) last tile.
    B2 = 300
    x2 = jax.random.normal(k_x, (B2, 1, 28, 28), jnp.float32)
    labels2 = jax.random.randint(k_lbl, (B2,), 0, 10, jnp.int32)
    out2 = discriminator_forward(x2, labels2, params)
    jax.block_until_ready(out2)
    assert out2.shape == (B2,), out2.shape
    assert bool(jnp.all((out2 >= 0.0) & (out2 <= 1.0)))
    ref2 = _reference_forward(x2, labels2, params)
    assert bool(jnp.allclose(out2, ref2, atol=5e-2))

    print("KERNEL_OK")
</pallas_src>

<mosaic_0001>
module attributes {stable_mosaic.version = 11 : i64} {
  func.func @discriminator_kernel(%arg0: i32, %arg1: memref<8x784xf32, #tpu.memory_space<vmem>>, %arg2: memref<8x10xf32, #tpu.memory_space<vmem>>, %arg3: memref<784x1024xbf16, #tpu.memory_space<vmem>>, %arg4: memref<10x1024xbf16, #tpu.memory_space<vmem>>, %arg5: memref<1x1024xf32, #tpu.memory_space<vmem>>, %arg6: memref<1024x512xbf16, #tpu.memory_space<vmem>>, %arg7: memref<1x512xf32, #tpu.memory_space<vmem>>, %arg8: memref<512x256xbf16, #tpu.memory_space<vmem>>, %arg9: memref<1x256xf32, #tpu.memory_space<vmem>>, %arg10: memref<1x256xbf16, #tpu.memory_space<vmem>>, %arg11: memref<1x1xf32, #tpu.memory_space<vmem>>, %arg12: memref<1x8xf32, #tpu.memory_space<vmem>>) attributes {dimension_semantics = [#tpu.dimension_semantics<parallel>], iteration_bounds = array<i64: 1>, scalar_prefetch = 0 : i64, scratch_operands = 0 : i64, tpu.core_type = #tpu.core_type<tc>, window_params = [{transform_indices = @transform_0, window_bounds = array<i64: 8, 784>}, {transform_indices = @transform_1, window_bounds = array<i64: 8, 10>}, {pipeline_mode = #tpu.pipeline_mode<synchronous>, transform_indices = @transform_2, window_bounds = array<i64: 784, 1024>}, {pipeline_mode = #tpu.pipeline_mode<synchronous>, transform_indices = @transform_3, window_bounds = array<i64: 10, 1024>}, {pipeline_mode = #tpu.pipeline_mode<synchronous>, transform_indices = @transform_4, window_bounds = array<i64: 1, 1024>}, {pipeline_mode = #tpu.pipeline_mode<synchronous>, transform_indices = @transform_5, window_bounds = array<i64: 1024, 512>}, {pipeline_mode = #tpu.pipeline_mode<synchronous>, transform_indices = @transform_6, window_bounds = array<i64: 1, 512>}, {pipeline_mode = #tpu.pipeline_mode<synchronous>, transform_indices = @transform_7, window_bounds = array<i64: 512, 256>}, {pipeline_mode = #tpu.pipeline_mode<synchronous>, transform_indices = @transform_8, window_bounds = array<i64: 1, 256>}, {pipeline_mode = #tpu.pipeline_mode<synchronous>, transform_indices = @transform_9, window_bounds = array<i64: 1, 256>}, {pipeline_mode = #tpu.pipeline_mode<synchronous>, transform_indices = @transform_10, window_bounds = array<i64: 1, 1>}, {transform_indices = @transform_11, window_bounds = array<i64: 1, 8>}]} {
    %c0 = arith.constant 0 : index
    %c0_0 = arith.constant 0 : index
    %0 = vector.load %arg1[%c0, %c0_0] : memref<8x784xf32, #tpu.memory_space<vmem>>, vector<8x784xf32>
    %1 = arith.truncf %0 : vector<8x784xf32> to vector<8x784xbf16>
    %c0_1 = arith.constant 0 : index
    %c0_2 = arith.constant 0 : index
    %2 = vector.load %arg2[%c0_1, %c0_2] : memref<8x10xf32, #tpu.memory_space<vmem>>, vector<8x10xf32>
    %3 = arith.truncf %2 : vector<8x10xf32> to vector<8x10xbf16>
    %c0_3 = arith.constant 0 : index
    %c0_4 = arith.constant 0 : index
    %4 = vector.load %arg3[%c0_3, %c0_4] : memref<784x1024xbf16, #tpu.memory_space<vmem>>, vector<784x1024xbf16>
    %cst = arith.constant dense<0.000000e+00> : vector<8x1024xf32>
    %5 = tpu.matmul %1, %4, %cst {dimension_numbers = #tpu.dot_dimension_numbers<[1], [0], [0], [1], [0, 0, 1, 1], [], []>} : vector<8x784xbf16>, vector<784x1024xbf16>, vector<8x1024xf32> -> vector<8x1024xf32>
    %c0_5 = arith.constant 0 : index
    %c0_6 = arith.constant 0 : index
    %6 = vector.load %arg4[%c0_5, %c0_6] : memref<10x1024xbf16, #tpu.memory_space<vmem>>, vector<10x1024xbf16>
    %cst_7 = arith.constant dense<0.000000e+00> : vector<8x1024xf32>
    %7 = tpu.matmul %3, %6, %cst_7 {dimension_numbers = #tpu.dot_dimension_numbers<[1], [0], [0], [1], [0, 0, 1, 1], [], []>} : vector<8x10xbf16>, vector<10x1024xbf16>, vector<8x1024xf32> -> vector<8x1024xf32>
    %8 = arith.addf %5, %7 : vector<8x1024xf32>
    %c0_8 = arith.constant 0 : index
    %c0_9 = arith.constant 0 : index
    %9 = vector.load %arg5[%c0_8, %c0_9] : memref<1x1024xf32, #tpu.memory_space<vmem>>, vector<1x1024xf32>
    %10 = vector.broadcast %9 : vector<1x1024xf32> to vector<8x1024xf32>
    %11 = arith.addf %8, %10 : vector<8x1024xf32>
    %cst_10 = arith.constant 0.000000e+00 : f32
    %12 = vector.broadcast %cst_10 : f32 to vector<8x1024xf32>
    %13 = arith.cmpf ogt, %11, %12 : vector<8x1024xf32>
    %cst_11 = arith.constant 2.000000e-01 : f32
    %14 = vector.broadcast %cst_11 : f32 to vector<8x1024xf32>
    %15 = arith.mulf %14, %11 : vector<8x1024xf32>
    %16 = arith.select %13, %11, %15 : vector<8x1024xi1>, vector<8x1024xf32>
    %17 = arith.truncf %16 : vector<8x1024xf32> to vector<8x1024xbf16>
    %c0_12 = arith.constant 0 : index
    %c0_13 = arith.constant 0 : index
    %18 = vector.load %arg6[%c0_12, %c0_13] : memref<1024x512xbf16, #tpu.memory_space<vmem>>, vector<1024x512xbf16>
    %cst_14 = arith.constant dense<0.000000e+00> : vector<8x512xf32>
    %19 = tpu.matmul %17, %18, %cst_14 {dimension_numbers = #tpu.dot_dimension_numbers<[1], [0], [0], [1], [0, 0, 1, 1], [], []>} : vector<8x1024xbf16>, vector<1024x512xbf16>, vector<8x512xf32> -> vector<8x512xf32>
    %c0_15 = arith.constant 0 : index
    %c0_16 = arith.constant 0 : index
    %20 = vector.load %arg7[%c0_15, %c0_16] : memref<1x512xf32, #tpu.memory_space<vmem>>, vector<1x512xf32>
    %21 = vector.broadcast %20 : vector<1x512xf32> to vector<8x512xf32>
    %22 = arith.addf %19, %21 : vector<8x512xf32>
    %cst_17 = arith.constant 0.000000e+00 : f32
    %23 = vector.broadcast %cst_17 : f32 to vector<8x512xf32>
    %24 = arith.cmpf ogt, %22, %23 : vector<8x512xf32>
    %cst_18 = arith.constant 2.000000e-01 : f32
    %25 = vector.broadcast %cst_18 : f32 to vector<8x512xf32>
    %26 = arith.mulf %25, %22 : vector<8x512xf32>
    %27 = arith.select %24, %22, %26 : vector<8x512xi1>, vector<8x512xf32>
    %28 = arith.truncf %27 : vector<8x512xf32> to vector<8x512xbf16>
    %c0_19 = arith.constant 0 : index
    %c0_20 = arith.constant 0 : index
    %29 = vector.load %arg8[%c0_19, %c0_20] : memref<512x256xbf16, #tpu.memory_space<vmem>>, vector<512x256xbf16>
    %cst_21 = arith.constant dense<0.000000e+00> : vector<8x256xf32>
    %30 = tpu.matmul %28, %29, %cst_21 {dimension_numbers = #tpu.dot_dimension_numbers<[1], [0], [0], [1], [0, 0, 1, 1], [], []>} : vector<8x512xbf16>, vector<512x256xbf16>, vector<8x256xf32> -> vector<8x256xf32>
    %c0_22 = arith.constant 0 : index
    %c0_23 = arith.constant 0 : index
    %31 = vector.load %arg9[%c0_22, %c0_23] : memref<1x256xf32, #tpu.memory_space<vmem>>, vector<1x256xf32>
    %32 = vector.broadcast %31 : vector<1x256xf32> to vector<8x256xf32>
    %33 = arith.addf %30, %32 : vector<8x256xf32>
    %cst_24 = arith.constant 0.000000e+00 : f32
    %34 = vector.broadcast %cst_24 : f32 to vector<8x256xf32>
    %35 = arith.cmpf ogt, %33, %34 : vector<8x256xf32>
    %cst_25 = arith.constant 2.000000e-01 : f32
    %36 = vector.broadcast %cst_25 : f32 to vector<8x256xf32>
    %37 = arith.mulf %36, %33 : vector<8x256xf32>
    %38 = arith.select %35, %33, %37 : vector<8x256xi1>, vector<8x256xf32>
    %c0_26 = arith.constant 0 : index
    %c0_27 = arith.constant 0 : index
    %39 = vector.load %arg10[%c0_26, %c0_27] : memref<1x256xbf16, #tpu.memory_space<vmem>>, vector<1x256xbf16>
    %40 = arith.truncf %38 : vector<8x256xf32> to vector<8x256xbf16>
    %cst_28 = arith.constant dense<0.000000e+00> : vector<1x8xf32>
    %41 = tpu.matmul %39, %40, %cst_28 {dimension_numbers = #tpu.dot_dimension_numbers<[1], [1], [0], [0], [0, 0, 1, 0], [], []>} : vector<1x256xbf16>, vector<8x256xbf16>, vector<1x8xf32> -> vector<1x8xf32>
    %c0_29 = arith.constant 0 : index
    %c0_30 = arith.constant 0 : index
    %42 = vector.load %arg11[%c0_29, %c0_30] : memref<1x1xf32, #tpu.memory_space<vmem>>, vector<1x1xf32>
    %43 = vector.broadcast %42 : vector<1x1xf32> to vector<1x8xf32>
    %44 = arith.addf %41, %43 : vector<1x8xf32>
    %45 = arith.negf %44 : vector<1x8xf32>
    %46 = math.exp %45 : vector<1x8xf32>
    %cst_31 = arith.constant 1.000000e+00 : f32
    %47 = vector.broadcast %cst_31 : f32 to vector<1x8xf32>
    %48 = arith.addf %47, %46 : vector<1x8xf32>
    %49 = arith.divf %47, %48 : vector<1x8xf32>
    %c0_32 = arith.constant 0 : index
    %c0_33 = arith.constant 0 : index
    %50 = vector.load %arg12[%c0_32, %c0_33] : memref<1x8xf32, #tpu.memory_space<vmem>>, vector<1x8xf32>
    tpu.vector_store %arg12[%c0_32, %c0_33], %49 {strides = array<i32>} : memref<1x8xf32, #tpu.memory_space<vmem>>, vector<1x8xf32>,
    return
  }
  func.func @transform_0(%arg0: i32) -> (i32, i32) {
    %c0_i32 = arith.constant 0 : i32
    %c0_i32_0 = arith.constant 0 : i32
    return %arg0, %c0_i32 : i32, i32
  }
  func.func @transform_1(%arg0: i32) -> (i32, i32) {
    %c0_i32 = arith.constant 0 : i32
    %c0_i32_0 = arith.constant 0 : i32
    return %arg0, %c0_i32 : i32, i32
  }
  func.func @transform_2(%arg0: i32) -> (i32, i32) {
    %c0_i32 = arith.constant 0 : i32
    %c0_i32_0 = arith.constant 0 : i32
    %c0_i32_1 = arith.constant 0 : i32
    return %c0_i32, %c0_i32_0 : i32, i32
  }
  func.func @transform_3(%arg0: i32) -> (i32, i32) {
    %c0_i32 = arith.constant 0 : i32
    %c0_i32_0 = arith.constant 0 : i32
    %c0_i32_1 = arith.constant 0 : i32
    return %c0_i32, %c0_i32_0 : i32, i32
  }
  func.func @transform_4(%arg0: i32) -> (i32, i32) {
    %c0_i32 = arith.constant 0 : i32
    %c0_i32_0 = arith.constant 0 : i32
    %c0_i32_1 = arith.constant 0 : i32
    return %c0_i32, %c0_i32_0 : i32, i32
  }
  func.func @transform_5(%arg0: i32) -> (i32, i32) {
    %c0_i32 = arith.constant 0 : i32
    %c0_i32_0 = arith.constant 0 : i32
    %c0_i32_1 = arith.constant 0 : i32
    return %c0_i32, %c0_i32_0 : i32, i32
  }
  func.func @transform_6(%arg0: i32) -> (i32, i32) {
    %c0_i32 = arith.constant 0 : i32
    %c0_i32_0 = arith.constant 0 : i32
    %c0_i32_1 = arith.constant 0 : i32
    return %c0_i32, %c0_i32_0 : i32, i32
  }
  func.func @transform_7(%arg0: i32) -> (i32, i32) {
    %c0_i32 = arith.constant 0 : i32
    %c0_i32_0 = arith.constant 0 : i32
    %c0_i32_1 = arith.constant 0 : i32
    return %c0_i32, %c0_i32_0 : i32, i32
  }
  func.func @transform_8(%arg0: i32) -> (i32, i32) {
    %c0_i32 = arith.constant 0 : i32
    %c0_i32_0 = arith.constant 0 : i32
    %c0_i32_1 = arith.constant 0 : i32
    return %c0_i32, %c0_i32_0 : i32, i32
  }
  func.func @transform_9(%arg0: i32) -> (i32, i32) {
    %c0_i32 = arith.constant 0 : i32
    %c0_i32_0 = arith.constant 0 : i32
    %c0_i32_1 = arith.constant 0 : i32
    return %c0_i32, %c0_i32_0 : i32, i32
  }
  func.func @transform_10(%arg0: i32) -> (i32, i32) {
    %c0_i32 = arith.constant 0 : i32
    %c0_i32_0 = arith.constant 0 : i32
    %c0_i32_1 = arith.constant 0 : i32
    return %c0_i32, %c0_i32_0 : i32, i32
  }
  func.func @transform_11(%arg0: i32) -> (i32, i32) {
    %c0_i32 = arith.constant 0 : i32
    %c0_i32_0 = arith.constant 0 : i32
    return %c0_i32, %arg0 : i32, i32
  }
}

</mosaic_0001>

<llo_original>
// kernel: discriminator_forward.1
$region0: #{discriminator_forward.1}
  #allocation0 [shape = 'u32[]', space=smem, size = 0x4, offset = 0x4, fixed_abs, tag = 'smem constant byte address 0x4 - core index']
  #allocation1 [shape = 'u32[72,128]{1,0:T(1,128)}', space=vmem, size = 0x9000, scoped, tag = 'internal scratch']
  #allocation2 [shape = 'f32[1,1]{1,0:T(1,128)S(1)}', space=vmem, size = 0x200, scoped, tag = 'scoped memory for discriminator_forward.1']
  %s0 = inlined_call_operand.vmem [shape: f32[2,784], index: 0, kind: input, shape index: {}]
  %s1 = inlined_call_operand.vmem [shape: f32[2,10], index: 1, kind: input, shape index: {}]
  %s2 = inlined_call_operand.hbm [shape: bf16[784,1024], index: 2, kind: input, shape index: {}]
  %s3 = inlined_call_operand.hbm [shape: bf16[10,1024], index: 3, kind: input, shape index: {}]
  %s4 = inlined_call_operand.hbm [shape: f32[1,1024], index: 4, kind: input, shape index: {}]
  %s5 = inlined_call_operand.hbm [shape: bf16[1024,512], index: 5, kind: input, shape index: {}]
  %s6 = inlined_call_operand.hbm [shape: f32[1,512], index: 6, kind: input, shape index: {}]
  %s7 = inlined_call_operand.hbm [shape: bf16[512,256], index: 7, kind: input, shape index: {}]
  %s8 = inlined_call_operand.hbm [shape: f32[1,256], index: 8, kind: input, shape index: {}]
  %s9 = inlined_call_operand.hbm [shape: bf16[1,256], index: 9, kind: input, shape index: {}]
  %s10 = inlined_call_operand.<no memory space> [shape: f32[1,1], index: 10, kind: input, shape index: {}]
  %s11 = inlined_call_operand.vmem [shape: f32[1,8], index: 11, kind: output, shape index: {}]
  %s12 = sld [smem:[#allocation0]]
  $region86: #{discriminator_forward.1} parent=0
    _
  %s14 = ssub.s32 1, %s12
  %s15 = scalar_select 0, %s14, %s12
  %v16 = vstv %s10
  %17 = vst [vmem:[#allocation2] sm:$0x1] %v16
  $region1: #{discriminator_forward.1} parent=0
    #allocation3 [shape = 'u8[1605632]{0}', space=vmem, size = 0x188000, scoped, tag = 'input window, operand 2, single buffered']
    #allocation4 [shape = 's32[1]{0}', space=sflag, size = 0x4, scoped, tag = 'scoped memory for discriminator_forward.1']
    #allocation5 [shape = 'u8[32768]{0}', space=vmem, size = 0x8000, scoped, tag = 'input window, operand 3, single buffered']
    #allocation6 [shape = 's32[1]{0}', space=sflag, size = 0x4, scoped, tag = 'scoped memory for discriminator_forward.1']
    #allocation7 [shape = 'u8[4096]{0}', space=vmem, size = 0x1000, scoped, tag = 'input window, operand 4, single buffered']
    #allocation8 [shape = 'u8[1048576]{0}', space=vmem, size = 0x100000, scoped, tag = 'input window, operand 5, single buffered']
    #allocation9 [shape = 's32[1]{0}', space=sflag, size = 0x4, scoped, tag = 'scoped memory for discriminator_forward.1']
    #allocation10 [shape = 'u8[2048]{0}', space=vmem, size = 0x800, scoped, tag = 'input window, operand 6, single buffered']
    #allocation11 [shape = 'u8[262144]{0}', space=vmem, size = 0x40000, scoped, tag = 'input window, operand 7, single buffered']
    #allocation12 [shape = 's32[1]{0}', space=sflag, size = 0x4, scoped, tag = 'scoped memory for discriminator_forward.1']
    #allocation13 [shape = 'u8[1024]{0}', space=vmem, size = 0x400, scoped, tag = 'input window, operand 8, single buffered']
    #allocation14 [shape = 'u8[1024]{0}', space=vmem, size = 0x400, scoped, tag = 'input window, operand 9, single buffered']
    #allocation15 [shape = 's32[1]{0}', space=sflag, size = 0x4, scoped, tag = 'scoped memory for discriminator_forward.1']
    %18 = vsyncpa [#allocation4], 0
    %19 = vsyncpa [#allocation6], 0
    %20 = vsyncpa [#allocation9], 0
    %21 = vsyncpa [#allocation12], 0
    %22 = vsyncpa [#allocation15], 0
    // Predicated region
    $region2: #{discriminator_forward.1} parent=1 // pred_check
      _
    $region3: #{discriminator_forward.1} parent=1 // pred_check_branch
      %24 = sbr.rel (0) target = $region5
    $region4: #{discriminator_forward.1} parent=1 // pred_region
      _
    $region5: #{discriminator_forward.1} parent=1 // pred_fallthru
      _
    // Predicated region
    $region6: #{discriminator_forward.1} parent=1 // pred_check
      _
    $region7: #{discriminator_forward.1} parent=1 // pred_check_branch
      %26 = sbr.rel (0) target = $region9
    $region8: #{discriminator_forward.1} parent=1 // pred_region
      _
    $region9: #{discriminator_forward.1} parent=1 // pred_fallthru
      _
    // Predicated region
    $region10: #{discriminator_forward.1} parent=1 // pred_check
      _
    $region11: #{discriminator_forward.1} parent=1 // pred_check_branch
      %28 = sbr.rel (0) target = $region13
    $region12: #{discriminator_forward.1} parent=1 // pred_region
      %30 = vsyncadd [#allocation4], 0
      %s31 = sshll.u32 %s2, 4
      %s32 = int_to_ptr.hbm [resolvable:$true] %s31
      %s33 = sshll.u32 [#allocation3], 4
      %s34 = int_to_ptr.vmem [resolvable:$true] %s33
      %39 = dma.hbm_to_vmem [thread:$0]  %s32, 50176, %s34, [#allocation4], 512, 512, 32
    $region13: #{discriminator_forward.1} parent=1 // pred_fallthru
      _
    // Predicated region
    $region14: #{discriminator_forward.1} parent=1 // pred_check
      _
    $region15: #{discriminator_forward.1} parent=1 // pred_check_branch
      %41 = sbr.rel (0) target = $region17
    $region16: #{discriminator_forward.1} parent=1 // pred_region
      %43 = vsyncadd [#allocation6], 0
      %s44 = sshll.u32 %s3, 4
      %s45 = int_to_ptr.hbm [resolvable:$true] %s44
      %s46 = sshll.u32 [#allocation5], 4
      %s47 = int_to_ptr.vmem [resolvable:$true] %s46
      %52 = dma.hbm_to_vmem [thread:$0]  %s45, 1024, %s47, [#allocation6], 512, 512, 32
    $region17: #{discriminator_forward.1} parent=1 // pred_fallthru
      _
    // Predicated region
    $region18: #{discriminator_forward.1} parent=1 // pred_check
      _
    $region19: #{discriminator_forward.1} parent=1 // pred_check_branch
      %54 = sbr.rel (0) target = $region21
    $region20: #{discriminator_forward.1} parent=1 // pred_region
      %56 = vsyncadd [#allocation6], 0
      %s58 = sshll.u32 %s4, 4
      %s59 = int_to_ptr.hbm [resolvable:$true] %s58
      %s60 = sshll.u32 [#allocation7], 4
      %s61 = int_to_ptr.vmem [resolvable:$true] %s60
      %63 = dma.hbm_to_vmem [thread:$0]  %s59, 128, %s61, [#allocation6]
    $region21: #{discriminator_forward.1} parent=1 // pred_fallthru
      _
    // Predicated region
    $region22: #{discriminator_forward.1} parent=1 // pred_check
      _
    $region23: #{discriminator_forward.1} parent=1 // pred_check_branch
      %65 = sbr.rel (0) target = $region25
    $region24: #{discriminator_forward.1} parent=1 // pred_region
      %67 = vsyncadd [#allocation9], 0
      %s68 = sshll.u32 %s5, 4
      %s69 = int_to_ptr.hbm [resolvable:$true] %s68
      %s70 = sshll.u32 [#allocation8], 4
      %s71 = int_to_ptr.vmem [resolvable:$true] %s70
      %76 = dma.hbm_to_vmem [thread:$0]  %s69, 32768, %s71, [#allocation9], 256, 256, 16
    $region25: #{discriminator_forward.1} parent=1 // pred_fallthru
      _
    // Predicated region
    $region26: #{discriminator_forward.1} parent=1 // pred_check
      _
    $region27: #{discriminator_forward.1} parent=1 // pred_check_branch
      %78 = sbr.rel (0) target = $region29
    $region28: #{discriminator_forward.1} parent=1 // pred_region
      %80 = vsyncadd [#allocation9], 0
      %s82 = sshll.u32 %s6, 4
      %s83 = int_to_ptr.hbm [resolvable:$true] %s82
      %s84 = sshll.u32 [#allocation10], 4
      %s85 = int_to_ptr.vmem [resolvable:$true] %s84
      %87 = dma.hbm_to_vmem [thread:$0]  %s83, 64, %s85, [#allocation9]
    $region29: #{discriminator_forward.1} parent=1 // pred_fallthru
      _
    // Predicated region
    $region30: #{discriminator_forward.1} parent=1 // pred_check
      _
    $region31: #{discriminator_forward.1} parent=1 // pred_check_branch
      %89 = sbr.rel (0) target = $region33
    $region32: #{discriminator_forward.1} parent=1 // pred_region
      %91 = vsyncadd [#allocation12], 0
      %s92 = sshll.u32 %s7, 4
      %s93 = int_to_ptr.hbm [resolvable:$true] %s92
      %s94 = sshll.u32 [#allocation11], 4
      %s95 = int_to_ptr.vmem [resolvable:$true] %s94
      %100 = dma.hbm_to_vmem [thread:$0]  %s93, 8192, %s95, [#allocation12], 128, 128, 8
    $region33: #{discriminator_forward.1} parent=1 // pred_fallthru
      _
    // Predicated region
    $region34: #{discriminator_forward.1} parent=1 // pred_check
      _
    $region35: #{discriminator_forward.1} parent=1 // pred_check_branch
      %102 = sbr.rel (0) target = $region37
    $region36: #{discriminator_forward.1} parent=1 // pred_region
      %104 = vsyncadd [#allocation12], 0
      %s106 = sshll.u32 %s8, 4
      %s107 = int_to_ptr.hbm [resolvable:$true] %s106
      %s108 = sshll.u32 [#allocation13], 4
      %s109 = int_to_ptr.vmem [resolvable:$true] %s108
      %111 = dma.hbm_to_vmem [thread:$0]  %s107, 32, %s109, [#allocation12]
    $region37: #{discriminator_forward.1} parent=1 // pred_fallthru
      _
    // Predicated region
    $region38: #{discriminator_forward.1} parent=1 // pred_check
      _
    $region39: #{discriminator_forward.1} parent=1 // pred_check_branch
      %113 = sbr.rel (0) target = $region41
    $region40: #{discriminator_forward.1} parent=1 // pred_region
      %115 = vsyncadd [#allocation15], 0
      %s117 = sshll.u32 %s9, 4
      %s118 = int_to_ptr.hbm [resolvable:$true] %s117
      %s119 = sshll.u32 [#allocation14], 4
      %s120 = int_to_ptr.vmem [resolvable:$true] %s119
      %122 = dma.hbm_to_vmem [thread:$0]  %s118, 32, %s120, [#allocation15]
    $region41: #{discriminator_forward.1} parent=1 // pred_fallthru
      _
    // Predicated region
    $region42: #{discriminator_forward.1} parent=1 // pred_check
      _
    $region43: #{discriminator_forward.1} parent=1 // pred_check_branch
      %124 = sbr.rel (0) target = $region45
    $region44: #{discriminator_forward.1} parent=1 // pred_region
      _
    $region45: #{discriminator_forward.1} parent=1 // pred_fallthru
      _
    // Predicated region
    $region46: #{discriminator_forward.1} parent=1 // pred_check
      _
    $region47: #{discriminator_forward.1} parent=1 // pred_check_branch
      %126 = sbr.rel (0) target = $region49
    $region48: #{discriminator_forward.1} parent=1 // pred_region
      %128 = dma.done [#allocation4], 50176
    $region49: #{discriminator_forward.1} parent=1 // pred_fallthru
      _
    // Predicated region
    $region50: #{discriminator_forward.1} parent=1 // pred_check
      _
    $region51: #{discriminator_forward.1} parent=1 // pred_check_branch
      %130 = sbr.rel (0) target = $region53
    $region52: #{discriminator_forward.1} parent=1 // pred_region
      %132 = dma.done [#allocation6], 1024
    $region53: #{discriminator_forward.1} parent=1 // pred_fallthru
      _
    // Predicated region
    $region54: #{discriminator_forward.1} parent=1 // pred_check
      _
    $region55: #{discriminator_forward.1} parent=1 // pred_check_branch
      %134 = sbr.rel (0) target = $region57
    $region56: #{discriminator_forward.1} parent=1 // pred_region
      %136 = dma.done [#allocation6], 128
    $region57: #{discriminator_forward.1} parent=1 // pred_fallthru
      _
    // Predicated region
    $region58: #{discriminator_forward.1} parent=1 // pred_check
      _
    $region59: #{discriminator_forward.1} parent=1 // pred_check_branch
      %138 = sbr.rel (0) target = $region61
    $region60: #{discriminator_forward.1} parent=1 // pred_region
      %140 = dma.done [#allocation9], 32768
    $region61: #{discriminator_forward.1} parent=1 // pred_fallthru
      _
    // Predicated region
    $region62: #{discriminator_forward.1} parent=1 // pred_check
      _
    $region63: #{discriminator_forward.1} parent=1 // pred_check_branch
      %142 = sbr.rel (0) target = $region65
    $region64: #{discriminator_forward.1} parent=1 // pred_region
      %144 = dma.done [#allocation9], 64
    $region65: #{discriminator_forward.1} parent=1 // pred_fallthru
      _
    // Predicated region
    $region66: #{discriminator_forward.1} parent=1 // pred_check
      _
    $region67: #{discriminator_forward.1} parent=1 // pred_check_branch
      %146 = sbr.rel (0) target = $region69
    $region68: #{discriminator_forward.1} parent=1 // pred_region
      %148 = dma.done [#allocation12], 8192
    $region69: #{discriminator_forward.1} parent=1 // pred_fallthru
      _
    // Predicated region
    $region70: #{discriminator_forward.1} parent=1 // pred_check
      _
    $region71: #{discriminator_forward.1} parent=1 // pred_check_branch
      %150 = sbr.rel (0) target = $region73
    $region72: #{discriminator_forward.1} parent=1 // pred_region
      %152 = dma.done [#allocation12], 32
    $region73: #{discriminator_forward.1} parent=1 // pred_fallthru
      _
    // Predicated region
    $region74: #{discriminator_forward.1} parent=1 // pred_check
      _
    $region75: #{discriminator_forward.1} parent=1 // pred_check_branch
      %154 = sbr.rel (0) target = $region77
    $region76: #{discriminator_forward.1} parent=1 // pred_region
      %156 = dma.done [#allocation15], 32
    $region77: #{discriminator_forward.1} parent=1 // pred_fallthru
      _
    %v158 = vld [vmem:[%s0] sm:$0xff]
    %v159 = vld [vmem:[%s0 + $0x8] sm:$0x3f]
    %v160 = vld [vmem:[%s0 + $0xe] sm:$0xff]
    %v161 = vld [vmem:[%s0 + $0x16] sm:$0x3f]
    %v162 = vld [vmem:[%s0 + $0x1c] sm:$0xff]
    %v163 = vld [vmem:[%s0 + $0x24] sm:$0x3f]
    %v164 = vld [vmem:[%s0 + $0x2a] sm:$0xff]
    %v165 = vld [vmem:[%s0 + $0x32] sm:$0x3f]
    %174 = vst [vmem:[#allocation1] ss:$4 sm:$0xff] %v158
    %s175 = scalar_lea.vmem [#allocation1], 1
    %176 = vst [vmem:[%s175] ss:$4 sm:$0xff] %v160
    %s177 = scalar_lea.vmem [#allocation1], 2
    %178 = vst [vmem:[%s177] ss:$4 sm:$0xff] %v162
    %s179 = scalar_lea.vmem [#allocation1], 3
    %180 = vst [vmem:[%s179] ss:$4 sm:$0xff] %v164
    %s181 = scalar_lea.vmem [#allocation1], 32
    %182 = vst [vmem:[%s181] ss:$4 sm:$0xff] %v159
    %s183 = scalar_lea.vmem [#allocation1], 33
    %184 = vst [vmem:[%s183] ss:$4 sm:$0xff] %v161
    %s185 = scalar_lea.vmem [#allocation1], 34
    %186 = vst [vmem:[%s185] ss:$4 sm:$0xff] %v163
    %s187 = scalar_lea.vmem [#allocation1], 35
    %188 = vst [vmem:[%s187] ss:$4 sm:$0xff] %v165
    %v189 = vld.sshfl [vmem:[#allocation1] sm:$0xff pattern:$0x73625140]
    %v190 = vld.sshfl [vmem:[#allocation1 + $0x8] sm:$0xff pattern:$0x73625140]
    %v191 = vld.sshfl [vmem:[#allocation1 + $0x10] sm:$0xff pattern:$0x73625140]
    %v192 = vld.sshfl [vmem:[#allocation1 + $0x18] sm:$0xff pattern:$0x73625140]
    %v193 = vld.sshfl [vmem:[#allocation1 + $0x20] sm:$0xff pattern:$0x73625140]
    %v194 = vld.sshfl [vmem:[#allocation1 + $0x28] sm:$0xff pattern:$0x73625140]
    %v195 = vld.sshfl [vmem:[#allocation1 + $0x30] sm:$0xff pattern:$0x73625140]
    %v203 = vpack.c.bf16 %v189, %v189
    %v204 = vpack.c.bf16 %v190, %v190
    %v205 = vpack.c.bf16 %v191, %v191
    %v206 = vpack.c.bf16 %v192, %v192
    %v207 = vpack.c.bf16 %v193, %v193
    %v208 = vpack.c.bf16 %v194, %v194
    %v209 = vpack.c.bf16 %v195, %v195
    %v210 = vld [vmem:[%s1] sm:$0xff]
    %v211 = vpack.c.bf16 %v210, %v210
    %v212 = vld [vmem:[#allocation3] sm:$0xff]
    %v213 = vld [vmem:[#allocation3 + $0x8] sm:$0xff]
    %v214 = vld [vmem:[#allocation3 + $0x10] sm:$0xff]
    %v215 = vld [vmem:[#allocation3 + $0x18] sm:$0xff]
    %v216 = vld [vmem:[#allocation3 + $0x20] sm:$0xff]
    %v217 = vld [vmem:[#allocation3 + $0x28] sm:$0xff]
    %v218 = vld [vmem:[#allocation3 + $0x30] sm:$0xff]
    %v219 = vld [vmem:[#allocation3 + $0x38] sm:$0xff]
    %v220 = vld [vmem:[#allocation3 + $0x40] sm:$0xff]
    %v221 = vld [vmem:[#allocation3 + $0x48] sm:$0xff]
    %v222 = vld [vmem:[#allocation3 + $0x50] sm:$0xff]
    %v223 = vld [vmem:[#allocation3 + $0x58] sm:$0xff]
    %v224 = vld [vmem:[#allocation3 + $0x60] sm:$0xff]
    %v225 = vld [vmem:[#allocation3 + $0x68] sm:$0xff]
    %v226 = vld [vmem:[#allocation3 + $0x70] sm:$0xff]
    %v227 = vld [vmem:[#allocation3 + $0x78] sm:$0xff]
    %v228 = vld [vmem:[#allocation3 + $0x80] sm:$0xff]
    %v229 = vld [vmem:[#allocation3 + $0x88] sm:$0xff]
    %v230 = vld [vmem:[#allocation3 + $0x90] sm:$0xff]
    %v231 = vld [vmem:[#allocation3 + $0x98] sm:$0xff]
    %v232 = vld [vmem:[#allocation3 + $0xa0] sm:$0xff]
    %v233 = vld [vmem:[#allocation3 + $0xa8] sm:$0xff]
    %v234 = vld [vmem:[#allocation3 + $0xb0] sm:$0xff]
    %v235 = vld [vmem:[#allocation3 + $0xb8] sm:$0xff]
    %v236 = vld [vmem:[#allocation3 + $0xc0] sm:$0xff]
    %v237 = vld [vmem:[#allocation3 + $0xc8] sm:$0xff]
    %v238 = vld [vmem:[#allocation3 + $0xd0] sm:$0xff]
    %v239 = vld [vmem:[#allocation3 + $0xd8] sm:$0xff]
    %v240 = vld [vmem:[#allocation3 + $0xe0] sm:$0xff]
    %v241 = vld [vmem:[#allocation3 + $0xe8] sm:$0xff]
    %v242 = vld [vmem:[#allocation3 + $0xf0] sm:$0xff]
    %v243 = vld [vmem:[#allocation3 + $0xf8] sm:$0xff]
    %v244 = vld [vmem:[#allocation3 + $0x100] sm:$0xff]
    %v245 = vld [vmem:[#allocation3 + $0x108] sm:$0xff]
    %v246 = vld [vmem:[#allocation3 + $0x110] sm:$0xff]
    %v247 = vld [vmem:[#allocation3 + $0x118] sm:$0xff]
    %v248 = vld [vmem:[#allocation3 + $0x120] sm:$0xff]
    %v249 = vld [vmem:[#allocation3 + $0x128] sm:$0xff]
    %v250 = vld [vmem:[#allocation3 + $0x130] sm:$0xff]
    %v251 = vld [vmem:[#allocation3 + $0x138] sm:$0xff]
    %v252 = vld [vmem:[#allocation3 + $0x140] sm:$0xff]
    %v253 = vld [vmem:[#allocation3 + $0x148] sm:$0xff]
    %v254 = vld [vmem:[#allocation3 + $0x150] sm:$0xff]
    %v255 = vld [vmem:[#allocation3 + $0x158] sm:$0xff]
    %v256 = vld [vmem:[#allocation3 + $0x160] sm:$0xff]
    %v257 = vld [vmem:[#allocation3 + $0x168] sm:$0xff]
    %v258 = vld [vmem:[#allocation3 + $0x170] sm:$0xff]
    %v259 = vld [vmem:[#allocation3 + $0x178] sm:$0xff]
    %v260 = vld [vmem:[#allocation3 + $0x180] sm:$0xff]
    %v261 = vld [vmem:[#allocation3 + $0x188] sm:$0xff]
    %v262 = vld [vmem:[#allocation3 + $0x190] sm:$0xff]
    %v263 = vld [vmem:[#allocation3 + $0x198] sm:$0xff]
    %v264 = vld [vmem:[#allocation3 + $0x1a0] sm:$0xff]
    %v265 = vld [vmem:[#allocation3 + $0x1a8] sm:$0xff]
    %v266 = vld [vmem:[#allocation3 + $0x1b0] sm:$0xff]
    %v267 = vld [vmem:[#allocation3 + $0x1b8] sm:$0xff]
    %v268 = vld [vmem:[#allocation3 + $0x1c0] sm:$0xff]
    %v269 = vld [vmem:[#allocation3 + $0x1c8] sm:$0xff]
    %v270 = vld [vmem:[#allocation3 + $0x1d0] sm:$0xff]
    %v271 = vld [vmem:[#allocation3 + $0x1d8] sm:$0xff]
    %v272 = vld [vmem:[#allocation3 + $0x1e0] sm:$0xff]
    %v273 = vld [vmem:[#allocation3 + $0x1e8] sm:$0xff]
    %v274 = vld [vmem:[#allocation3 + $0x1f0] sm:$0xff]
    %v275 = vld [vmem:[#allocation3 + $0x1f8] sm:$0xff]
    %v276 = vld [vmem:[#allocation3 + $0x200] sm:$0xff]
    %v277 = vld [vmem:[#allocation3 + $0x208] sm:$0xff]
    %v278 = vld [vmem:[#allocation3 + $0x210] sm:$0xff]
    %v279 = vld [vmem:[#allocation3 + $0x218] sm:$0xff]
    %v280 = vld [vmem:[#allocation3 + $0x220] sm:$0xff]
    %v281 = vld [vmem:[#allocation3 + $0x228] sm:$0xff]
    %v282 = vld [vmem:[#allocation3 + $0x230] sm:$0xff]
    %v283 = vld [vmem:[#allocation3 + $0x238] sm:$0xff]
    %v284 = vld [vmem:[#allocation3 + $0x240] sm:$0xff]
    %v285 = vld [vmem:[#allocation3 + $0x248] sm:$0xff]
    %v286 = vld [vmem:[#allocation3 + $0x250] sm:$0xff]
    %v287 = vld [vmem:[#allocation3 + $0x258] sm:$0xff]
    %v288 = vld [vmem:[#allocation3 + $0x260] sm:$0xff]
    %v289 = vld [vmem:[#allocation3 + $0x268] sm:$0xff]
    %v290 = vld [vmem:[#allocation3 + $0x270] sm:$0xff]
    %v291 = vld [vmem:[#allocation3 + $0x278] sm:$0xff]
    %v292 = vld [vmem:[#allocation3 + $0x280] sm:$0xff]
    %v293 = vld [vmem:[#allocation3 + $0x288] sm:$0xff]
    %v294 = vld [vmem:[#allocation3 + $0x290] sm:$0xff]
    %v295 = vld [vmem:[#allocation3 + $0x298] sm:$0xff]
    %v296 = vld [vmem:[#allocation3 + $0x2a0] sm:$0xff]
    %v297 = vld [vmem:[#allocation3 + $0x2a8] sm:$0xff]
    %v298 = vld [vmem:[#allocation3 + $0x2b0] sm:$0xff]
    %v299 = vld [vmem:[#allocation3 + $0x2b8] sm:$0xff]
    %v300 = vld [vmem:[#allocation3 + $0x2c0] sm:$0xff]
    %v301 = vld [vmem:[#allocation3 + $0x2c8] sm:$0xff]
    %v302 = vld [vmem:[#allocation3 + $0x2d0] sm:$0xff]
    %v303 = vld [vmem:[#allocation3 + $0x2d8] sm:$0xff]
    %v304 = vld [vmem:[#allocation3 + $0x2e0] sm:$0xff]
    %v305 = vld [vmem:[#allocation3 + $0x2e8] sm:$0xff]
    %v306 = vld [vmem:[#allocation3 + $0x2f0] sm:$0xff]
    %v307 = vld [vmem:[#allocation3 + $0x2f8] sm:$0xff]
    %v308 = vld [vmem:[#allocation3 + $0x300] sm:$0xff]
    %v309 = vld [vmem:[#allocation3 + $0x308] sm:$0xff]
    %v310 = vld [vmem:[#allocation3 + $0x310] sm:$0xff]
    %v311 = vld [vmem:[#allocation3 + $0x318] sm:$0xff]
    %v312 = vld [vmem:[#allocation3 + $0x320] sm:$0xff]
    %v313 = vld [vmem:[#allocation3 + $0x328] sm:$0xff]
    %v314 = vld [vmem:[#allocation3 + $0x330] sm:$0xff]
    %v315 = vld [vmem:[#allocation3 + $0x338] sm:$0xff]
    %v316 = vld [vmem:[#allocation3 + $0x340] sm:$0xff]
    %v317 = vld [vmem:[#allocation3 + $0x348] sm:$0xff]
    %v318 = vld [vmem:[#allocation3 + $0x350] sm:$0xff]
    %v319 = vld [vmem:[#allocation3 + $0x358] sm:$0xff]
    %v320 = vld [vmem:[#allocation3 + $0x360] sm:$0xff]
    %v321 = vld [vmem:[#allocation3 + $0x368] sm:$0xff]
    %v322 = vld [vmem:[#allocation3 + $0x370] sm:$0xff]
    %v323 = vld [vmem:[#allocation3 + $0x378] sm:$0xff]
    %v324 = vld [vmem:[#allocation3 + $0x380] sm:$0xff]
    %v325 = vld [vmem:[#allocation3 + $0x388] sm:$0xff]
    %v326 = vld [vmem:[#allocation3 + $0x390] sm:$0xff]
    %v327 = vld [vmem:[#allocation3 + $0x398] sm:$0xff]
    %v328 = vld [vmem:[#allocation3 + $0x3a0] sm:$0xff]
    %v329 = vld [vmem:[#allocation3 + $0x3a8] sm:$0xff]
    %v330 = vld [vmem:[#allocation3 + $0x3b0] sm:$0xff]
    %v331 = vld [vmem:[#allocation3 + $0x3b8] sm:$0xff]
    %v332 = vld [vmem:[#allocation3 + $0x3c0] sm:$0xff]
    %v333 = vld [vmem:[#allocation3 + $0x3c8] sm:$0xff]
    %v334 = vld [vmem:[#allocation3 + $0x3d0] sm:$0xff]
    %v335 = vld [vmem:[#allocation3 + $0x3d8] sm:$0xff]
    %v336 = vld [vmem:[#allocation3 + $0x3e0] sm:$0xff]
    %v337 = vld [vmem:[#allocation3 + $0x3e8] sm:$0xff]
    %v338 = vld [vmem:[#allocation3 + $0x3f0] sm:$0xff]
    %v339 = vld [vmem:[#allocation3 + $0x3f8] sm:$0xff]
    %v340 = vld [vmem:[#allocation3 + $0x400] sm:$0xff]
    %v341 = vld [vmem:[#allocation3 + $0x408] sm:$0xff]
    %v342 = vld [vmem:[#allocation3 + $0x410] sm:$0xff]
    %v343 = vld [vmem:[#allocation3 + $0x418] sm:$0xff]
    %v344 = vld [vmem:[#allocation3 + $0x420] sm:$0xff]
    %v345 = vld [vmem:[#allocation3 + $0x428] sm:$0xff]
    %v346 = vld [vmem:[#allocation3 + $0x430] sm:$0xff]
    %v347 = vld [vmem:[#allocation3 + $0x438] sm:$0xff]
    %v348 = vld [vmem:[#allocation3 + $0x440] sm:$0xff]
    %v349 = vld [vmem:[#allocation3 + $0x448] sm:$0xff]
    %v350 = vld [vmem:[#allocation3 + $0x450] sm:$0xff]
    %v351 = vld [vmem:[#allocation3 + $0x458] sm:$0xff]
    %v352 = vld [vmem:[#allocation3 + $0x460] sm:$0xff]
    %v353 = vld [vmem:[#allocation3 + $0x468] sm:$0xff]
    %v354 = vld [vmem:[#allocation3 + $0x470] sm:$0xff]
    %v355 = vld [vmem:[#allocation3 + $0x478] sm:$0xff]
    %v356 = vld [vmem:[#allocation3 + $0x480] sm:$0xff]
    %v357 = vld [vmem:[#allocation3 + $0x488] sm:$0xff]
    %v358 = vld [vmem:[#allocation3 + $0x490] sm:$0xff]
    %v359 = vld [vmem:[#allocation3 + $0x498] sm:$0xff]
    %v360 = vld [vmem:[#allocation3 + $0x4a0] sm:$0xff]
    %v361 = vld [vmem:[#allocation3 + $0x4a8] sm:$0xff]
    %v362 = vld [vmem:[#allocation3 + $0x4b0] sm:$0xff]
    %v363 = vld [vmem:[#allocation3 + $0x4b8] sm:$0xff]
    %v364 = vld [vmem:[#allocation3 + $0x4c0] sm:$0xff]
    %v365 = vld [vmem:[#allocation3 + $0x4c8] sm:$0xff]
    %v366 = vld [vmem:[#allocation3 + $0x4d0] sm:$0xff]
    %v367 = vld [vmem:[#allocation3 + $0x4d8] sm:$0xff]
    %v368 = vld [vmem:[#allocation3 + $0x4e0] sm:$0xff]
    %v369 = vld [vmem:[#allocation3 + $0x4e8] sm:$0xff]
    %v370 = vld [vmem:[#allocation3 + $0x4f0] sm:$0xff]
    %v371 = vld [vmem:[#allocation3 + $0x4f8] sm:$0xff]
    %v372 = vld [vmem:[#allocation3 + $0x500] sm:$0xff]
    %v373 = vld [vmem:[#allocation3 + $0x508] sm:$0xff]
    %v374 = vld [vmem:[#allocation3 + $0x510] sm:$0xff]
    %v375 = vld [vmem:[#allocation3 + $0x518] sm:$0xff]
    %v376 = vld [vmem:[#allocation3 + $0x520] sm:$0xff]
    %v377 = vld [vmem:[#allocation3 + $0x528] sm:$0xff]
    %v378 = vld [vmem:[#allocation3 + $0x530] sm:$0xff]
    %v379 = vld [vmem:[#allocation3 + $0x538] sm:$0xff]
    %v380 = vld [vmem:[#allocation3 + $0x540] sm:$0xff]
    %v381 = vld [vmem:[#allocation3 + $0x548] sm:$0xff]
    %v382 = vld [vmem:[#allocation3 + $0x550] sm:$0xff]
    %v383 = vld [vmem:[#allocation3 + $0x558] sm:$0xff]
    %v384 = vld [vmem:[#allocation3 + $0x560] sm:$0xff]
    %v385 = vld [vmem:[#allocation3 + $0x568] sm:$0xff]
    %v386 = vld [vmem:[#allocation3 + $0x570] sm:$0xff]
    %v387 = vld [vmem:[#allocation3 + $0x578] sm:$0xff]
    %v388 = vld [vmem:[#allocation3 + $0x580] sm:$0xff]
    %v389 = vld [vmem:[#allocation3 + $0x588] sm:$0xff]
    %v390 = vld [vmem:[#allocation3 + $0x590] sm:$0xff]
    %v391 = vld [vmem:[#allocation3 + $0x598] sm:$0xff]
    %v392 = vld [vmem:[#allocation3 + $0x5a0] sm:$0xff]
    %v393 = vld [vmem:[#allocation3 + $0x5a8] sm:$0xff]
    %v394 = vld [vmem:[#allocation3 + $0x5b0] sm:$0xff]
    %v395 = vld [vmem:[#allocation3 + $0x5b8] sm:$0xff]
    %v396 = vld [vmem:[#allocation3 + $0x5c0] sm:$0xff]
    %v397 = vld [vmem:[#allocation3 + $0x5c8] sm:$0xff]
    %v398 = vld [vmem:[#allocation3 + $0x5d0] sm:$0xff]
    %v399 = vld [vmem:[#allocation3 + $0x5d8] sm:$0xff]
    %v400 = vld [vmem:[#allocation3 + $0x5e0] sm:$0xff]
    %v401 = vld [vmem:[#allocation3 + $0x5e8] sm:$0xff]
    %v402 = vld [vmem:[#allocation3 + $0x5f0] sm:$0xff]
    %v403 = vld [vmem:[#allocation3 + $0x5f8] sm:$0xff]
    %v404 = vld [vmem:[#allocation3 + $0x600] sm:$0xff]
    %v405 = vld [vmem:[#allocation3 + $0x608] sm:$0xff]
    %v406 = vld [vmem:[#allocation3 + $0x610] sm:$0xff]
    %v407 = vld [vmem:[#allocation3 + $0x618] sm:$0xff]
    %v408 = vld [vmem:[#allocation3 + $0x620] sm:$0xff]
    %v409 = vld [vmem:[#allocation3 + $0x628] sm:$0xff]
    %v410 = vld [vmem:[#allocation3 + $0x630] sm:$0xff]
    %v411 = vld [vmem:[#allocation3 + $0x638] sm:$0xff]
    %v412 = vld [vmem:[#allocation3 + $0x640] sm:$0xff]
    %v413 = vld [vmem:[#allocation3 + $0x648] sm:$0xff]
    %v414 = vld [vmem:[#allocation3 + $0x650] sm:$0xff]
    %v415 = vld [vmem:[#allocation3 + $0x658] sm:$0xff]
    %v416 = vld [vmem:[#allocation3 + $0x660] sm:$0xff]
    %v417 = vld [vmem:[#allocation3 + $0x668] sm:$0xff]
    %v418 = vld [vmem:[#allocation3 + $0x670] sm:$0xff]
    %v419 = vld [vmem:[#allocation3 + $0x678] sm:$0xff]
    %v420 = vld [vmem:[#allocation3 + $0x680] sm:$0xff]
    %v421 = vld [vmem:[#allocation3 + $0x688] sm:$0xff]
    %v422 = vld [vmem:[#allocation3 + $0x690] sm:$0xff]
    %v423 = vld [vmem:[#allocation3 + $0x698] sm:$0xff]
    %v424 = vld [vmem:[#allocation3 + $0x6a0] sm:$0xff]
    %v425 = vld [vmem:[#allocation3 + $0x6a8] sm:$0xff]
    %v426 = vld [vmem:[#allocation3 + $0x6b0] sm:$0xff]
    %v427 = vld [vmem:[#allocation3 + $0x6b8] sm:$0xff]
    %v428 = vld [vmem:[#allocation3 + $0x6c0] sm:$0xff]
    %v429 = vld [vmem:[#allocation3 + $0x6c8] sm:$0xff]
    %v430 = vld [vmem:[#allocation3 + $0x6d0] sm:$0xff]
    %v431 = vld [vmem:[#allocation3 + $0x6d8] sm:$0xff]
    %v432 = vld [vmem:[#allocation3 + $0x6e0] sm:$0xff]
    %v433 = vld [vmem:[#allocation3 + $0x6e8] sm:$0xff]
    %v434 = vld [vmem:[#allocation3 + $0x6f0] sm:$0xff]
    %v435 = vld [vmem:[#allocation3 + $0x6f8] sm:$0xff]
    %v436 = vld [vmem:[#allocation3 + $0x700] sm:$0xff]
    %v437 = vld [vmem:[#allocation3 + $0x708] sm:$0xff]
    %v438 = vld [vmem:[#allocation3 + $0x710] sm:$0xff]
    %v439 = vld [vmem:[#allocation3 + $0x718] sm:$0xff]
    %v440 = vld [vmem:[#allocation3 + $0x720] sm:$0xff]
    %v441 = vld [vmem:[#allocation3 + $0x728] sm:$0xff]
    %v442 = vld [vmem:[#allocation3 + $0x730] sm:$0xff]
    %v443 = vld [vmem:[#allocation3 + $0x738] sm:$0xff]
    %v444 = vld [vmem:[#allocation3 + $0x740] sm:$0xff]
    %v445 = vld [vmem:[#allocation3 + $0x748] sm:$0xff]
    %v446 = vld [vmem:[#allocation3 + $0x750] sm:$0xff]
    %v447 = vld [vmem:[#allocation3 + $0x758] sm:$0xff]
    %v448 = vld [vmem:[#allocation3 + $0x760] sm:$0xff]
    %v449 = vld [vmem:[#allocation3 + $0x768] sm:$0xff]
    %v450 = vld [vmem:[#allocation3 + $0x770] sm:$0xff]
    %v451 = vld [vmem:[#allocation3 + $0x778] sm:$0xff]
    %v452 = vld [vmem:[#allocation3 + $0x780] sm:$0xff]
    %v453 = vld [vmem:[#allocation3 + $0x788] sm:$0xff]
    %v454 = vld [vmem:[#allocation3 + $0x790] sm:$0xff]
    %v455 = vld [vmem:[#allocation3 + $0x798] sm:$0xff]
    %v456 = vld [vmem:[#allocation3 + $0x7a0] sm:$0xff]
    %v457 = vld [vmem:[#allocation3 + $0x7a8] sm:$0xff]
    %v458 = vld [vmem:[#allocation3 + $0x7b0] sm:$0xff]
    %v459 = vld [vmem:[#allocation3 + $0x7b8] sm:$0xff]
    %v460 = vld [vmem:[#allocation3 + $0x7c0] sm:$0xff]
    %v461 = vld [vmem:[#allocation3 + $0x7c8] sm:$0xff]
    %v462 = vld [vmem:[#allocation3 + $0x7d0] sm:$0xff]
    %v463 = vld [vmem:[#allocation3 + $0x7d8] sm:$0xff]
    %v464 = vld [vmem:[#allocation3 + $0x7e0] sm:$0xff]
    %v465 = vld [vmem:[#allocation3 + $0x7e8] sm:$0xff]
    %v466 = vld [vmem:[#allocation3 + $0x7f0] sm:$0xff]
    %v467 = vld [vmem:[#allocation3 + $0x7f8] sm:$0xff]
    %v468 = vld [vmem:[#allocation3 + $0x800] sm:$0xff]
    %v469 = vld [vmem:[#allocation3 + $0x808] sm:$0xff]
    %v470 = vld [vmem:[#allocation3 + $0x810] sm:$0xff]
    %v471 = vld [vmem:[#allocation3 + $0x818] sm:$0xff]
    %v472 = vld [vmem:[#allocation3 + $0x820] sm:$0xff]
    %v473 = vld [vmem:[#allocation3 + $0x828] sm:$0xff]
    %v474 = vld [vmem:[#allocation3 + $0x830] sm:$0xff]
    %v475 = vld [vmem:[#allocation3 + $0x838] sm:$0xff]
    %v476 = vld [vmem:[#allocation3 + $0x840] sm:$0xff]
    %v477 = vld [vmem:[#allocation3 + $0x848] sm:$0xff]
    %v478 = vld [vmem:[#allocation3 + $0x850] sm:$0xff]
    %v479 = vld [vmem:[#allocation3 + $0x858] sm:$0xff]
    %v480 = vld [vmem:[#allocation3 + $0x860] sm:$0xff]
    %v481 = vld [vmem:[#allocation3 + $0x868] sm:$0xff]
    %v482 = vld [vmem:[#allocation3 + $0x870] sm:$0xff]
    %v483 = vld [vmem:[#allocation3 + $0x878] sm:$0xff]
    %v484 = vld [vmem:[#allocation3 + $0x880] sm:$0xff]
    %v485 = vld [vmem:[#allocation3 + $0x888] sm:$0xff]
    %v486 = vld [vmem:[#allocation3 + $0x890] sm:$0xff]
    %v487 = vld [vmem:[#allocation3 + $0x898] sm:$0xff]
    %v488 = vld [vmem:[#allocation3 + $0x8a0] sm:$0xff]
    %v489 = vld [vmem:[#allocation3 + $0x8a8] sm:$0xff]
    %v490 = vld [vmem:[#allocation3 + $0x8b0] sm:$0xff]
    %v491 = vld [vmem:[#allocation3 + $0x8b8] sm:$0xff]
    %v492 = vld [vmem:[#allocation3 + $0x8c0] sm:$0xff]
    %v493 = vld [vmem:[#allocation3 + $0x8c8] sm:$0xff]
    %v494 = vld [vmem:[#allocation3 + $0x8d0] sm:$0xff]
    %v495 = vld [vmem:[#allocation3 + $0x8d8] sm:$0xff]
    %v496 = vld [vmem:[#allocation3 + $0x8e0] sm:$0xff]
    %v497 = vld [vmem:[#allocation3 + $0x8e8] sm:$0xff]
    %v498 = vld [vmem:[#allocation3 + $0x8f0] sm:$0xff]
    %v499 = vld [vmem:[#allocation3 + $0x8f8] sm:$0xff]
    %v500 = vld [vmem:[#allocation3 + $0x900] sm:$0xff]
    %v501 = vld [vmem:[#allocation3 + $0x908] sm:$0xff]
    %v502 = vld [vmem:[#allocation3 + $0x910] sm:$0xff]
    %v503 = vld [vmem:[#allocation3 + $0x918] sm:$0xff]
    %v504 = vld [vmem:[#allocation3 + $0x920] sm:$0xff]
    %v505 = vld [vmem:[#allocation3 + $0x928] sm:$0xff]
    %v506 = vld [vmem:[#allocation3 + $0x930] sm:$0xff]
    %v507 = vld [vmem:[#allocation3 + $0x938] sm:$0xff]
    %v508 = vld [vmem:[#allocation3 + $0x940] sm:$0xff]
    %v509 = vld [vmem:[#allocation3 + $0x948] sm:$0xff]
    %v510 = vld [vmem:[#allocation3 + $0x950] sm:$0xff]
    %v511 = vld [vmem:[#allocation3 + $0x958] sm:$0xff]
    %v512 = vld [vmem:[#allocation3 + $0x960] sm:$0xff]
    %v513 = vld [vmem:[#allocation3 + $0x968] sm:$0xff]
    %v514 = vld [vmem:[#allocation3 + $0x970] sm:$0xff]
    %v515 = vld [vmem:[#allocation3 + $0x978] sm:$0xff]
    %v516 = vld [vmem:[#allocation3 + $0x980] sm:$0xff]
    %v517 = vld [vmem:[#allocation3 + $0x988] sm:$0xff]
    %v518 = vld [vmem:[#allocation3 + $0x990] sm:$0xff]
    %v519 = vld [vmem:[#allocation3 + $0x998] sm:$0xff]
    %v520 = vld [vmem:[#allocation3 + $0x9a0] sm:$0xff]
    %v521 = vld [vmem:[#allocation3 + $0x9a8] sm:$0xff]
    %v522 = vld [vmem:[#allocation3 + $0x9b0] sm:$0xff]
    %v523 = vld [vmem:[#allocation3 + $0x9b8] sm:$0xff]
    %v524 = vld [vmem:[#allocation3 + $0x9c0] sm:$0xff]
    %v525 = vld [vmem:[#allocation3 + $0x9c8] sm:$0xff]
    %v526 = vld [vmem:[#allocation3 + $0x9d0] sm:$0xff]
    %v527 = vld [vmem:[#allocation3 + $0x9d8] sm:$0xff]
    %v528 = vld [vmem:[#allocation3 + $0x9e0] sm:$0xff]
    %v529 = vld [vmem:[#allocation3 + $0x9e8] sm:$0xff]
    %v530 = vld [vmem:[#allocation3 + $0x9f0] sm:$0xff]
    %v531 = vld [vmem:[#allocation3 + $0x9f8] sm:$0xff]
    %v532 = vld [vmem:[#allocation3 + $0xa00] sm:$0xff]
    %v533 = vld [vmem:[#allocation3 + $0xa08] sm:$0xff]
    %v534 = vld [vmem:[#allocation3 + $0xa10] sm:$0xff]
    %v535 = vld [vmem:[#allocation3 + $0xa18] sm:$0xff]
    %v536 = vld [vmem:[#allocation3 + $0xa20] sm:$0xff]
    %v537 = vld [vmem:[#allocation3 + $0xa28] sm:$0xff]
    %v538 = vld [vmem:[#allocation3 + $0xa30] sm:$0xff]
    %v539 = vld [vmem:[#allocation3 + $0xa38] sm:$0xff]
    %v540 = vld [vmem:[#allocation3 + $0xa40] sm:$0xff]
    %v541 = vld [vmem:[#allocation3 + $0xa48] sm:$0xff]
    %v542 = vld [vmem:[#allocation3 + $0xa50] sm:$0xff]
    %v543 = vld [vmem:[#allocation3 + $0xa58] sm:$0xff]
    %v544 = vld [vmem:[#allocation3 + $0xa60] sm:$0xff]
    %v545 = vld [vmem:[#allocation3 + $0xa68] sm:$0xff]
    %v546 = vld [vmem:[#allocation3 + $0xa70] sm:$0xff]
    %v547 = vld [vmem:[#allocation3 + $0xa78] sm:$0xff]
    %v548 = vld [vmem:[#allocation3 + $0xa80] sm:$0xff]
    %v549 = vld [vmem:[#allocation3 + $0xa88] sm:$0xff]
    %v550 = vld [vmem:[#allocation3 + $0xa90] sm:$0xff]
    %v551 = vld [vmem:[#allocation3 + $0xa98] sm:$0xff]
    %v552 = vld [vmem:[#allocation3 + $0xaa0] sm:$0xff]
    %v553 = vld [vmem:[#allocation3 + $0xaa8] sm:$0xff]
    %v554 = vld [vmem:[#allocation3 + $0xab0] sm:$0xff]
    %v555 = vld [vmem:[#allocation3 + $0xab8] sm:$0xff]
    %v556 = vld [vmem:[#allocation3 + $0xac0] sm:$0xff]
    %v557 = vld [vmem:[#allocation3 + $0xac8] sm:$0xff]
    %v558 = vld [vmem:[#allocation3 + $0xad0] sm:$0xff]
    %v559 = vld [vmem:[#allocation3 + $0xad8] sm:$0xff]
    %v560 = vld [vmem:[#allocation3 + $0xae0] sm:$0xff]
    %v561 = vld [vmem:[#allocation3 + $0xae8] sm:$0xff]
    %v562 = vld [vmem:[#allocation3 + $0xaf0] sm:$0xff]
    %v563 = vld [vmem:[#allocation3 + $0xaf8] sm:$0xff]
    %v564 = vld [vmem:[#allocation3 + $0xb00] sm:$0xff]
    %v565 = vld [vmem:[#allocation3 + $0xb08] sm:$0xff]
    %v566 = vld [vmem:[#allocation3 + $0xb10] sm:$0xff]
    %v567 = vld [vmem:[#allocation3 + $0xb18] sm:$0xff]
    %v568 = vld [vmem:[#allocation3 + $0xb20] sm:$0xff]
    %v569 = vld [vmem:[#allocation3 + $0xb28] sm:$0xff]
    %v570 = vld [vmem:[#allocation3 + $0xb30] sm:$0xff]
    %v571 = vld [vmem:[#allocation3 + $0xb38] sm:$0xff]
    %v572 = vld [vmem:[#allocation3 + $0xb40] sm:$0xff]
    %v573 = vld [vmem:[#allocation3 + $0xb48] sm:$0xff]
    %v574 = vld [vmem:[#allocation3 + $0xb50] sm:$0xff]
    %v575 = vld [vmem:[#allocation3 + $0xb58] sm:$0xff]
    %v576 = vld [vmem:[#allocation3 + $0xb60] sm:$0xff]
    %v577 = vld [vmem:[#allocation3 + $0xb68] sm:$0xff]
    %v578 = vld [vmem:[#allocation3 + $0xb70] sm:$0xff]
    %v579 = vld [vmem:[#allocation3 + $0xb78] sm:$0xff]
    %v580 = vld [vmem:[#allocation3 + $0xb80] sm:$0xff]
    %v581 = vld [vmem:[#allocation3 + $0xb88] sm:$0xff]
    %v582 = vld [vmem:[#allocation3 + $0xb90] sm:$0xff]
    %v583 = vld [vmem:[#allocation3 + $0xb98] sm:$0xff]
    %v584 = vld [vmem:[#allocation3 + $0xba0] sm:$0xff]
    %v585 = vld [vmem:[#allocation3 + $0xba8] sm:$0xff]
    %v586 = vld [vmem:[#allocation3 + $0xbb0] sm:$0xff]
    %v587 = vld [vmem:[#allocation3 + $0xbb8] sm:$0xff]
    %v588 = vld [vmem:[#allocation3 + $0xbc0] sm:$0xff]
    %v589 = vld [vmem:[#allocation3 + $0xbc8] sm:$0xff]
    %v590 = vld [vmem:[#allocation3 + $0xbd0] sm:$0xff]
    %v591 = vld [vmem:[#allocation3 + $0xbd8] sm:$0xff]
    %v592 = vld [vmem:[#allocation3 + $0xbe0] sm:$0xff]
    %v593 = vld [vmem:[#allocation3 + $0xbe8] sm:$0xff]
    %v594 = vld [vmem:[#allocation3 + $0xbf0] sm:$0xff]
    %v595 = vld [vmem:[#allocation3 + $0xbf8] sm:$0xff]
    %v596 = vld [vmem:[#allocation3 + $0xc00] sm:$0xff]
    %v597 = vld [vmem:[#allocation3 + $0xc08] sm:$0xff]
    %v598 = vld [vmem:[#allocation3 + $0xc10] sm:$0xff]
    %v599 = vld [vmem:[#allocation3 + $0xc18] sm:$0xff]
    %v600 = vld [vmem:[#allocation3 + $0xc20] sm:$0xff]
    %v601 = vld [vmem:[#allocation3 + $0xc28] sm:$0xff]
    %v602 = vld [vmem:[#allocation3 + $0xc30] sm:$0xff]
    %v603 = vld [vmem:[#allocation3 + $0xc38] sm:$0xff]
    %v604 = vld [vmem:[#allocation5] sm:$0xff]
    %v605 = vld [vmem:[#allocation5 + $0x8] sm:$0xff]
    %v606 = vld [vmem:[#allocation5 + $0x10] sm:$0xff]
    %v607 = vld [vmem:[#allocation5 + $0x18] sm:$0xff]
    %v608 = vld [vmem:[#allocation5 + $0x20] sm:$0x11]
    %v609 = vld [vmem:[#allocation5 + $0x28] sm:$0x11]
    %v610 = vld [vmem:[#allocation5 + $0x30] sm:$0x11]
    %v611 = vld [vmem:[#allocation5 + $0x38] sm:$0x11]
    %v620 = vunpack.c.l.b16 %v604
    %v621 = vunpack.c.h.b16 %v604
    %v622 = vunpack.c.l.b16 %v605
    %v623 = vunpack.c.h.b16 %v605
    %v624 = vunpack.c.l.b16 %v606
    %v625 = vunpack.c.h.b16 %v606
    %v626 = vunpack.c.l.b16 %v607
    %v627 = vunpack.c.h.b16 %v607
    %v628 = vunpack.c.l.b16 %v608
    %v629 = vunpack.c.h.b16 %v608
    %v630 = vunpack.c.l.b16 %v609
    %v631 = vunpack.c.h.b16 %v609
    %v632 = vunpack.c.l.b16 %v610
    %v633 = vunpack.c.h.b16 %v610
    %v634 = vunpack.c.l.b16 %v611
    %v635 = vunpack.c.h.b16 %v611
    %v636 = vpack.c.b16 %v628, %v620
    %v637 = vpack.c.b16 %v629, %v621
    %v638 = vpack.c.b16 %v630, %v622
    %v639 = vpack.c.b16 %v631, %v623
    %v640 = vpack.c.b16 %v632, %v624
    %v641 = vpack.c.b16 %v633, %v625
    %v642 = vpack.c.b16 %v634, %v626
    %v643 = vpack.c.b16 %v635, %v627
    %vm644 = vcmask 80896
    %v646 = vsel %vm644, %v211, 0
    %vm648 = vcmask 1044480
    %v650 = vsel %vm648, %v636, 0
    %v653 = vsel %vm648, %v637, 0
    %v656 = vsel %vm648, %v638, 0
    %v659 = vsel %vm648, %v639, 0
    %v662 = vsel %vm648, %v640, 0
    %v665 = vsel %vm648, %v641, 0
    %v668 = vsel %vm648, %v642, 0
    %v671 = vsel %vm648, %v643, 0
    %673 = vmatpush.bf16.msra.mxu0 0
    %674 = vmatpush.bf16.msra.mxu0 0
    %675 = vmatpush.bf16.msra.mxu0 0
    %676 = vmatpush.bf16.msra.mxu0 0
    %677 = vmatpush.bf16.msra.mxu0 0
    %678 = vmatpush.bf16.msra.mxu0 0
    %679 = vmatpush.bf16.msra.mxu0 0
    %680 = vmatpush.bf16.msra.mxu0 %v650
    %681 = vmatmul.bf16.gmra.mxu0 %v646
    %v682 = vpop.f32.mrf.mxu0
    %v683 = vadd.f32 0.0, %v682
    %v684 = vpop.f32.mrf.mxu0
    %685 = vdwg.mxu0
    %686 = vmatpush.bf16.msra.mxu0 0
    %687 = vmatpush.bf16.msra.mxu0 0
    %688 = vmatpush.bf16.msra.mxu0 0
    %689 = vmatpush.bf16.msra.mxu0 0
    %690 = vmatpush.bf16.msra.mxu0 0
    %691 = vmatpush.bf16.msra.mxu0 0
    %692 = vmatpush.bf16.msra.mxu0 0
    %693 = vmatpush.bf16.msra.mxu0 %v653
    %694 = vmatmul.bf16.gmra.mxu0 %v646
    %v695 = vpop.f32.mrf.mxu0
    %v696 = vadd.f32 0.0, %v695
    %v697 = vpop.f32.mrf.mxu0
    %698 = vdwg.mxu0
    %699 = vmatpush.bf16.msra.mxu0 0
    %700 = vmatpush.bf16.msra.mxu0 0
    %701 = vmatpush.bf16.msra.mxu0 0
    %702 = vmatpush.bf16.msra.mxu0 0
    %703 = vmatpush.bf16.msra.mxu0 0
    %704 = vmatpush.bf16.msra.mxu0 0
    %705 = vmatpush.bf16.msra.mxu0 0
    %706 = vmatpush.bf16.msra.mxu0 %v656
    %707 = vmatmul.bf16.gmra.mxu0 %v646
    %v708 = vpop.f32.mrf.mxu0
    %v709 = vadd.f32 0.0, %v708
    %v710 = vpop.f32.mrf.mxu0
    %711 = vdwg.mxu0
    %712 = vmatpush.bf16.msra.mxu0 0
    %713 = vmatpush.bf16.msra.mxu0 0
    %714 = vmatpush.bf16.msra.mxu0 0
    %715 = vmatpush.bf16.msra.mxu0 0
    %716 = vmatpush.bf16.msra.mxu0 0
    %717 = vmatpush.bf16.msra.mxu0 0
    %718 = vmatpush.bf16.msra.mxu0 0
    %719 = vmatpush.bf16.msra.mxu0 %v659
    %720 = vmatmul.bf16.gmra.mxu0 %v646
    %v721 = vpop.f32.mrf.mxu0
    %v722 = vadd.f32 0.0, %v721
    %v723 = vpop.f32.mrf.mxu0
    %724 = vdwg.mxu0
    %725 = vmatpush.bf16.msra.mxu0 0
    %726 = vmatpush.bf16.msra.mxu0 0
    %727 = vmatpush.bf16.msra.mxu0 0
    %728 = vmatpush.bf16.msra.mxu0 0
    %729 = vmatpush.bf16.msra.mxu0 0
    %730 = vmatpush.bf16.msra.mxu0 0
    %731 = vmatpush.bf16.msra.mxu0 0
    %732 = vmatpush.bf16.msra.mxu0 %v662
    %733 = vmatmul.bf16.gmra.mxu0 %v646
    %v734 = vpop.f32.mrf.mxu0
    %v735 = vadd.f32 0.0, %v734
    %v736 = vpop.f32.mrf.mxu0
    %737 = vdwg.mxu0
    %738 = vmatpush.bf16.msra.mxu0 0
    %739 = vmatpush.bf16.msra.mxu0 0
    %740 = vmatpush.bf16.msra.mxu0 0
    %741 = vmatpush.bf16.msra.mxu0 0
    %742 = vmatpush.bf16.msra.mxu0 0
    %743 = vmatpush.bf16.msra.mxu0 0
    %744 = vmatpush.bf16.msra.mxu0 0
    %745 = vmatpush.bf16.msra.mxu0 %v665
    %746 = vmatmul.bf16.gmra.mxu0 %v646
    %v747 = vpop.f32.mrf.mxu0
    %v748 = vadd.f32 0.0, %v747
    %v749 = vpop.f32.mrf.mxu0
    %750 = vdwg.mxu0
    %751 = vmatpush.bf16.msra.mxu0 0
    %752 = vmatpush.bf16.msra.mxu0 0
    %753 = vmatpush.bf16.msra.mxu0 0
    %754 = vmatpush.bf16.msra.mxu0 0
    %755 = vmatpush.bf16.msra.mxu0 0
    %756 = vmatpush.bf16.msra.mxu0 0
    %757 = vmatpush.bf16.msra.mxu0 0
    %758 = vmatpush.bf16.msra.mxu0 %v668
    %759 = vmatmul.bf16.gmra.mxu0 %v646
    %v760 = vpop.f32.mrf.mxu0
    %v761 = vadd.f32 0.0, %v760
    %v762 = vpop.f32.mrf.mxu0
    %763 = vdwg.mxu0
    %764 = vmatpush.bf16.msra.mxu0 0
    %765 = vmatpush.bf16.msra.mxu0 0
    %766 = vmatpush.bf16.msra.mxu0 0
    %767 = vmatpush.bf16.msra.mxu0 0
    %768 = vmatpush.bf16.msra.mxu0 0
    %769 = vmatpush.bf16.msra.mxu0 0
    %770 = vmatpush.bf16.msra.mxu0 0
    %771 = vmatpush.bf16.msra.mxu0 %v671
    %772 = vmatmul.bf16.gmra.mxu0 %v646
    %v773 = vpop.f32.mrf.mxu0
    %v774 = vadd.f32 0.0, %v773
    %v775 = vpop.f32.mrf.mxu0
    %776 = vdwg.mxu0
    %v1169 = vunpack.c.l.b16 %v212
    %v1170 = vunpack.c.h.b16 %v212
    %v1171 = vunpack.c.l.b16 %v213
    %v1172 = vunpack.c.h.b16 %v213
    %v1173 = vunpack.c.l.b16 %v214
    %v1174 = vunpack.c.h.b16 %v214
    %v1175 = vunpack.c.l.b16 %v215
    %v1176 = vunpack.c.h.b16 %v215
    %v1177 = vunpack.c.l.b16 %v216
    %v1178 = vunpack.c.h.b16 %v216
    %v1179 = vunpack.c.l.b16 %v217
    %v1180 = vunpack.c.h.b16 %v217
    %v1181 = vunpack.c.l.b16 %v218
    %v1182 = vunpack.c.h.b16 %v218
    %v1183 = vunpack.c.l.b16 %v219
    %v1184 = vunpack.c.h.b16 %v219
    %v1185 = vunpack.c.l.b16 %v220
    %v1186 = vunpack.c.h.b16 %v220
    %v1187 = vunpack.c.l.b16 %v221
    %v1188 = vunpack.c.h.b16 %v221
    %v1189 = vunpack.c.l.b16 %v222
    %v1190 = vunpack.c.h.b16 %v222
    %v1191 = vunpack.c.l.b16 %v223
    %v1192 = vunpack.c.h.b16 %v223
    %v1193 = vunpack.c.l.b16 %v224
    %v1194 = vunpack.c.h.b16 %v224
    %v1195 = vunpack.c.l.b16 %v225
    %v1196 = vunpack.c.h.b16 %v225
    %v1197 = vunpack.c.l.b16 %v226
    %v1198 = vunpack.c.h.b16 %v226
    %v1199 = vunpack.c.l.b16 %v227
    %v1200 = vunpack.c.h.b16 %v227
    %v1201 = vunpack.c.l.b16 %v228
    %v1202 = vunpack.c.h.b16 %v228
    %v1203 = vunpack.c.l.b16 %v229
    %v1204 = vunpack.c.h.b16 %v229
    %v1205 = vunpack.c.l.b16 %v230
    %v1206 = vunpack.c.h.b16 %v230
    %v1207 = vunpack.c.l.b16 %v231
    %v1208 = vunpack.c.h.b16 %v231
    %v1209 = vunpack.c.l.b16 %v232
    %v1210 = vunpack.c.h.b16 %v232
    %v1211 = vunpack.c.l.b16 %v233
    %v1212 = vunpack.c.h.b16 %v233
    %v1213 = vunpack.c.l.b16 %v234
    %v1214 = vunpack.c.h.b16 %v234
    %v1215 = vunpack.c.l.b16 %v235
    %v1216 = vunpack.c.h.b16 %v235
    %v1217 = vunpack.c.l.b16 %v236
    %v1218 = vunpack.c.h.b16 %v236
    %v1219 = vunpack.c.l.b16 %v237
    %v1220 = vunpack.c.h.b16 %v237
    %v1221 = vunpack.c.l.b16 %v238
    %v1222 = vunpack.c.h.b16 %v238
    %v1223 = vunpack.c.l.b16 %v239
    %v1224 = vunpack.c.h.b16 %v239
    %v1225 = vunpack.c.l.b16 %v240
    %v1226 = vunpack.c.h.b16 %v240
    %v1227 = vunpack.c.l.b16 %v241
    %v1228 = vunpack.c.h.b16 %v241
    %v1229 = vunpack.c.l.b16 %v242
    %v1230 = vunpack.c.h.b16 %v242
    %v1231 = vunpack.c.l.b16 %v243
    %v1232 = vunpack.c.h.b16 %v243
    %v1233 = vunpack.c.l.b16 %v244
    %v1234 = vunpack.c.h.b16 %v244
    %v1235 = vunpack.c.l.b16 %v245
    %v1236 = vunpack.c.h.b16 %v245
    %v1237 = vunpack.c.l.b16 %v246
    %v1238 = vunpack.c.h.b16 %v246
    %v1239 = vunpack.c.l.b16 %v247
    %v1240 = vunpack.c.h.b16 %v247
    %v1241 = vunpack.c.l.b16 %v248
    %v1242 = vunpack.c.h.b16 %v248
    %v1243 = vunpack.c.l.b16 %v249
    %v1244 = vunpack.c.h.b16 %v249
    %v1245 = vunpack.c.l.b16 %v250
    %v1246 = vunpack.c.h.b16 %v250
    %v1247 = vunpack.c.l.b16 %v251
    %v1248 = vunpack.c.h.b16 %v251
    %v1249 = vunpack.c.l.b16 %v252
    %v1250 = vunpack.c.h.b16 %v252
    %v1251 = vunpack.c.l.b16 %v253
    %v1252 = vunpack.c.h.b16 %v253
    %v1253 = vunpack.c.l.b16 %v254
    %v1254 = vunpack.c.h.b16 %v254
    %v1255 = vunpack.c.l.b16 %v255
    %v1256 = vunpack.c.h.b16 %v255
    %v1257 = vunpack.c.l.b16 %v256
    %v1258 = vunpack.c.h.b16 %v256
    %v1259 = vunpack.c.l.b16 %v257
    %v1260 = vunpack.c.h.b16 %v257
    %v1261 = vunpack.c.l.b16 %v258
    %v1262 = vunpack.c.h.b16 %v258
    %v1263 = vunpack.c.l.b16 %v259
    %v1264 = vunpack.c.h.b16 %v259
    %v1265 = vunpack.c.l.b16 %v260
    %v1266 = vunpack.c.h.b16 %v260
    %v1267 = vunpack.c.l.b16 %v261
    %v1268 = vunpack.c.h.b16 %v261
    %v1269 = vunpack.c.l.b16 %v262
    %v1270 = vunpack.c.h.b16 %v262
    %v1271 = vunpack.c.l.b16 %v263
    %v1272 = vunpack.c.h.b16 %v263
    %v1273 = vunpack.c.l.b16 %v264
    %v1274 = vunpack.c.h.b16 %v264
    %v1275 = vunpack.c.l.b16 %v265
    %v1276 = vunpack.c.h.b16 %v265
    %v1277 = vunpack.c.l.b16 %v266
    %v1278 = vunpack.c.h.b16 %v266
    %v1279 = vunpack.c.l.b16 %v267
    %v1280 = vunpack.c.h.b16 %v267
    %v1281 = vunpack.c.l.b16 %v268
    %v1282 = vunpack.c.h.b16 %v268
    %v1283 = vunpack.c.l.b16 %v269
    %v1284 = vunpack.c.h.b16 %v269
    %v1285 = vunpack.c.l.b16 %v270
    %v1286 = vunpack.c.h.b16 %v270
    %v1287 = vunpack.c.l.b16 %v271
    %v1288 = vunpack.c.h.b16 %v271
    %v1289 = vunpack.c.l.b16 %v272
    %v1290 = vunpack.c.h.b16 %v272
    %v1291 = vunpack.c.l.b16 %v273
    %v1292 = vunpack.c.h.b16 %v273
    %v1293 = vunpack.c.l.b16 %v274
    %v1294 = vunpack.c.h.b16 %v274
    %v1295 = vunpack.c.l.b16 %v275
    %v1296 = vunpack.c.h.b16 %v275
    %v1297 = vunpack.c.l.b16 %v276
    %v1298 = vunpack.c.h.b16 %v276
    %v1299 = vunpack.c.l.b16 %v277
    %v1300 = vunpack.c.h.b16 %v277
    %v1301 = vunpack.c.l.b16 %v278
    %v1302 = vunpack.c.h.b16 %v278
    %v1303 = vunpack.c.l.b16 %v279
    %v1304 = vunpack.c.h.b16 %v279
    %v1305 = vunpack.c.l.b16 %v280
    %v1306 = vunpack.c.h.b16 %v280
    %v1307 = vunpack.c.l.b16 %v281
    %v1308 = vunpack.c.h.b16 %v281
    %v1309 = vunpack.c.l.b16 %v282
    %v1310 = vunpack.c.h.b16 %v282
    %v1311 = vunpack.c.l.b16 %v283
    %v1312 = vunpack.c.h.b16 %v283
    %v1313 = vunpack.c.l.b16 %v284
    %v1314 = vunpack.c.h.b16 %v284
    %v1315 = vunpack.c.l.b16 %v285
    %v1316 = vunpack.c.h.b16 %v285
    %v1317 = vunpack.c.l.b16 %v286
    %v1318 = vunpack.c.h.b16 %v286
    %v1319 = vunpack.c.l.b16 %v287
    %v1320 = vunpack.c.h.b16 %v287
    %v1321 = vunpack.c.l.b16 %v288
    %v1322 = vunpack.c.h.b16 %v288
    %v1323 = vunpack.c.l.b16 %v289
    %v1324 = vunpack.c.h.b16 %v289
    %v1325 = vunpack.c.l.b16 %v290
    %v1326 = vunpack.c.h.b16 %v290
    %v1327 = vunpack.c.l.b16 %v291
    %v1328 = vunpack.c.h.b16 %v291
    %v1329 = vunpack.c.l.b16 %v292
    %v1330 = vunpack.c.h.b16 %v292
    %v1331 = vunpack.c.l.b16 %v293
    %v1332 = vunpack.c.h.b16 %v293
    %v1333 = vunpack.c.l.b16 %v294
    %v1334 = vunpack.c.h.b16 %v294
    %v1335 = vunpack.c.l.b16 %v295
    %v1336 = vunpack.c.h.b16 %v295
    %v1337 = vunpack.c.l.b16 %v296
    %v1338 = vunpack.c.h.b16 %v296
    %v1339 = vunpack.c.l.b16 %v297
    %v1340 = vunpack.c.h.b16 %v297
    %v1341 = vunpack.c.l.b16 %v298
    %v1342 = vunpack.c.h.b16 %v298
    %v1343 = vunpack.c.l.b16 %v299
    %v1344 = vunpack.c.h.b16 %v299
    %v1345 = vunpack.c.l.b16 %v300
    %v1346 = vunpack.c.h.b16 %v300
    %v1347 = vunpack.c.l.b16 %v301
    %v1348 = vunpack.c.h.b16 %v301
    %v1349 = vunpack.c.l.b16 %v302
    %v1350 = vunpack.c.h.b16 %v302
    %v1351 = vunpack.c.l.b16 %v303
    %v1352 = vunpack.c.h.b16 %v303
    %v1353 = vunpack.c.l.b16 %v304
    %v1354 = vunpack.c.h.b16 %v304
    %v1355 = vunpack.c.l.b16 %v305
    %v1356 = vunpack.c.h.b16 %v305
    %v1357 = vunpack.c.l.b16 %v306
    %v1358 = vunpack.c.h.b16 %v306
    %v1359 = vunpack.c.l.b16 %v307
    %v1360 = vunpack.c.h.b16 %v307
    %v1361 = vunpack.c.l.b16 %v308
    %v1362 = vunpack.c.h.b16 %v308
    %v1363 = vunpack.c.l.b16 %v309
    %v1364 = vunpack.c.h.b16 %v309
    %v1365 = vunpack.c.l.b16 %v310
    %v1366 = vunpack.c.h.b16 %v310
    %v1367 = vunpack.c.l.b16 %v311
    %v1368 = vunpack.c.h.b16 %v311
    %v1369 = vunpack.c.l.b16 %v312
    %v1370 = vunpack.c.h.b16 %v312
    %v1371 = vunpack.c.l.b16 %v313
    %v1372 = vunpack.c.h.b16 %v313
    %v1373 = vunpack.c.l.b16 %v314
    %v1374 = vunpack.c.h.b16 %v314
    %v1375 = vunpack.c.l.b16 %v315
    %v1376 = vunpack.c.h.b16 %v315
    %v1377 = vunpack.c.l.b16 %v316
    %v1378 = vunpack.c.h.b16 %v316
    %v1379 = vunpack.c.l.b16 %v317
    %v1380 = vunpack.c.h.b16 %v317
    %v1381 = vunpack.c.l.b16 %v318
    %v1382 = vunpack.c.h.b16 %v318
    %v1383 = vunpack.c.l.b16 %v319
    %v1384 = vunpack.c.h.b16 %v319
    %v1385 = vunpack.c.l.b16 %v320
    %v1386 = vunpack.c.h.b16 %v320
    %v1387 = vunpack.c.l.b16 %v321
    %v1388 = vunpack.c.h.b16 %v321
    %v1389 = vunpack.c.l.b16 %v322
    %v1390 = vunpack.c.h.b16 %v322
    %v1391 = vunpack.c.l.b16 %v323
    %v1392 = vunpack.c.h.b16 %v323
    %v1393 = vunpack.c.l.b16 %v324
    %v1394 = vunpack.c.h.b16 %v324
    %v1395 = vunpack.c.l.b16 %v325
    %v1396 = vunpack.c.h.b16 %v325
    %v1397 = vunpack.c.l.b16 %v326
    %v1398 = vunpack.c.h.b16 %v326
    %v1399 = vunpack.c.l.b16 %v327
    %v1400 = vunpack.c.h.b16 %v327
    %v1401 = vunpack.c.l.b16 %v328
    %v1402 = vunpack.c.h.b16 %v328
    %v1403 = vunpack.c.l.b16 %v329
    %v1404 = vunpack.c.h.b16 %v329
    %v1405 = vunpack.c.l.b16 %v330
    %v1406 = vunpack.c.h.b16 %v330
    %v1407 = vunpack.c.l.b16 %v331
    %v1408 = vunpack.c.h.b16 %v331
    %v1409 = vunpack.c.l.b16 %v332
    %v1410 = vunpack.c.h.b16 %v332
    %v1411 = vunpack.c.l.b16 %v333
    %v1412 = vunpack.c.h.b16 %v333
    %v1413 = vunpack.c.l.b16 %v334
    %v1414 = vunpack.c.h.b16 %v334
    %v1415 = vunpack.c.l.b16 %v335
    %v1416 = vunpack.c.h.b16 %v335
    %v1417 = vunpack.c.l.b16 %v336
    %v1418 = vunpack.c.h.b16 %v336
    %v1419 = vunpack.c.l.b16 %v337
    %v1420 = vunpack.c.h.b16 %v337
    %v1421 = vunpack.c.l.b16 %v338
    %v1422 = vunpack.c.h.b16 %v338
    %v1423 = vunpack.c.l.b16 %v339
    %v1424 = vunpack.c.h.b16 %v339
    %v1425 = vunpack.c.l.b16 %v340
    %v1426 = vunpack.c.h.b16 %v340
    %v1427 = vunpack.c.l.b16 %v341
    %v1428 = vunpack.c.h.b16 %v341
    %v1429 = vunpack.c.l.b16 %v342
    %v1430 = vunpack.c.h.b16 %v342
    %v1431 = vunpack.c.l.b16 %v343
    %v1432 = vunpack.c.h.b16 %v343
    %v1433 = vunpack.c.l.b16 %v344
    %v1434 = vunpack.c.h.b16 %v344
    %v1435 = vunpack.c.l.b16 %v345
    %v1436 = vunpack.c.h.b16 %v345
    %v1437 = vunpack.c.l.b16 %v346
    %v1438 = vunpack.c.h.b16 %v346
    %v1439 = vunpack.c.l.b16 %v347
    %v1440 = vunpack.c.h.b16 %v347
    %v1441 = vunpack.c.l.b16 %v348
    %v1442 = vunpack.c.h.b16 %v348
    %v1443 = vunpack.c.l.b16 %v349
    %v1444 = vunpack.c.h.b16 %v349
    %v1445 = vunpack.c.l.b16 %v350
    %v1446 = vunpack.c.h.b16 %v350
    %v1447 = vunpack.c.l.b16 %v351
    %v1448 = vunpack.c.h.b16 %v351
    %v1449 = vunpack.c.l.b16 %v352
    %v1450 = vunpack.c.h.b16 %v352
    %v1451 = vunpack.c.l.b16 %v353
    %v1452 = vunpack.c.h.b16 %v353
    %v1453 = vunpack.c.l.b16 %v354
    %v1454 = vunpack.c.h.b16 %v354
    %v1455 = vunpack.c.l.b16 %v355
    %v1456 = vunpack.c.h.b16 %v355
    %v1457 = vunpack.c.l.b16 %v356
    %v1458 = vunpack.c.h.b16 %v356
    %v1459 = vunpack.c.l.b16 %v357
    %v1460 = vunpack.c.h.b16 %v357
    %v1461 = vunpack.c.l.b16 %v358
    %v1462 = vunpack.c.h.b16 %v358
    %v1463 = vunpack.c.l.b16 %v359
    %v1464 = vunpack.c.h.b16 %v359
    %v1465 = vunpack.c.l.b16 %v360
    %v1466 = vunpack.c.h.b16 %v360
    %v1467 = vunpack.c.l.b16 %v361
    %v1468 = vunpack.c.h.b16 %v361
    %v1469 = vunpack.c.l.b16 %v362
    %v1470 = vunpack.c.h.b16 %v362
    %v1471 = vunpack.c.l.b16 %v363
    %v1472 = vunpack.c.h.b16 %v363
    %v1473 = vunpack.c.l.b16 %v364
    %v1474 = vunpack.c.h.b16 %v364
    %v1475 = vunpack.c.l.b16 %v365
    %v1476 = vunpack.c.h.b16 %v365
    %v1477 = vunpack.c.l.b16 %v366
    %v1478 = vunpack.c.h.b16 %v366
    %v1479 = vunpack.c.l.b16 %v367
    %v1480 = vunpack.c.h.b16 %v367
    %v1481 = vunpack.c.l.b16 %v368
    %v1482 = vunpack.c.h.b16 %v368
    %v1483 = vunpack.c.l.b16 %v369
    %v1484 = vunpack.c.h.b16 %v369
    %v1485 = vunpack.c.l.b16 %v370
    %v1486 = vunpack.c.h.b16 %v370
    %v1487 = vunpack.c.l.b16 %v371
    %v1488 = vunpack.c.h.b16 %v371
    %v1489 = vunpack.c.l.b16 %v372
    %v1490 = vunpack.c.h.b16 %v372
    %v1491 = vunpack.c.l.b16 %v373
    %v1492 = vunpack.c.h.b16 %v373
    %v1493 = vunpack.c.l.b16 %v374
    %v1494 = vunpack.c.h.b16 %v374
    %v1495 = vunpack.c.l.b16 %v375
    %v1496 = vunpack.c.h.b16 %v375
    %v1497 = vunpack.c.l.b16 %v376
    %v1498 = vunpack.c.h.b16 %v376
    %v1499 = vunpack.c.l.b16 %v377
    %v1500 = vunpack.c.h.b16 %v377
    %v1501 = vunpack.c.l.b16 %v378
    %v1502 = vunpack.c.h.b16 %v378
    %v1503 = vunpack.c.l.b16 %v379
    %v1504 = vunpack.c.h.b16 %v379
    %v1505 = vunpack.c.l.b16 %v380
    %v1506 = vunpack.c.h.b16 %v380
    %v1507 = vunpack.c.l.b16 %v381
    %v1508 = vunpack.c.h.b16 %v381
    %v1509 = vunpack.c.l.b16 %v382
    %v1510 = vunpack.c.h.b16 %v382
    %v1511 = vunpack.c.l.b16 %v383
    %v1512 = vunpack.c.h.b16 %v383
    %v1513 = vunpack.c.l.b16 %v384
    %v1514 = vunpack.c.h.b16 %v384
    %v1515 = vunpack.c.l.b16 %v385
    %v1516 = vunpack.c.h.b16 %v385
    %v1517 = vunpack.c.l.b16 %v386
    %v1518 = vunpack.c.h.b16 %v386
    %v1519 = vunpack.c.l.b16 %v387
    %v1520 = vunpack.c.h.b16 %v387
    %v1521 = vunpack.c.l.b16 %v388
    %v1522 = vunpack.c.h.b16 %v388
    %v1523 = vunpack.c.l.b16 %v389
    %v1524 = vunpack.c.h.b16 %v389
    %v1525 = vunpack.c.l.b16 %v390
    %v1526 = vunpack.c.h.b16 %v390
    %v1527 = vunpack.c.l.b16 %v391
    %v1528 = vunpack.c.h.b16 %v391
    %v1529 = vunpack.c.l.b16 %v392
    %v1530 = vunpack.c.h.b16 %v392
    %v1531 = vunpack.c.l.b16 %v393
    %v1532 = vunpack.c.h.b16 %v393
    %v1533 = vunpack.c.l.b16 %v394
    %v1534 = vunpack.c.h.b16 %v394
    %v1535 = vunpack.c.l.b16 %v395
    %v1536 = vunpack.c.h.b16 %v395
    %v1537 = vunpack.c.l.b16 %v396
    %v1538 = vunpack.c.h.b16 %v396
    %v1539 = vunpack.c.l.b16 %v397
    %v1540 = vunpack.c.h.b16 %v397
    %v1541 = vunpack.c.l.b16 %v398
    %v1542 = vunpack.c.h.b16 %v398
    %v1543 = vunpack.c.l.b16 %v399
    %v1544 = vunpack.c.h.b16 %v399
    %v1545 = vunpack.c.l.b16 %v400
    %v1546 = vunpack.c.h.b16 %v400
    %v1547 = vunpack.c.l.b16 %v401
    %v1548 = vunpack.c.h.b16 %v401
    %v1549 = vunpack.c.l.b16 %v402
    %v1550 = vunpack.c.h.b16 %v402
    %v1551 = vunpack.c.l.b16 %v403
    %v1552 = vunpack.c.h.b16 %v403
    %v1553 = vunpack.c.l.b16 %v404
    %v1554 = vunpack.c.h.b16 %v404
    %v1555 = vunpack.c.l.b16 %v405
    %v1556 = vunpack.c.h.b16 %v405
    %v1557 = vunpack.c.l.b16 %v406
    %v1558 = vunpack.c.h.b16 %v406
    %v1559 = vunpack.c.l.b16 %v407
    %v1560 = vunpack.c.h.b16 %v407
    %v1561 = vunpack.c.l.b16 %v408
    %v1562 = vunpack.c.h.b16 %v408
    %v1563 = vunpack.c.l.b16 %v409
    %v1564 = vunpack.c.h.b16 %v409
    %v1565 = vunpack.c.l.b16 %v410
    %v1566 = vunpack.c.h.b16 %v410
    %v1567 = vunpack.c.l.b16 %v411
    %v1568 = vunpack.c.h.b16 %v411
    %v1569 = vunpack.c.l.b16 %v412
    %v1570 = vunpack.c.h.b16 %v412
    %v1571 = vunpack.c.l.b16 %v413
    %v1572 = vunpack.c.h.b16 %v413
    %v1573 = vunpack.c.l.b16 %v414
    %v1574 = vunpack.c.h.b16 %v414
    %v1575 = vunpack.c.l.b16 %v415
    %v1576 = vunpack.c.h.b16 %v415
    %v1577 = vunpack.c.l.b16 %v416
    %v1578 = vunpack.c.h.b16 %v416
    %v1579 = vunpack.c.l.b16 %v417
    %v1580 = vunpack.c.h.b16 %v417
    %v1581 = vunpack.c.l.b16 %v418
    %v1582 = vunpack.c.h.b16 %v418
    %v1583 = vunpack.c.l.b16 %v419
    %v1584 = vunpack.c.h.b16 %v419
    %v1585 = vunpack.c.l.b16 %v420
    %v1586 = vunpack.c.h.b16 %v420
    %v1587 = vunpack.c.l.b16 %v421
    %v1588 = vunpack.c.h.b16 %v421
    %v1589 = vunpack.c.l.b16 %v422
    %v1590 = vunpack.c.h.b16 %v422
    %v1591 = vunpack.c.l.b16 %v423
    %v1592 = vunpack.c.h.b16 %v423
    %v1593 = vunpack.c.l.b16 %v424
    %v1594 = vunpack.c.h.b16 %v424
    %v1595 = vunpack.c.l.b16 %v425
    %v1596 = vunpack.c.h.b16 %v425
    %v1597 = vunpack.c.l.b16 %v426
    %v1598 = vunpack.c.h.b16 %v426
    %v1599 = vunpack.c.l.b16 %v427
    %v1600 = vunpack.c.h.b16 %v427
    %v1601 = vunpack.c.l.b16 %v428
    %v1602 = vunpack.c.h.b16 %v428
    %v1603 = vunpack.c.l.b16 %v429
    %v1604 = vunpack.c.h.b16 %v429
    %v1605 = vunpack.c.l.b16 %v430
    %v1606 = vunpack.c.h.b16 %v430
    %v1607 = vunpack.c.l.b16 %v431
    %v1608 = vunpack.c.h.b16 %v431
    %v1609 = vunpack.c.l.b16 %v432
    %v1610 = vunpack.c.h.b16 %v432
    %v1611 = vunpack.c.l.b16 %v433
    %v1612 = vunpack.c.h.b16 %v433
    %v1613 = vunpack.c.l.b16 %v434
    %v1614 = vunpack.c.h.b16 %v434
    %v1615 = vunpack.c.l.b16 %v435
    %v1616 = vunpack.c.h.b16 %v435
    %v1617 = vunpack.c.l.b16 %v436
    %v1618 = vunpack.c.h.b16 %v436
    %v1619 = vunpack.c.l.b16 %v437
    %v1620 = vunpack.c.h.b16 %v437
    %v1621 = vunpack.c.l.b16 %v438
    %v1622 = vunpack.c.h.b16 %v438
    %v1623 = vunpack.c.l.b16 %v439
    %v1624 = vunpack.c.h.b16 %v439
    %v1625 = vunpack.c.l.b16 %v440
    %v1626 = vunpack.c.h.b16 %v440
    %v1627 = vunpack.c.l.b16 %v441
    %v1628 = vunpack.c.h.b16 %v441
    %v1629 = vunpack.c.l.b16 %v442
    %v1630 = vunpack.c.h.b16 %v442
    %v1631 = vunpack.c.l.b16 %v443
    %v1632 = vunpack.c.h.b16 %v443
    %v1633 = vunpack.c.l.b16 %v444
    %v1634 = vunpack.c.h.b16 %v444
    %v1635 = vunpack.c.l.b16 %v445
    %v1636 = vunpack.c.h.b16 %v445
    %v1637 = vunpack.c.l.b16 %v446
    %v1638 = vunpack.c.h.b16 %v446
    %v1639 = vunpack.c.l.b16 %v447
    %v1640 = vunpack.c.h.b16 %v447
    %v1641 = vunpack.c.l.b16 %v448
    %v1642 = vunpack.c.h.b16 %v448
    %v1643 = vunpack.c.l.b16 %v449
    %v1644 = vunpack.c.h.b16 %v449
    %v1645 = vunpack.c.l.b16 %v450
    %v1646 = vunpack.c.h.b16 %v450
    %v1647 = vunpack.c.l.b16 %v451
    %v1648 = vunpack.c.h.b16 %v451
    %v1649 = vunpack.c.l.b16 %v452
    %v1650 = vunpack.c.h.b16 %v452
    %v1651 = vunpack.c.l.b16 %v453
    %v1652 = vunpack.c.h.b16 %v453
    %v1653 = vunpack.c.l.b16 %v454
    %v1654 = vunpack.c.h.b16 %v454
    %v1655 = vunpack.c.l.b16 %v455
    %v1656 = vunpack.c.h.b16 %v455
    %v1657 = vunpack.c.l.b16 %v456
    %v1658 = vunpack.c.h.b16 %v456
    %v1659 = vunpack.c.l.b16 %v457
    %v1660 = vunpack.c.h.b16 %v457
    %v1661 = vunpack.c.l.b16 %v458
    %v1662 = vunpack.c.h.b16 %v458
    %v1663 = vunpack.c.l.b16 %v459
    %v1664 = vunpack.c.h.b16 %v459
    %v1665 = vunpack.c.l.b16 %v460
    %v1666 = vunpack.c.h.b16 %v460
    %v1667 = vunpack.c.l.b16 %v461
    %v1668 = vunpack.c.h.b16 %v461
    %v1669 = vunpack.c.l.b16 %v462
    %v1670 = vunpack.c.h.b16 %v462
    %v1671 = vunpack.c.l.b16 %v463
    %v1672 = vunpack.c.h.b16 %v463
    %v1673 = vunpack.c.l.b16 %v464
    %v1674 = vunpack.c.h.b16 %v464
    %v1675 = vunpack.c.l.b16 %v465
    %v1676 = vunpack.c.h.b16 %v465
    %v1677 = vunpack.c.l.b16 %v466
    %v1678 = vunpack.c.h.b16 %v466
    %v1679 = vunpack.c.l.b16 %v467
    %v1680 = vunpack.c.h.b16 %v467
    %v1681 = vunpack.c.l.b16 %v468
    %v1682 = vunpack.c.h.b16 %v468
    %v1683 = vunpack.c.l.b16 %v469
    %v1684 = vunpack.c.h.b16 %v469
    %v1685 = vunpack.c.l.b16 %v470
    %v1686 = vunpack.c.h.b16 %v470
    %v1687 = vunpack.c.l.b16 %v471
    %v1688 = vunpack.c.h.b16 %v471
    %v1689 = vunpack.c.l.b16 %v472
    %v1690 = vunpack.c.h.b16 %v472
    %v1691 = vunpack.c.l.b16 %v473
    %v1692 = vunpack.c.h.b16 %v473
    %v1693 = vunpack.c.l.b16 %v474
    %v1694 = vunpack.c.h.b16 %v474
    %v1695 = vunpack.c.l.b16 %v475
    %v1696 = vunpack.c.h.b16 %v475
    %v1697 = vunpack.c.l.b16 %v476
    %v1698 = vunpack.c.h.b16 %v476
    %v1699 = vunpack.c.l.b16 %v477
    %v1700 = vunpack.c.h.b16 %v477
    %v1701 = vunpack.c.l.b16 %v478
    %v1702 = vunpack.c.h.b16 %v478
    %v1703 = vunpack.c.l.b16 %v479
    %v1704 = vunpack.c.h.b16 %v479
    %v1705 = vunpack.c.l.b16 %v480
    %v1706 = vunpack.c.h.b16 %v480
    %v1707 = vunpack.c.l.b16 %v481
    %v1708 = vunpack.c.h.b16 %v481
    %v1709 = vunpack.c.l.b16 %v482
    %v1710 = vunpack.c.h.b16 %v482
    %v1711 = vunpack.c.l.b16 %v483
    %v1712 = vunpack.c.h.b16 %v483
    %v1713 = vunpack.c.l.b16 %v484
    %v1714 = vunpack.c.h.b16 %v484
    %v1715 = vunpack.c.l.b16 %v485
    %v1716 = vunpack.c.h.b16 %v485
    %v1717 = vunpack.c.l.b16 %v486
    %v1718 = vunpack.c.h.b16 %v486
    %v1719 = vunpack.c.l.b16 %v487
    %v1720 = vunpack.c.h.b16 %v487
    %v1721 = vunpack.c.l.b16 %v488
    %v1722 = vunpack.c.h.b16 %v488
    %v1723 = vunpack.c.l.b16 %v489
    %v1724 = vunpack.c.h.b16 %v489
    %v1725 = vunpack.c.l.b16 %v490
    %v1726 = vunpack.c.h.b16 %v490
    %v1727 = vunpack.c.l.b16 %v491
    %v1728 = vunpack.c.h.b16 %v491
    %v1729 = vunpack.c.l.b16 %v492
    %v1730 = vunpack.c.h.b16 %v492
    %v1731 = vunpack.c.l.b16 %v493
    %v1732 = vunpack.c.h.b16 %v493
    %v1733 = vunpack.c.l.b16 %v494
    %v1734 = vunpack.c.h.b16 %v494
    %v1735 = vunpack.c.l.b16 %v495
    %v1736 = vunpack.c.h.b16 %v495
    %v1737 = vunpack.c.l.b16 %v496
    %v1738 = vunpack.c.h.b16 %v496
    %v1739 = vunpack.c.l.b16 %v497
    %v1740 = vunpack.c.h.b16 %v497
    %v1741 = vunpack.c.l.b16 %v498
    %v1742 = vunpack.c.h.b16 %v498
    %v1743 = vunpack.c.l.b16 %v499
    %v1744 = vunpack.c.h.b16 %v499
    %v1745 = vunpack.c.l.b16 %v500
    %v1746 = vunpack.c.h.b16 %v500
    %v1747 = vunpack.c.l.b16 %v501
    %v1748 = vunpack.c.h.b16 %v501
    %v1749 = vunpack.c.l.b16 %v502
    %v1750 = vunpack.c.h.b16 %v502
    %v1751 = vunpack.c.l.b16 %v503
    %v1752 = vunpack.c.h.b16 %v503
    %v1753 = vunpack.c.l.b16 %v504
    %v1754 = vunpack.c.h.b16 %v504
    %v1755 = vunpack.c.l.b16 %v505
    %v1756 = vunpack.c.h.b16 %v505
    %v1757 = vunpack.c.l.b16 %v506
    %v1758 = vunpack.c.h.b16 %v506
    %v1759 = vunpack.c.l.b16 %v507
    %v1760 = vunpack.c.h.b16 %v507
    %v1761 = vunpack.c.l.b16 %v508
    %v1762 = vunpack.c.h.b16 %v508
    %v1763 = vunpack.c.l.b16 %v509
    %v1764 = vunpack.c.h.b16 %v509
    %v1765 = vunpack.c.l.b16 %v510
    %v1766 = vunpack.c.h.b16 %v510
    %v1767 = vunpack.c.l.b16 %v511
    %v1768 = vunpack.c.h.b16 %v511
    %v1769 = vunpack.c.l.b16 %v512
    %v1770 = vunpack.c.h.b16 %v512
    %v1771 = vunpack.c.l.b16 %v513
    %v1772 = vunpack.c.h.b16 %v513
    %v1773 = vunpack.c.l.b16 %v514
    %v1774 = vunpack.c.h.b16 %v514
    %v1775 = vunpack.c.l.b16 %v515
    %v1776 = vunpack.c.h.b16 %v515
    %v1777 = vunpack.c.l.b16 %v516
    %v1778 = vunpack.c.h.b16 %v516
    %v1779 = vunpack.c.l.b16 %v517
    %v1780 = vunpack.c.h.b16 %v517
    %v1781 = vunpack.c.l.b16 %v518
    %v1782 = vunpack.c.h.b16 %v518
    %v1783 = vunpack.c.l.b16 %v519
    %v1784 = vunpack.c.h.b16 %v519
    %v1785 = vunpack.c.l.b16 %v520
    %v1786 = vunpack.c.h.b16 %v520
    %v1787 = vunpack.c.l.b16 %v521
    %v1788 = vunpack.c.h.b16 %v521
    %v1789 = vunpack.c.l.b16 %v522
    %v1790 = vunpack.c.h.b16 %v522
    %v1791 = vunpack.c.l.b16 %v523
    %v1792 = vunpack.c.h.b16 %v523
    %v1793 = vunpack.c.l.b16 %v524
    %v1794 = vunpack.c.h.b16 %v524
    %v1795 = vunpack.c.l.b16 %v525
    %v1796 = vunpack.c.h.b16 %v525
    %v1797 = vunpack.c.l.b16 %v526
    %v1798 = vunpack.c.h.b16 %v526
    %v1799 = vunpack.c.l.b16 %v527
    %v1800 = vunpack.c.h.b16 %v527
    %v1801 = vunpack.c.l.b16 %v528
    %v1802 = vunpack.c.h.b16 %v528
    %v1803 = vunpack.c.l.b16 %v529
    %v1804 = vunpack.c.h.b16 %v529
    %v1805 = vunpack.c.l.b16 %v530
    %v1806 = vunpack.c.h.b16 %v530
    %v1807 = vunpack.c.l.b16 %v531
    %v1808 = vunpack.c.h.b16 %v531
    %v1809 = vunpack.c.l.b16 %v532
    %v1810 = vunpack.c.h.b16 %v532
    %v1811 = vunpack.c.l.b16 %v533
    %v1812 = vunpack.c.h.b16 %v533
    %v1813 = vunpack.c.l.b16 %v534
    %v1814 = vunpack.c.h.b16 %v534
    %v1815 = vunpack.c.l.b16 %v535
    %v1816 = vunpack.c.h.b16 %v535
    %v1817 = vunpack.c.l.b16 %v536
    %v1818 = vunpack.c.h.b16 %v536
    %v1819 = vunpack.c.l.b16 %v537
    %v1820 = vunpack.c.h.b16 %v537
    %v1821 = vunpack.c.l.b16 %v538
    %v1822 = vunpack.c.h.b16 %v538
    %v1823 = vunpack.c.l.b16 %v539
    %v1824 = vunpack.c.h.b16 %v539
    %v1825 = vunpack.c.l.b16 %v540
    %v1826 = vunpack.c.h.b16 %v540
    %v1827 = vunpack.c.l.b16 %v541
    %v1828 = vunpack.c.h.b16 %v541
    %v1829 = vunpack.c.l.b16 %v542
    %v1830 = vunpack.c.h.b16 %v542
    %v1831 = vunpack.c.l.b16 %v543
    %v1832 = vunpack.c.h.b16 %v543
    %v1833 = vunpack.c.l.b16 %v544
    %v1834 = vunpack.c.h.b16 %v544
    %v1835 = vunpack.c.l.b16 %v545
    %v1836 = vunpack.c.h.b16 %v545
    %v1837 = vunpack.c.l.b16 %v546
    %v1838 = vunpack.c.h.b16 %v546
    %v1839 = vunpack.c.l.b16 %v547
    %v1840 = vunpack.c.h.b16 %v547
    %v1841 = vunpack.c.l.b16 %v548
    %v1842 = vunpack.c.h.b16 %v548
    %v1843 = vunpack.c.l.b16 %v549
    %v1844 = vunpack.c.h.b16 %v549
    %v1845 = vunpack.c.l.b16 %v550
    %v1846 = vunpack.c.h.b16 %v550
    %v1847 = vunpack.c.l.b16 %v551
    %v1848 = vunpack.c.h.b16 %v551
    %v1849 = vunpack.c.l.b16 %v552
    %v1850 = vunpack.c.h.b16 %v552
    %v1851 = vunpack.c.l.b16 %v553
    %v1852 = vunpack.c.h.b16 %v553
    %v1853 = vunpack.c.l.b16 %v554
    %v1854 = vunpack.c.h.b16 %v554
    %v1855 = vunpack.c.l.b16 %v555
    %v1856 = vunpack.c.h.b16 %v555
    %v1857 = vunpack.c.l.b16 %v556
    %v1858 = vunpack.c.h.b16 %v556
    %v1859 = vunpack.c.l.b16 %v557
    %v1860 = vunpack.c.h.b16 %v557
    %v1861 = vunpack.c.l.b16 %v558
    %v1862 = vunpack.c.h.b16 %v558
    %v1863 = vunpack.c.l.b16 %v559
    %v1864 = vunpack.c.h.b16 %v559
    %v1865 = vunpack.c.l.b16 %v560
    %v1866 = vunpack.c.h.b16 %v560
    %v1867 = vunpack.c.l.b16 %v561
    %v1868 = vunpack.c.h.b16 %v561
    %v1869 = vunpack.c.l.b16 %v562
    %v1870 = vunpack.c.h.b16 %v562
    %v1871 = vunpack.c.l.b16 %v563
    %v1872 = vunpack.c.h.b16 %v563
    %v1873 = vunpack.c.l.b16 %v564
    %v1874 = vunpack.c.h.b16 %v564
    %v1875 = vunpack.c.l.b16 %v565
    %v1876 = vunpack.c.h.b16 %v565
    %v1877 = vunpack.c.l.b16 %v566
    %v1878 = vunpack.c.h.b16 %v566
    %v1879 = vunpack.c.l.b16 %v567
    %v1880 = vunpack.c.h.b16 %v567
    %v1881 = vunpack.c.l.b16 %v568
    %v1882 = vunpack.c.h.b16 %v568
    %v1883 = vunpack.c.l.b16 %v569
    %v1884 = vunpack.c.h.b16 %v569
    %v1885 = vunpack.c.l.b16 %v570
    %v1886 = vunpack.c.h.b16 %v570
    %v1887 = vunpack.c.l.b16 %v571
    %v1888 = vunpack.c.h.b16 %v571
    %v1889 = vunpack.c.l.b16 %v572
    %v1890 = vunpack.c.h.b16 %v572
    %v1891 = vunpack.c.l.b16 %v573
    %v1892 = vunpack.c.h.b16 %v573
    %v1893 = vunpack.c.l.b16 %v574
    %v1894 = vunpack.c.h.b16 %v574
    %v1895 = vunpack.c.l.b16 %v575
    %v1896 = vunpack.c.h.b16 %v575
    %v1897 = vunpack.c.l.b16 %v576
    %v1898 = vunpack.c.h.b16 %v576
    %v1899 = vunpack.c.l.b16 %v577
    %v1900 = vunpack.c.h.b16 %v577
    %v1901 = vunpack.c.l.b16 %v578
    %v1902 = vunpack.c.h.b16 %v578
    %v1903 = vunpack.c.l.b16 %v579
    %v1904 = vunpack.c.h.b16 %v579
    %v1905 = vunpack.c.l.b16 %v580
    %v1906 = vunpack.c.h.b16 %v580
    %v1907 = vunpack.c.l.b16 %v581
    %v1908 = vunpack.c.h.b16 %v581
    %v1909 = vunpack.c.l.b16 %v582
    %v1910 = vunpack.c.h.b16 %v582
    %v1911 = vunpack.c.l.b16 %v583
    %v1912 = vunpack.c.h.b16 %v583
    %v1913 = vunpack.c.l.b16 %v584
    %v1914 = vunpack.c.h.b16 %v584
    %v1915 = vunpack.c.l.b16 %v585
    %v1916 = vunpack.c.h.b16 %v585
    %v1917 = vunpack.c.l.b16 %v586
    %v1918 = vunpack.c.h.b16 %v586
    %v1919 = vunpack.c.l.b16 %v587
    %v1920 = vunpack.c.h.b16 %v587
    %v1921 = vunpack.c.l.b16 %v588
    %v1922 = vunpack.c.h.b16 %v588
    %v1923 = vunpack.c.l.b16 %v589
    %v1924 = vunpack.c.h.b16 %v589
    %v1925 = vunpack.c.l.b16 %v590
    %v1926 = vunpack.c.h.b16 %v590
    %v1927 = vunpack.c.l.b16 %v591
    %v1928 = vunpack.c.h.b16 %v591
    %v1929 = vunpack.c.l.b16 %v592
    %v1930 = vunpack.c.h.b16 %v592
    %v1931 = vunpack.c.l.b16 %v593
    %v1932 = vunpack.c.h.b16 %v593
    %v1933 = vunpack.c.l.b16 %v594
    %v1934 = vunpack.c.h.b16 %v594
    %v1935 = vunpack.c.l.b16 %v595
    %v1936 = vunpack.c.h.b16 %v595
    %v1937 = vunpack.c.l.b16 %v596
    %v1938 = vunpack.c.h.b16 %v596
    %v1939 = vunpack.c.l.b16 %v597
    %v1940 = vunpack.c.h.b16 %v597
    %v1941 = vunpack.c.l.b16 %v598
    %v1942 = vunpack.c.h.b16 %v598
    %v1943 = vunpack.c.l.b16 %v599
    %v1944 = vunpack.c.h.b16 %v599
    %v1945 = vunpack.c.l.b16 %v600
    %v1946 = vunpack.c.h.b16 %v600
    %v1947 = vunpack.c.l.b16 %v601
    %v1948 = vunpack.c.h.b16 %v601
    %v1949 = vunpack.c.l.b16 %v602
    %v1950 = vunpack.c.h.b16 %v602
    %v1951 = vunpack.c.l.b16 %v603
    %v1952 = vunpack.c.h.b16 %v603
    %v1953 = vpack.c.b16 %v1177, %v1169
    %v1954 = vpack.c.b16 %v1178, %v1170
    %v1955 = vpack.c.b16 %v1179, %v1171
    %v1956 = vpack.c.b16 %v1180, %v1172
    %v1957 = vpack.c.b16 %v1181, %v1173
    %v1958 = vpack.c.b16 %v1182, %v1174
    %v1959 = vpack.c.b16 %v1183, %v1175
    %v1960 = vpack.c.b16 %v1184, %v1176
    %v1961 = vpack.c.b16 %v1193, %v1185
    %v1962 = vpack.c.b16 %v1194, %v1186
    %v1963 = vpack.c.b16 %v1195, %v1187
    %v1964 = vpack.c.b16 %v1196, %v1188
    %v1965 = vpack.c.b16 %v1197, %v1189
    %v1966 = vpack.c.b16 %v1198, %v1190
    %v1967 = vpack.c.b16 %v1199, %v1191
    %v1968 = vpack.c.b16 %v1200, %v1192
    %v1969 = vpack.c.b16 %v1209, %v1201
    %v1970 = vpack.c.b16 %v1210, %v1202
    %v1971 = vpack.c.b16 %v1211, %v1203
    %v1972 = vpack.c.b16 %v1212, %v1204
    %v1973 = vpack.c.b16 %v1213, %v1205
    %v1974 = vpack.c.b16 %v1214, %v1206
    %v1975 = vpack.c.b16 %v1215, %v1207
    %v1976 = vpack.c.b16 %v1216, %v1208
    %v1977 = vpack.c.b16 %v1225, %v1217
    %v1978 = vpack.c.b16 %v1226, %v1218
    %v1979 = vpack.c.b16 %v1227, %v1219
    %v1980 = vpack.c.b16 %v1228, %v1220
    %v1981 = vpack.c.b16 %v1229, %v1221
    %v1982 = vpack.c.b16 %v1230, %v1222
    %v1983 = vpack.c.b16 %v1231, %v1223
    %v1984 = vpack.c.b16 %v1232, %v1224
    %v1985 = vpack.c.b16 %v1241, %v1233
    %v1986 = vpack.c.b16 %v1242, %v1234
    %v1987 = vpack.c.b16 %v1243, %v1235
    %v1988 = vpack.c.b16 %v1244, %v1236
    %v1989 = vpack.c.b16 %v1245, %v1237
    %v1990 = vpack.c.b16 %v1246, %v1238
    %v1991 = vpack.c.b16 %v1247, %v1239
    %v1992 = vpack.c.b16 %v1248, %v1240
    %v1993 = vpack.c.b16 %v1257, %v1249
    %v1994 = vpack.c.b16 %v1258, %v1250
    %v1995 = vpack.c.b16 %v1259, %v1251
    %v1996 = vpack.c.b16 %v1260, %v1252
    %v1997 = vpack.c.b16 %v1261, %v1253
    %v1998 = vpack.c.b16 %v1262, %v1254
    %v1999 = vpack.c.b16 %v1263, %v1255
    %v2000 = vpack.c.b16 %v1264, %v1256
    %v2001 = vpack.c.b16 %v1273, %v1265
    %v2002 = vpack.c.b16 %v1274, %v1266
    %v2003 = vpack.c.b16 %v1275, %v1267
    %v2004 = vpack.c.b16 %v1276, %v1268
    %v2005 = vpack.c.b16 %v1277, %v1269
    %v2006 = vpack.c.b16 %v1278, %v1270
    %v2007 = vpack.c.b16 %v1279, %v1271
    %v2008 = vpack.c.b16 %v1280, %v1272
    %v2009 = vpack.c.b16 %v1289, %v1281
    %v2010 = vpack.c.b16 %v1290, %v1282
    %v2011 = vpack.c.b16 %v1291, %v1283
    %v2012 = vpack.c.b16 %v1292, %v1284
    %v2013 = vpack.c.b16 %v1293, %v1285
    %v2014 = vpack.c.b16 %v1294, %v1286
    %v2015 = vpack.c.b16 %v1295, %v1287
    %v2016 = vpack.c.b16 %v1296, %v1288
    %v2017 = vpack.c.b16 %v1305, %v1297
    %v2018 = vpack.c.b16 %v1306, %v1298
    %v2019 = vpack.c.b16 %v1307, %v1299
    %v2020 = vpack.c.b16 %v1308, %v1300
    %v2021 = vpack.c.b16 %v1309, %v1301
    %v2022 = vpack.c.b16 %v1310, %v1302
    %v2023 = vpack.c.b16 %v1311, %v1303
    %v2024 = vpack.c.b16 %v1312, %v1304
    %v2025 = vpack.c.b16 %v1321, %v1313
    %v2026 = vpack.c.b16 %v1322, %v1314
    %v2027 = vpack.c.b16 %v1323, %v1315
    %v2028 = vpack.c.b16 %v1324, %v1316
    %v2029 = vpack.c.b16 %v1325, %v1317
    %v2030 = vpack.c.b16 %v1326, %v1318
    %v2031 = vpack.c.b16 %v1327, %v1319
    %v2032 = vpack.c.b16 %v1328, %v1320
    %v2033 = vpack.c.b16 %v1337, %v1329
    %v2034 = vpack.c.b16 %v1338, %v1330
    %v2035 = vpack.c.b16 %v1339, %v1331
    %v2036 = vpack.c.b16 %v1340, %v1332
    %v2037 = vpack.c.b16 %v1341, %v1333
    %v2038 = vpack.c.b16 %v1342, %v1334
    %v2039 = vpack.c.b16 %v1343, %v1335
    %v2040 = vpack.c.b16 %v1344, %v1336
    %v2041 = vpack.c.b16 %v1353, %v1345
    %v2042 = vpack.c.b16 %v1354, %v1346
    %v2043 = vpack.c.b16 %v1355, %v1347
    %v2044 = vpack.c.b16 %v1356, %v1348
    %v2045 = vpack.c.b16 %v1357, %v1349
    %v2046 = vpack.c.b16 %v1358, %v1350
    %v2047 = vpack.c.b16 %v1359, %v1351
    %v2048 = vpack.c.b16 %v1360, %v1352
    %v2049 = vpack.c.b16 %v1369, %v1361
    %v2050 = vpack.c.b16 %v1370, %v1362
    %v2051 = vpack.c.b16 %v1371, %v1363
    %v2052 = vpack.c.b16 %v1372, %v1364
    %v2053 = vpack.c.b16 %v1373, %v1365
    %v2054 = vpack.c.b16 %v1374, %v1366
    %v2055 = vpack.c.b16 %v1375, %v1367
    %v2056 = vpack.c.b16 %v1376, %v1368
    %v2057 = vpack.c.b16 %v1385, %v1377
    %v2058 = vpack.c.b16 %v1386, %v1378
    %v2059 = vpack.c.b16 %v1387, %v1379
    %v2060 = vpack.c.b16 %v1388, %v1380
    %v2061 = vpack.c.b16 %v1389, %v1381
    %v2062 = vpack.c.b16 %v1390, %v1382
    %v2063 = vpack.c.b16 %v1391, %v1383
    %v2064 = vpack.c.b16 %v1392, %v1384
    %v2065 = vpack.c.b16 %v1401, %v1393
    %v2066 = vpack.c.b16 %v1402, %v1394
    %v2067 = vpack.c.b16 %v1403, %v1395
    %v2068 = vpack.c.b16 %v1404, %v1396
    %v2069 = vpack.c.b16 %v1405, %v1397
    %v2070 = vpack.c.b16 %v1406, %v1398
    %v2071 = vpack.c.b16 %v1407, %v1399
    %v2072 = vpack.c.b16 %v1408, %v1400
    %v2073 = vpack.c.b16 %v1417, %v1409
    %v2074 = vpack.c.b16 %v1418, %v1410
    %v2075 = vpack.c.b16 %v1419, %v1411
    %v2076 = vpack.c.b16 %v1420, %v1412
    %v2077 = vpack.c.b16 %v1421, %v1413
    %v2078 = vpack.c.b16 %v1422, %v1414
    %v2079 = vpack.c.b16 %v1423, %v1415
    %v2080 = vpack.c.b16 %v1424, %v1416
    %v2081 = vpack.c.b16 %v1433, %v1425
    %v2082 = vpack.c.b16 %v1434, %v1426
    %v2083 = vpack.c.b16 %v1435, %v1427
    %v2084 = vpack.c.b16 %v1436, %v1428
    %v2085 = vpack.c.b16 %v1437, %v1429
    %v2086 = vpack.c.b16 %v1438, %v1430
    %v2087 = vpack.c.b16 %v1439, %v1431
    %v2088 = vpack.c.b16 %v1440, %v1432
    %v2089 = vpack.c.b16 %v1449, %v1441
    %v2090 = vpack.c.b16 %v1450, %v1442
    %v2091 = vpack.c.b16 %v1451, %v1443
    %v2092 = vpack.c.b16 %v1452, %v1444
    %v2093 = vpack.c.b16 %v1453, %v1445
    %v2094 = vpack.c.b16 %v1454, %v1446
    %v2095 = vpack.c.b16 %v1455, %v1447
    %v2096 = vpack.c.b16 %v1456, %v1448
    %v2097 = vpack.c.b16 %v1465, %v1457
    %v2098 = vpack.c.b16 %v1466, %v1458
    %v2099 = vpack.c.b16 %v1467, %v1459
    %v2100 = vpack.c.b16 %v1468, %v1460
    %v2101 = vpack.c.b16 %v1469, %v1461
    %v2102 = vpack.c.b16 %v1470, %v1462
    %v2103 = vpack.c.b16 %v1471, %v1463
    %v2104 = vpack.c.b16 %v1472, %v1464
    %v2105 = vpack.c.b16 %v1481, %v1473
    %v2106 = vpack.c.b16 %v1482, %v1474
    %v2107 = vpack.c.b16 %v1483, %v1475
    %v2108 = vpack.c.b16 %v1484, %v1476
    %v2109 = vpack.c.b16 %v1485, %v1477
    %v2110 = vpack.c.b16 %v1486, %v1478
    %v2111 = vpack.c.b16 %v1487, %v1479
    %v2112 = vpack.c.b16 %v1488, %v1480
    %v2113 = vpack.c.b16 %v1497, %v1489
    %v2114 = vpack.c.b16 %v1498, %v1490
    %v2115 = vpack.c.b16 %v1499, %v1491
    %v2116 = vpack.c.b16 %v1500, %v1492
    %v2117 = vpack.c.b16 %v1501, %v1493
    %v2118 = vpack.c.b16 %v1502, %v1494
    %v2119 = vpack.c.b16 %v1503, %v1495
    %v2120 = vpack.c.b16 %v1504, %v1496
    %v2121 = vpack.c.b16 %v1513, %v1505
    %v2122 = vpack.c.b16 %v1514, %v1506
    %v2123 = vpack.c.b16 %v1515, %v1507
    %v2124 = vpack.c.b16 %v1516, %v1508
    %v2125 = vpack.c.b16 %v1517, %v1509
    %v2126 = vpack.c.b16 %v1518, %v1510
    %v2127 = vpack.c.b16 %v1519, %v1511
    %v2128 = vpack.c.b16 %v1520, %v1512
    %v2129 = vpack.c.b16 %v1529, %v1521
    %v2130 = vpack.c.b16 %v1530, %v1522
    %v2131 = vpack.c.b16 %v1531, %v1523
    %v2132 = vpack.c.b16 %v1532, %v1524
    %v2133 = vpack.c.b16 %v1533, %v1525
    %v2134 = vpack.c.b16 %v1534, %v1526
    %v2135 = vpack.c.b16 %v1535, %v1527
    %v2136 = vpack.c.b16 %v1536, %v1528
    %v2137 = vpack.c.b16 %v1545, %v1537
    %v2138 = vpack.c.b16 %v1546, %v1538
    %v2139 = vpack.c.b16 %v1547, %v1539
    %v2140 = vpack.c.b16 %v1548, %v1540
    %v2141 = vpack.c.b16 %v1549, %v1541
    %v2142 = vpack.c.b16 %v1550, %v1542
    %v2143 = vpack.c.b16 %v1551, %v1543
    %v2144 = vpack.c.b16 %v1552, %v1544
    %v2145 = vpack.c.b16 %v1561, %v1553
    %v2146 = vpack.c.b16 %v1562, %v1554
    %v2147 = vpack.c.b16 %v1563, %v1555
    %v2148 = vpack.c.b16 %v1564, %v1556
    %v2149 = vpack.c.b16 %v1565, %v1557
    %v2150 = vpack.c.b16 %v1566, %v1558
    %v2151 = vpack.c.b16 %v1567, %v1559
    %v2152 = vpack.c.b16 %v1568, %v1560
    %v2153 = vpack.c.b16 %v1577, %v1569
    %v2154 = vpack.c.b16 %v1578, %v1570
    %v2155 = vpack.c.b16 %v1579, %v1571
    %v2156 = vpack.c.b16 %v1580, %v1572
    %v2157 = vpack.c.b16 %v1581, %v1573
    %v2158 = vpack.c.b16 %v1582, %v1574
    %v2159 = vpack.c.b16 %v1583, %v1575
    %v2160 = vpack.c.b16 %v1584, %v1576
    %v2161 = vpack.c.b16 %v1593, %v1585
    %v2162 = vpack.c.b16 %v1594, %v1586
    %v2163 = vpack.c.b16 %v1595, %v1587
    %v2164 = vpack.c.b16 %v1596, %v1588
    %v2165 = vpack.c.b16 %v1597, %v1589
    %v2166 = vpack.c.b16 %v1598, %v1590
    %v2167 = vpack.c.b16 %v1599, %v1591
    %v2168 = vpack.c.b16 %v1600, %v1592
    %v2169 = vpack.c.b16 %v1609, %v1601
    %v2170 = vpack.c.b16 %v1610, %v1602
    %v2171 = vpack.c.b16 %v1611, %v1603
    %v2172 = vpack.c.b16 %v1612, %v1604
    %v2173 = vpack.c.b16 %v1613, %v1605
    %v2174 = vpack.c.b16 %v1614, %v1606
    %v2175 = vpack.c.b16 %v1615, %v1607
    %v2176 = vpack.c.b16 %v1616, %v1608
    %v2177 = vpack.c.b16 %v1625, %v1617
    %v2178 = vpack.c.b16 %v1626, %v1618
    %v2179 = vpack.c.b16 %v1627, %v1619
    %v2180 = vpack.c.b16 %v1628, %v1620
    %v2181 = vpack.c.b16 %v1629, %v1621
    %v2182 = vpack.c.b16 %v1630, %v1622
    %v2183 = vpack.c.b16 %v1631, %v1623
    %v2184 = vpack.c.b16 %v1632, %v1624
    %v2185 = vpack.c.b16 %v1641, %v1633
    %v2186 = vpack.c.b16 %v1642, %v1634
    %v2187 = vpack.c.b16 %v1643, %v1635
    %v2188 = vpack.c.b16 %v1644, %v1636
    %v2189 = vpack.c.b16 %v1645, %v1637
    %v2190 = vpack.c.b16 %v1646, %v1638
    %v2191 = vpack.c.b16 %v1647, %v1639
    %v2192 = vpack.c.b16 %v1648, %v1640
    %v2193 = vpack.c.b16 %v1657, %v1649
    %v2194 = vpack.c.b16 %v1658, %v1650
    %v2195 = vpack.c.b16 %v1659, %v1651
    %v2196 = vpack.c.b16 %v1660, %v1652
    %v2197 = vpack.c.b16 %v1661, %v1653
    %v2198 = vpack.c.b16 %v1662, %v1654
    %v2199 = vpack.c.b16 %v1663, %v1655
    %v2200 = vpack.c.b16 %v1664, %v1656
    %v2201 = vpack.c.b16 %v1673, %v1665
    %v2202 = vpack.c.b16 %v1674, %v1666
    %v2203 = vpack.c.b16 %v1675, %v1667
    %v2204 = vpack.c.b16 %v1676, %v1668
    %v2205 = vpack.c.b16 %v1677, %v1669
    %v2206 = vpack.c.b16 %v1678, %v1670
    %v2207 = vpack.c.b16 %v1679, %v1671
    %v2208 = vpack.c.b16 %v1680, %v1672
    %v2209 = vpack.c.b16 %v1689, %v1681
    %v2210 = vpack.c.b16 %v1690, %v1682
    %v2211 = vpack.c.b16 %v1691, %v1683
    %v2212 = vpack.c.b16 %v1692, %v1684
    %v2213 = vpack.c.b16 %v1693, %v1685
    %v2214 = vpack.c.b16 %v1694, %v1686
    %v2215 = vpack.c.b16 %v1695, %v1687
    %v2216 = vpack.c.b16 %v1696, %v1688
    %v2217 = vpack.c.b16 %v1705, %v1697
    %v2218 = vpack.c.b16 %v1706, %v1698
    %v2219 = vpack.c.b16 %v1707, %v1699
    %v2220 = vpack.c.b16 %v1708, %v1700
    %v2221 = vpack.c.b16 %v1709, %v1701
    %v2222 = vpack.c.b16 %v1710, %v1702
    %v2223 = vpack.c.b16 %v1711, %v1703
    %v2224 = vpack.c.b16 %v1712, %v1704
    %v2225 = vpack.c.b16 %v1721, %v1713
    %v2226 = vpack.c.b16 %v1722, %v1714
    %v2227 = vpack.c.b16 %v1723, %v1715
    %v2228 = vpack.c.b16 %v1724, %v1716
    %v2229 = vpack.c.b16 %v1725, %v1717
    %v2230 = vpack.c.b16 %v1726, %v1718
    %v2231 = vpack.c.b16 %v1727, %v1719
    %v2232 = vpack.c.b16 %v1728, %v1720
    %v2233 = vpack.c.b16 %v1737, %v1729
    %v2234 = vpack.c.b16 %v1738, %v1730
    %v2235 = vpack.c.b16 %v1739, %v1731
    %v2236 = vpack.c.b16 %v1740, %v1732
    %v2237 = vpack.c.b16 %v1741, %v1733
    %v2238 = vpack.c.b16 %v1742, %v1734
    %v2239 = vpack.c.b16 %v1743, %v1735
    %v2240 = vpack.c.b16 %v1744, %v1736
    %v2241 = vpack.c.b16 %v1753, %v1745
    %v2242 = vpack.c.b16 %v1754, %v1746
    %v2243 = vpack.c.b16 %v1755, %v1747
    %v2244 = vpack.c.b16 %v1756, %v1748
    %v2245 = vpack.c.b16 %v1757, %v1749
    %v2246 = vpack.c.b16 %v1758, %v1750
    %v2247 = vpack.c.b16 %v1759, %v1751
    %v2248 = vpack.c.b16 %v1760, %v1752
    %v2249 = vpack.c.b16 %v1769, %v1761
    %v2250 = vpack.c.b16 %v1770, %v1762
    %v2251 = vpack.c.b16 %v1771, %v1763
    %v2252 = vpack.c.b16 %v1772, %v1764
    %v2253 = vpack.c.b16 %v1773, %v1765
    %v2254 = vpack.c.b16 %v1774, %v1766
    %v2255 = vpack.c.b16 %v1775, %v1767
    %v2256 = vpack.c.b16 %v1776, %v1768
    %v2257 = vpack.c.b16 %v1785, %v1777
    %v2258 = vpack.c.b16 %v1786, %v1778
    %v2259 = vpack.c.b16 %v1787, %v1779
    %v2260 = vpack.c.b16 %v1788, %v1780
    %v2261 = vpack.c.b16 %v1789, %v1781
    %v2262 = vpack.c.b16 %v1790, %v1782
    %v2263 = vpack.c.b16 %v1791, %v1783
    %v2264 = vpack.c.b16 %v1792, %v1784
    %v2265 = vpack.c.b16 %v1801, %v1793
    %v2266 = vpack.c.b16 %v1802, %v1794
    %v2267 = vpack.c.b16 %v1803, %v1795
    %v2268 = vpack.c.b16 %v1804, %v1796
    %v2269 = vpack.c.b16 %v1805, %v1797
    %v2270 = vpack.c.b16 %v1806, %v1798
    %v2271 = vpack.c.b16 %v1807, %v1799
    %v2272 = vpack.c.b16 %v1808, %v1800
    %v2273 = vpack.c.b16 %v1817, %v1809
    %v2274 = vpack.c.b16 %v1818, %v1810
    %v2275 = vpack.c.b16 %v1819, %v1811
    %v2276 = vpack.c.b16 %v1820, %v1812
    %v2277 = vpack.c.b16 %v1821, %v1813
    %v2278 = vpack.c.b16 %v1822, %v1814
    %v2279 = vpack.c.b16 %v1823, %v1815
    %v2280 = vpack.c.b16 %v1824, %v1816
    %v2281 = vpack.c.b16 %v1833, %v1825
    %v2282 = vpack.c.b16 %v1834, %v1826
    %v2283 = vpack.c.b16 %v1835, %v1827
    %v2284 = vpack.c.b16 %v1836, %v1828
    %v2285 = vpack.c.b16 %v1837, %v1829
    %v2286 = vpack.c.b16 %v1838, %v1830
    %v2287 = vpack.c.b16 %v1839, %v1831
    %v2288 = vpack.c.b16 %v1840, %v1832
    %v2289 = vpack.c.b16 %v1849, %v1841
    %v2290 = vpack.c.b16 %v1850, %v1842
    %v2291 = vpack.c.b16 %v1851, %v1843
    %v2292 = vpack.c.b16 %v1852, %v1844
    %v2293 = vpack.c.b16 %v1853, %v1845
    %v2294 = vpack.c.b16 %v1854, %v1846
    %v2295 = vpack.c.b16 %v1855, %v1847
    %v2296 = vpack.c.b16 %v1856, %v1848
    %v2297 = vpack.c.b16 %v1865, %v1857
    %v2298 = vpack.c.b16 %v1866, %v1858
    %v2299 = vpack.c.b16 %v1867, %v1859
    %v2300 = vpack.c.b16 %v1868, %v1860
    %v2301 = vpack.c.b16 %v1869, %v1861
    %v2302 = vpack.c.b16 %v1870, %v1862
    %v2303 = vpack.c.b16 %v1871, %v1863
    %v2304 = vpack.c.b16 %v1872, %v1864
    %v2305 = vpack.c.b16 %v1881, %v1873
    %v2306 = vpack.c.b16 %v1882, %v1874
    %v2307 = vpack.c.b16 %v1883, %v1875
    %v2308 = vpack.c.b16 %v1884, %v1876
    %v2309 = vpack.c.b16 %v1885, %v1877
    %v2310 = vpack.c.b16 %v1886, %v1878
    %v2311 = vpack.c.b16 %v1887, %v1879
    %v2312 = vpack.c.b16 %v1888, %v1880
    %v2313 = vpack.c.b16 %v1897, %v1889
    %v2314 = vpack.c.b16 %v1898, %v1890
    %v2315 = vpack.c.b16 %v1899, %v1891
    %v2316 = vpack.c.b16 %v1900, %v1892
    %v2317 = vpack.c.b16 %v1901, %v1893
    %v2318 = vpack.c.b16 %v1902, %v1894
    %v2319 = vpack.c.b16 %v1903, %v1895
    %v2320 = vpack.c.b16 %v1904, %v1896
    %v2321 = vpack.c.b16 %v1913, %v1905
    %v2322 = vpack.c.b16 %v1914, %v1906
    %v2323 = vpack.c.b16 %v1915, %v1907
    %v2324 = vpack.c.b16 %v1916, %v1908
    %v2325 = vpack.c.b16 %v1917, %v1909
    %v2326 = vpack.c.b16 %v1918, %v1910
    %v2327 = vpack.c.b16 %v1919, %v1911
    %v2328 = vpack.c.b16 %v1920, %v1912
    %v2329 = vpack.c.b16 %v1929, %v1921
    %v2330 = vpack.c.b16 %v1930, %v1922
    %v2331 = vpack.c.b16 %v1931, %v1923
    %v2332 = vpack.c.b16 %v1932, %v1924
    %v2333 = vpack.c.b16 %v1933, %v1925
    %v2334 = vpack.c.b16 %v1934, %v1926
    %v2335 = vpack.c.b16 %v1935, %v1927
    %v2336 = vpack.c.b16 %v1936, %v1928
    %v2337 = vpack.c.b16 %v1945, %v1937
    %v2338 = vpack.c.b16 %v1946, %v1938
    %v2339 = vpack.c.b16 %v1947, %v1939
    %v2340 = vpack.c.b16 %v1948, %v1940
    %v2341 = vpack.c.b16 %v1949, %v1941
    %v2342 = vpack.c.b16 %v1950, %v1942
    %v2343 = vpack.c.b16 %v1951, %v1943
    %v2344 = vpack.c.b16 %v1952, %v1944
    %vm2737 = vcmask 130048
    %v2739 = vsel %vm2737, %v209, 0
    %2741 = vmatpush.bf16.msra.mxu0 %v2009
    %2742 = vmatpush.bf16.msra.mxu0 %v2001
    %2743 = vmatpush.bf16.msra.mxu0 %v1993
    %2744 = vmatpush.bf16.msra.mxu0 %v1985
    %2745 = vmatpush.bf16.msra.mxu0 %v1977
    %2746 = vmatpush.bf16.msra.mxu0 %v1969
    %2747 = vmatpush.bf16.msra.mxu0 %v1961
    %2748 = vmatpush.bf16.msra.mxu0 %v1953
    %2749 = vmatmul.bf16.gmra.mxu0 %v203
    %v2750 = vpop.f32.mrf.mxu0
    %v2751 = vadd.f32 %v683, %v2750
    %v2752 = vpop.f32.mrf.mxu0
    %2753 = vdwg.mxu0
    %2754 = vmatpush.bf16.msra.mxu0 %v2073
    %2755 = vmatpush.bf16.msra.mxu0 %v2065
    %2756 = vmatpush.bf16.msra.mxu0 %v2057
    %2757 = vmatpush.bf16.msra.mxu0 %v2049
    %2758 = vmatpush.bf16.msra.mxu0 %v2041
    %2759 = vmatpush.bf16.msra.mxu0 %v2033
    %2760 = vmatpush.bf16.msra.mxu0 %v2025
    %2761 = vmatpush.bf16.msra.mxu0 %v2017
    %2762 = vmatmul.bf16.gmra.mxu0 %v204
    %v2763 = vpop.f32.mrf.mxu0
    %v2764 = vadd.f32 %v2751, %v2763
    %v2765 = vpop.f32.mrf.mxu0
    %2766 = vdwg.mxu0
    %2767 = vmatpush.bf16.msra.mxu0 %v2137
    %2768 = vmatpush.bf16.msra.mxu0 %v2129
    %2769 = vmatpush.bf16.msra.mxu0 %v2121
    %2770 = vmatpush.bf16.msra.mxu0 %v2113
    %2771 = vmatpush.bf16.msra.mxu0 %v2105
    %2772 = vmatpush.bf16.msra.mxu0 %v2097
    %2773 = vmatpush.bf16.msra.mxu0 %v2089
    %2774 = vmatpush.bf16.msra.mxu0 %v2081
    %2775 = vmatmul.bf16.gmra.mxu0 %v205
    %v2776 = vpop.f32.mrf.mxu0
    %v2777 = vadd.f32 %v2764, %v2776
    %v2778 = vpop.f32.mrf.mxu0
    %2779 = vdwg.mxu0
    %2780 = vmatpush.bf16.msra.mxu0 %v2201
    %2781 = vmatpush.bf16.msra.mxu0 %v2193
    %2782 = vmatpush.bf16.msra.mxu0 %v2185
    %2783 = vmatpush.bf16.msra.mxu0 %v2177
    %2784 = vmatpush.bf16.msra.mxu0 %v2169
    %2785 = vmatpush.bf16.msra.mxu0 %v2161
    %2786 = vmatpush.bf16.msra.mxu0 %v2153
    %2787 = vmatpush.bf16.msra.mxu0 %v2145
    %2788 = vmatmul.bf16.gmra.mxu0 %v206
    %v2789 = vpop.f32.mrf.mxu0
    %v2790 = vadd.f32 %v2777, %v2789
    %v2791 = vpop.f32.mrf.mxu0
    %2792 = vdwg.mxu0
    %2793 = vmatpush.bf16.msra.mxu0 %v2265
    %2794 = vmatpush.bf16.msra.mxu0 %v2257
    %2795 = vmatpush.bf16.msra.mxu0 %v2249
    %2796 = vmatpush.bf16.msra.mxu0 %v2241
    %2797 = vmatpush.bf16.msra.mxu0 %v2233
    %2798 = vmatpush.bf16.msra.mxu0 %v2225
    %2799 = vmatpush.bf16.msra.mxu0 %v2217
    %2800 = vmatpush.bf16.msra.mxu0 %v2209
    %2801 = vmatmul.bf16.gmra.mxu0 %v207
    %v2802 = vpop.f32.mrf.mxu0
    %v2803 = vadd.f32 %v2790, %v2802
    %v2804 = vpop.f32.mrf.mxu0
    %2805 = vdwg.mxu0
    %2806 = vmatpush.bf16.msra.mxu0 %v2329
    %2807 = vmatpush.bf16.msra.mxu0 %v2321
    %2808 = vmatpush.bf16.msra.mxu0 %v2313
    %2809 = vmatpush.bf16.msra.mxu0 %v2305
    %2810 = vmatpush.bf16.msra.mxu0 %v2297
    %2811 = vmatpush.bf16.msra.mxu0 %v2289
    %2812 = vmatpush.bf16.msra.mxu0 %v2281
    %2813 = vmatpush.bf16.msra.mxu0 %v2273
    %2814 = vmatmul.bf16.gmra.mxu0 %v208
    %v2815 = vpop.f32.mrf.mxu0
    %v2816 = vadd.f32 %v2803, %v2815
    %v2817 = vpop.f32.mrf.mxu0
    %2818 = vdwg.mxu0
    %2819 = vmatpush.bf16.msra.mxu0 0
    %2820 = vmatpush.bf16.msra.mxu0 0
    %2821 = vmatpush.bf16.msra.mxu0 0
    %2822 = vmatpush.bf16.msra.mxu0 0
    %2823 = vmatpush.bf16.msra.mxu0 0
    %2824 = vmatpush.bf16.msra.mxu0 0
    %2825 = vmatpush.bf16.msra.mxu0 0
    %2826 = vmatpush.bf16.msra.mxu0 %v2337
    %2827 = vmatmul.bf16.gmra.mxu0 %v2739
    %v2828 = vpop.f32.mrf.mxu0
    %v2829 = vadd.f32 %v2816, %v2828
    %v2830 = vpop.f32.mrf.mxu0
    %2831 = vdwg.mxu0
    %2832 = vmatpush.bf16.msra.mxu0 %v2010
    %2833 = vmatpush.bf16.msra.mxu0 %v2002
    %2834 = vmatpush.bf16.msra.mxu0 %v1994
    %2835 = vmatpush.bf16.msra.mxu0 %v1986
    %2836 = vmatpush.bf16.msra.mxu0 %v1978
    %2837 = vmatpush.bf16.msra.mxu0 %v1970
    %2838 = vmatpush.bf16.msra.mxu0 %v1962
    %2839 = vmatpush.bf16.msra.mxu0 %v1954
    %2840 = vmatmul.bf16.gmra.mxu0 %v203
    %v2841 = vpop.f32.mrf.mxu0
    %v2842 = vadd.f32 %v696, %v2841
    %v2843 = vpop.f32.mrf.mxu0
    %2844 = vdwg.mxu0
    %2845 = vmatpush.bf16.msra.mxu0 %v2074
    %2846 = vmatpush.bf16.msra.mxu0 %v2066
    %2847 = vmatpush.bf16.msra.mxu0 %v2058
    %2848 = vmatpush.bf16.msra.mxu0 %v2050
    %2849 = vmatpush.bf16.msra.mxu0 %v2042
    %2850 = vmatpush.bf16.msra.mxu0 %v2034
    %2851 = vmatpush.bf16.msra.mxu0 %v2026
    %2852 = vmatpush.bf16.msra.mxu0 %v2018
    %2853 = vmatmul.bf16.gmra.mxu0 %v204
    %v2854 = vpop.f32.mrf.mxu0
    %v2855 = vadd.f32 %v2842, %v2854
    %v2856 = vpop.f32.mrf.mxu0
    %2857 = vdwg.mxu0
    %2858 = vmatpush.bf16.msra.mxu0 %v2138
    %2859 = vmatpush.bf16.msra.mxu0 %v2130
    %2860 = vmatpush.bf16.msra.mxu0 %v2122
    %2861 = vmatpush.bf16.msra.mxu0 %v2114
    %2862 = vmatpush.bf16.msra.mxu0 %v2106
    %2863 = vmatpush.bf16.msra.mxu0 %v2098
    %2864 = vmatpush.bf16.msra.mxu0 %v2090
    %2865 = vmatpush.bf16.msra.mxu0 %v2082
    %2866 = vmatmul.bf16.gmra.mxu0 %v205
    %v2867 = vpop.f32.mrf.mxu0
    %v2868 = vadd.f32 %v2855, %v2867
    %v2869 = vpop.f32.mrf.mxu0
    %2870 = vdwg.mxu0
    %2871 = vmatpush.bf16.msra.mxu0 %v2202
    %2872 = vmatpush.bf16.msra.mxu0 %v2194
    %2873 = vmatpush.bf16.msra.mxu0 %v2186
    %2874 = vmatpush.bf16.msra.mxu0 %v2178
    %2875 = vmatpush.bf16.msra.mxu0 %v2170
    %2876 = vmatpush.bf16.msra.mxu0 %v2162
    %2877 = vmatpush.bf16.msra.mxu0 %v2154
    %2878 = vmatpush.bf16.msra.mxu0 %v2146
    %2879 = vmatmul.bf16.gmra.mxu0 %v206
    %v2880 = vpop.f32.mrf.mxu0
    %v2881 = vadd.f32 %v2868, %v2880
    %v2882 = vpop.f32.mrf.mxu0
    %2883 = vdwg.mxu0
    %2884 = vmatpush.bf16.msra.mxu0 %v2266
    %2885 = vmatpush.bf16.msra.mxu0 %v2258
    %2886 = vmatpush.bf16.msra.mxu0 %v2250
    %2887 = vmatpush.bf16.msra.mxu0 %v2242
    %2888 = vmatpush.bf16.msra.mxu0 %v2234
    %2889 = vmatpush.bf16.msra.mxu0 %v2226
    %2890 = vmatpush.bf16.msra.mxu0 %v2218
    %2891 = vmatpush.bf16.msra.mxu0 %v2210
    %2892 = vmatmul.bf16.gmra.mxu0 %v207
    %v2893 = vpop.f32.mrf.mxu0
    %v2894 = vadd.f32 %v2881, %v2893
    %v2895 = vpop.f32.mrf.mxu0
    %2896 = vdwg.mxu0
    %2897 = vmatpush.bf16.msra.mxu0 %v2330
    %2898 = vmatpush.bf16.msra.mxu0 %v2322
    %2899 = vmatpush.bf16.msra.mxu0 %v2314
    %2900 = vmatpush.bf16.msra.mxu0 %v2306
    %2901 = vmatpush.bf16.msra.mxu0 %v2298
    %2902 = vmatpush.bf16.msra.mxu0 %v2290
    %2903 = vmatpush.bf16.msra.mxu0 %v2282
    %2904 = vmatpush.bf16.msra.mxu0 %v2274
    %2905 = vmatmul.bf16.gmra.mxu0 %v208
    %v2906 = vpop.f32.mrf.mxu0
    %v2907 = vadd.f32 %v2894, %v2906
    %v2908 = vpop.f32.mrf.mxu0
    %2909 = vdwg.mxu0
    %2910 = vmatpush.bf16.msra.mxu0 0
    %2911 = vmatpush.bf16.msra.mxu0 0
    %2912 = vmatpush.bf16.msra.mxu0 0
    %2913 = vmatpush.bf16.msra.mxu0 0
    %2914 = vmatpush.bf16.msra.mxu0 0
    %2915 = vmatpush.bf16.msra.mxu0 0
    %2916 = vmatpush.bf16.msra.mxu0 0
    %2917 = vmatpush.bf16.msra.mxu0 %v2338
    %2918 = vmatmul.bf16.gmra.mxu0 %v2739
    %v2919 = vpop.f32.mrf.mxu0
    %v2920 = vadd.f32 %v2907, %v2919
    %v2921 = vpop.f32.mrf.mxu0
    %2922 = vdwg.mxu0
    %2923 = vmatpush.bf16.msra.mxu0 %v2011
    %2924 = vmatpush.bf16.msra.mxu0 %v2003
    %2925 = vmatpush.bf16.msra.mxu0 %v1995
    %2926 = vmatpush.bf16.msra.mxu0 %v1987
    %2927 = vmatpush.bf16.msra.mxu0 %v1979
    %2928 = vmatpush.bf16.msra.mxu0 %v1971
    %2929 = vmatpush.bf16.msra.mxu0 %v1963
    %2930 = vmatpush.bf16.msra.mxu0 %v1955
    %2931 = vmatmul.bf16.gmra.mxu0 %v203
    %v2932 = vpop.f32.mrf.mxu0
    %v2933 = vadd.f32 %v709, %v2932
    %v2934 = vpop.f32.mrf.mxu0
    %2935 = vdwg.mxu0
    %2936 = vmatpush.bf16.msra.mxu0 %v2075
    %2937 = vmatpush.bf16.msra.mxu0 %v2067
    %2938 = vmatpush.bf16.msra.mxu0 %v2059
    %2939 = vmatpush.bf16.msra.mxu0 %v2051
    %2940 = vmatpush.bf16.msra.mxu0 %v2043
    %2941 = vmatpush.bf16.msra.mxu0 %v2035
    %2942 = vmatpush.bf16.msra.mxu0 %v2027
    %2943 = vmatpush.bf16.msra.mxu0 %v2019
    %2944 = vmatmul.bf16.gmra.mxu0 %v204
    %v2945 = vpop.f32.mrf.mxu0
    %v2946 = vadd.f32 %v2933, %v2945
    %v2947 = vpop.f32.mrf.mxu0
    %2948 = vdwg.mxu0
    %2949 = vmatpush.bf16.msra.mxu0 %v2139
    %2950 = vmatpush.bf16.msra.mxu0 %v2131
    %2951 = vmatpush.bf16.msra.mxu0 %v2123
    %2952 = vmatpush.bf16.msra.mxu0 %v2115
    %2953 = vmatpush.bf16.msra.mxu0 %v2107
    %2954 = vmatpush.bf16.msra.mxu0 %v2099
    %2955 = vmatpush.bf16.msra.mxu0 %v2091
    %2956 = vmatpush.bf16.msra.mxu0 %v2083
    %2957 = vmatmul.bf16.gmra.mxu0 %v205
    %v2958 = vpop.f32.mrf.mxu0
    %v2959 = vadd.f32 %v2946, %v2958
    %v2960 = vpop.f32.mrf.mxu0
    %2961 = vdwg.mxu0
    %2962 = vmatpush.bf16.msra.mxu0 %v2203
    %2963 = vmatpush.bf16.msra.mxu0 %v2195
    %2964 = vmatpush.bf16.msra.mxu0 %v2187
    %2965 = vmatpush.bf16.msra.mxu0 %v2179
    %2966 = vmatpush.bf16.msra.mxu0 %v2171
    %2967 = vmatpush.bf16.msra.mxu0 %v2163
    %2968 = vmatpush.bf16.msra.mxu0 %v2155
    %2969 = vmatpush.bf16.msra.mxu0 %v2147
    %2970 = vmatmul.bf16.gmra.mxu0 %v206
    %v2971 = vpop.f32.mrf.mxu0
    %v2972 = vadd.f32 %v2959, %v2971
    %v2973 = vpop.f32.mrf.mxu0
    %2974 = vdwg.mxu0
    %2975 = vmatpush.bf16.msra.mxu0 %v2267
    %2976 = vmatpush.bf16.msra.mxu0 %v2259
    %2977 = vmatpush.bf16.msra.mxu0 %v2251
    %2978 = vmatpush.bf16.msra.mxu0 %v2243
    %2979 = vmatpush.bf16.msra.mxu0 %v2235
    %2980 = vmatpush.bf16.msra.mxu0 %v2227
    %2981 = vmatpush.bf16.msra.mxu0 %v2219
    %2982 = vmatpush.bf16.msra.mxu0 %v2211
    %2983 = vmatmul.bf16.gmra.mxu0 %v207
    %v2984 = vpop.f32.mrf.mxu0
    %v2985 = vadd.f32 %v2972, %v2984
    %v2986 = vpop.f32.mrf.mxu0
    %2987 = vdwg.mxu0
    %2988 = vmatpush.bf16.msra.mxu0 %v2331
    %2989 = vmatpush.bf16.msra.mxu0 %v2323
    %2990 = vmatpush.bf16.msra.mxu0 %v2315
    %2991 = vmatpush.bf16.msra.mxu0 %v2307
    %2992 = vmatpush.bf16.msra.mxu0 %v2299
    %2993 = vmatpush.bf16.msra.mxu0 %v2291
    %2994 = vmatpush.bf16.msra.mxu0 %v2283
    %2995 = vmatpush.bf16.msra.mxu0 %v2275
    %2996 = vmatmul.bf16.gmra.mxu0 %v208
    %v2997 = vpop.f32.mrf.mxu0
    %v2998 = vadd.f32 %v2985, %v2997
    %v2999 = vpop.f32.mrf.mxu0
    %3000 = vdwg.mxu0
    %3001 = vmatpush.bf16.msra.mxu0 0
    %3002 = vmatpush.bf16.msra.mxu0 0
    %3003 = vmatpush.bf16.msra.mxu0 0
    %3004 = vmatpush.bf16.msra.mxu0 0
    %3005 = vmatpush.bf16.msra.mxu0 0
    %3006 = vmatpush.bf16.msra.mxu0 0
    %3007 = vmatpush.bf16.msra.mxu0 0
    %3008 = vmatpush.bf16.msra.mxu0 %v2339
    %3009 = vmatmul.bf16.gmra.mxu0 %v2739
    %v3010 = vpop.f32.mrf.mxu0
    %v3011 = vadd.f32 %v2998, %v3010
    %v3012 = vpop.f32.mrf.mxu0
    %3013 = vdwg.mxu0
    %3014 = vmatpush.bf16.msra.mxu0 %v2012
    %3015 = vmatpush.bf16.msra.mxu0 %v2004
    %3016 = vmatpush.bf16.msra.mxu0 %v1996
    %3017 = vmatpush.bf16.msra.mxu0 %v1988
    %3018 = vmatpush.bf16.msra.mxu0 %v1980
    %3019 = vmatpush.bf16.msra.mxu0 %v1972
    %3020 = vmatpush.bf16.msra.mxu0 %v1964
    %3021 = vmatpush.bf16.msra.mxu0 %v1956
    %3022 = vmatmul.bf16.gmra.mxu0 %v203
    %v3023 = vpop.f32.mrf.mxu0
    %v3024 = vadd.f32 %v722, %v3023
    %v3025 = vpop.f32.mrf.mxu0
    %3026 = vdwg.mxu0
    %3027 = vmatpush.bf16.msra.mxu0 %v2076
    %3028 = vmatpush.bf16.msra.mxu0 %v2068
    %3029 = vmatpush.bf16.msra.mxu0 %v2060
    %3030 = vmatpush.bf16.msra.mxu0 %v2052
    %3031 = vmatpush.bf16.msra.mxu0 %v2044
    %3032 = vmatpush.bf16.msra.mxu0 %v2036
    %3033 = vmatpush.bf16.msra.mxu0 %v2028
    %3034 = vmatpush.bf16.msra.mxu0 %v2020
    %3035 = vmatmul.bf16.gmra.mxu0 %v204
    %v3036 = vpop.f32.mrf.mxu0
    %v3037 = vadd.f32 %v3024, %v3036
    %v3038 = vpop.f32.mrf.mxu0
    %3039 = vdwg.mxu0
    %3040 = vmatpush.bf16.msra.mxu0 %v2140
    %3041 = vmatpush.bf16.msra.mxu0 %v2132
    %3042 = vmatpush.bf16.msra.mxu0 %v2124
    %3043 = vmatpush.bf16.msra.mxu0 %v2116
    %3044 = vmatpush.bf16.msra.mxu0 %v2108
    %3045 = vmatpush.bf16.msra.mxu0 %v2100
    %3046 = vmatpush.bf16.msra.mxu0 %v2092
    %3047 = vmatpush.bf16.msra.mxu0 %v2084
    %3048 = vmatmul.bf16.gmra.mxu0 %v205
    %v3049 = vpop.f32.mrf.mxu0
    %v3050 = vadd.f32 %v3037, %v3049
    %v3051 = vpop.f32.mrf.mxu0
    %3052 = vdwg.mxu0
    %3053 = vmatpush.bf16.msra.mxu0 %v2204
    %3054 = vmatpush.bf16.msra.mxu0 %v2196
    %3055 = vmatpush.bf16.msra.mxu0 %v2188
    %3056 = vmatpush.bf16.msra.mxu0 %v2180
    %3057 = vmatpush.bf16.msra.mxu0 %v2172
    %3058 = vmatpush.bf16.msra.mxu0 %v2164
    %3059 = vmatpush.bf16.msra.mxu0 %v2156
    %3060 = vmatpush.bf16.msra.mxu0 %v2148
    %3061 = vmatmul.bf16.gmra.mxu0 %v206
    %v3062 = vpop.f32.mrf.mxu0
    %v3063 = vadd.f32 %v3050, %v3062
    %v3064 = vpop.f32.mrf.mxu0
    %3065 = vdwg.mxu0
    %3066 = vmatpush.bf16.msra.mxu0 %v2268
    %3067 = vmatpush.bf16.msra.mxu0 %v2260
    %3068 = vmatpush.bf16.msra.mxu0 %v2252
    %3069 = vmatpush.bf16.msra.mxu0 %v2244
    %3070 = vmatpush.bf16.msra.mxu0 %v2236
    %3071 = vmatpush.bf16.msra.mxu0 %v2228
    %3072 = vmatpush.bf16.msra.mxu0 %v2220
    %3073 = vmatpush.bf16.msra.mxu0 %v2212
    %3074 = vmatmul.bf16.gmra.mxu0 %v207
    %v3075 = vpop.f32.mrf.mxu0
    %v3076 = vadd.f32 %v3063, %v3075
    %v3077 = vpop.f32.mrf.mxu0
    %3078 = vdwg.mxu0
    %3079 = vmatpush.bf16.msra.mxu0 %v2332
    %3080 = vmatpush.bf16.msra.mxu0 %v2324
    %3081 = vmatpush.bf16.msra.mxu0 %v2316
    %3082 = vmatpush.bf16.msra.mxu0 %v2308
    %3083 = vmatpush.bf16.msra.mxu0 %v2300
    %3084 = vmatpush.bf16.msra.mxu0 %v2292
    %3085 = vmatpush.bf16.msra.mxu0 %v2284
    %3086 = vmatpush.bf16.msra.mxu0 %v2276
    %3087 = vmatmul.bf16.gmra.mxu0 %v208
    %v3088 = vpop.f32.mrf.mxu0
    %v3089 = vadd.f32 %v3076, %v3088
    %v3090 = vpop.f32.mrf.mxu0
    %3091 = vdwg.mxu0
    %3092 = vmatpush.bf16.msra.mxu0 0
    %3093 = vmatpush.bf16.msra.mxu0 0
    %3094 = vmatpush.bf16.msra.mxu0 0
    %3095 = vmatpush.bf16.msra.mxu0 0
    %3096 = vmatpush.bf16.msra.mxu0 0
    %3097 = vmatpush.bf16.msra.mxu0 0
    %3098 = vmatpush.bf16.msra.mxu0 0
    %3099 = vmatpush.bf16.msra.mxu0 %v2340
    %3100 = vmatmul.bf16.gmra.mxu0 %v2739
    %v3101 = vpop.f32.mrf.mxu0
    %v3102 = vadd.f32 %v3089, %v3101
    %v3103 = vpop.f32.mrf.mxu0
    %3104 = vdwg.mxu0
    %3105 = vmatpush.bf16.msra.mxu0 %v2013
    %3106 = vmatpush.bf16.msra.mxu0 %v2005
    %3107 = vmatpush.bf16.msra.mxu0 %v1997
    %3108 = vmatpush.bf16.msra.mxu0 %v1989
    %3109 = vmatpush.bf16.msra.mxu0 %v1981
    %3110 = vmatpush.bf16.msra.mxu0 %v1973
    %3111 = vmatpush.bf16.msra.mxu0 %v1965
    %3112 = vmatpush.bf16.msra.mxu0 %v1957
    %3113 = vmatmul.bf16.gmra.mxu0 %v203
    %v3114 = vpop.f32.mrf.mxu0
    %v3115 = vadd.f32 %v735, %v3114
    %v3116 = vpop.f32.mrf.mxu0
    %3117 = vdwg.mxu0
    %3118 = vmatpush.bf16.msra.mxu0 %v2077
    %3119 = vmatpush.bf16.msra.mxu0 %v2069
    %3120 = vmatpush.bf16.msra.mxu0 %v2061
    %3121 = vmatpush.bf16.msra.mxu0 %v2053
    %3122 = vmatpush.bf16.msra.mxu0 %v2045
    %3123 = vmatpush.bf16.msra.mxu0 %v2037
    %3124 = vmatpush.bf16.msra.mxu0 %v2029
    %3125 = vmatpush.bf16.msra.mxu0 %v2021
    %3126 = vmatmul.bf16.gmra.mxu0 %v204
    %v3127 = vpop.f32.mrf.mxu0
    %v3128 = vadd.f32 %v3115, %v3127
    %v3129 = vpop.f32.mrf.mxu0
    %3130 = vdwg.mxu0
    %3131 = vmatpush.bf16.msra.mxu0 %v2141
    %3132 = vmatpush.bf16.msra.mxu0 %v2133
    %3133 = vmatpush.bf16.msra.mxu0 %v2125
    %3134 = vmatpush.bf16.msra.mxu0 %v2117
    %3135 = vmatpush.bf16.msra.mxu0 %v2109
    %3136 = vmatpush.bf16.msra.mxu0 %v2101
    %3137 = vmatpush.bf16.msra.mxu0 %v2093
    %3138 = vmatpush.bf16.msra.mxu0 %v2085
    %3139 = vmatmul.bf16.gmra.mxu0 %v205
    %v3140 = vpop.f32.mrf.mxu0
    %v3141 = vadd.f32 %v3128, %v3140
    %v3142 = vpop.f32.mrf.mxu0
    %3143 = vdwg.mxu0
    %3144 = vmatpush.bf16.msra.mxu0 %v2205
    %3145 = vmatpush.bf16.msra.mxu0 %v2197
    %3146 = vmatpush.bf16.msra.mxu0 %v2189
    %3147 = vmatpush.bf16.msra.mxu0 %v2181
    %3148 = vmatpush.bf16.msra.mxu0 %v2173
    %3149 = vmatpush.bf16.msra.mxu0 %v2165
    %3150 = vmatpush.bf16.msra.mxu0 %v2157
    %3151 = vmatpush.bf16.msra.mxu0 %v2149
    %3152 = vmatmul.bf16.gmra.mxu0 %v206
    %v3153 = vpop.f32.mrf.mxu0
    %v3154 = vadd.f32 %v3141, %v3153
    %v3155 = vpop.f32.mrf.mxu0
    %3156 = vdwg.mxu0
    %3157 = vmatpush.bf16.msra.mxu0 %v2269
    %3158 = vmatpush.bf16.msra.mxu0 %v2261
    %3159 = vmatpush.bf16.msra.mxu0 %v2253
    %3160 = vmatpush.bf16.msra.mxu0 %v2245
    %3161 = vmatpush.bf16.msra.mxu0 %v2237
    %3162 = vmatpush.bf16.msra.mxu0 %v2229
    %3163 = vmatpush.bf16.msra.mxu0 %v2221
    %3164 = vmatpush.bf16.msra.mxu0 %v2213
    %3165 = vmatmul.bf16.gmra.mxu0 %v207
    %v3166 = vpop.f32.mrf.mxu0
    %v3167 = vadd.f32 %v3154, %v3166
    %v3168 = vpop.f32.mrf.mxu0
    %3169 = vdwg.mxu0
    %3170 = vmatpush.bf16.msra.mxu0 %v2333
    %3171 = vmatpush.bf16.msra.mxu0 %v2325
    %3172 = vmatpush.bf16.msra.mxu0 %v2317
    %3173 = vmatpush.bf16.msra.mxu0 %v2309
    %3174 = vmatpush.bf16.msra.mxu0 %v2301
    %3175 = vmatpush.bf16.msra.mxu0 %v2293
    %3176 = vmatpush.bf16.msra.mxu0 %v2285
    %3177 = vmatpush.bf16.msra.mxu0 %v2277
    %3178 = vmatmul.bf16.gmra.mxu0 %v208
    %v3179 = vpop.f32.mrf.mxu0
    %v3180 = vadd.f32 %v3167, %v3179
    %v3181 = vpop.f32.mrf.mxu0
    %3182 = vdwg.mxu0
    %3183 = vmatpush.bf16.msra.mxu0 0
    %3184 = vmatpush.bf16.msra.mxu0 0
    %3185 = vmatpush.bf16.msra.mxu0 0
    %3186 = vmatpush.bf16.msra.mxu0 0
    %3187 = vmatpush.bf16.msra.mxu0 0
    %3188 = vmatpush.bf16.msra.mxu0 0
    %3189 = vmatpush.bf16.msra.mxu0 0
    %3190 = vmatpush.bf16.msra.mxu0 %v2341
    %3191 = vmatmul.bf16.gmra.mxu0 %v2739
    %v3192 = vpop.f32.mrf.mxu0
    %v3193 = vadd.f32 %v3180, %v3192
    %v3194 = vpop.f32.mrf.mxu0
    %3195 = vdwg.mxu0
    %3196 = vmatpush.bf16.msra.mxu0 %v2014
    %3197 = vmatpush.bf16.msra.mxu0 %v2006
    %3198 = vmatpush.bf16.msra.mxu0 %v1998
    %3199 = vmatpush.bf16.msra.mxu0 %v1990
    %3200 = vmatpush.bf16.msra.mxu0 %v1982
    %3201 = vmatpush.bf16.msra.mxu0 %v1974
    %3202 = vmatpush.bf16.msra.mxu0 %v1966
    %3203 = vmatpush.bf16.msra.mxu0 %v1958
    %3204 = vmatmul.bf16.gmra.mxu0 %v203
    %v3205 = vpop.f32.mrf.mxu0
    %v3206 = vadd.f32 %v748, %v3205
    %v3207 = vpop.f32.mrf.mxu0
    %3208 = vdwg.mxu0
    %3209 = vmatpush.bf16.msra.mxu0 %v2078
    %3210 = vmatpush.bf16.msra.mxu0 %v2070
    %3211 = vmatpush.bf16.msra.mxu0 %v2062
    %3212 = vmatpush.bf16.msra.mxu0 %v2054
    %3213 = vmatpush.bf16.msra.mxu0 %v2046
    %3214 = vmatpush.bf16.msra.mxu0 %v2038
    %3215 = vmatpush.bf16.msra.mxu0 %v2030
    %3216 = vmatpush.bf16.msra.mxu0 %v2022
    %3217 = vmatmul.bf16.gmra.mxu0 %v204
    %v3218 = vpop.f32.mrf.mxu0
    %v3219 = vadd.f32 %v3206, %v3218
    %v3220 = vpop.f32.mrf.mxu0
    %3221 = vdwg.mxu0
    %3222 = vmatpush.bf16.msra.mxu0 %v2142
    %3223 = vmatpush.bf16.msra.mxu0 %v2134
    %3224 = vmatpush.bf16.msra.mxu0 %v2126
    %3225 = vmatpush.bf16.msra.mxu0 %v2118
    %3226 = vmatpush.bf16.msra.mxu0 %v2110
    %3227 = vmatpush.bf16.msra.mxu0 %v2102
    %3228 = vmatpush.bf16.msra.mxu0 %v2094
    %3229 = vmatpush.bf16.msra.mxu0 %v2086
    %3230 = vmatmul.bf16.gmra.mxu0 %v205
    %v3231 = vpop.f32.mrf.mxu0
    %v3232 = vadd.f32 %v3219, %v3231
    %v3233 = vpop.f32.mrf.mxu0
    %3234 = vdwg.mxu0
    %3235 = vmatpush.bf16.msra.mxu0 %v2206
    %3236 = vmatpush.bf16.msra.mxu0 %v2198
    %3237 = vmatpush.bf16.msra.mxu0 %v2190
    %3238 = vmatpush.bf16.msra.mxu0 %v2182
    %3239 = vmatpush.bf16.msra.mxu0 %v2174
    %3240 = vmatpush.bf16.msra.mxu0 %v2166
    %3241 = vmatpush.bf16.msra.mxu0 %v2158
    %3242 = vmatpush.bf16.msra.mxu0 %v2150
    %3243 = vmatmul.bf16.gmra.mxu0 %v206
    %v3244 = vpop.f32.mrf.mxu0
    %v3245 = vadd.f32 %v3232, %v3244
    %v3246 = vpop.f32.mrf.mxu0
    %3247 = vdwg.mxu0
    %3248 = vmatpush.bf16.msra.mxu0 %v2270
    %3249 = vmatpush.bf16.msra.mxu0 %v2262
    %3250 = vmatpush.bf16.msra.mxu0 %v2254
    %3251 = vmatpush.bf16.msra.mxu0 %v2246
    %3252 = vmatpush.bf16.msra.mxu0 %v2238
    %3253 = vmatpush.bf16.msra.mxu0 %v2230
    %3254 = vmatpush.bf16.msra.mxu0 %v2222
    %3255 = vmatpush.bf16.msra.mxu0 %v2214
    %3256 = vmatmul.bf16.gmra.mxu0 %v207
    %v3257 = vpop.f32.mrf.mxu0
    %v3258 = vadd.f32 %v3245, %v3257
    %v3259 = vpop.f32.mrf.mxu0
    %3260 = vdwg.mxu0
    %3261 = vmatpush.bf16.msra.mxu0 %v2334
    %3262 = vmatpush.bf16.msra.mxu0 %v2326
    %3263 = vmatpush.bf16.msra.mxu0 %v2318
    %3264 = vmatpush.bf16.msra.mxu0 %v2310
    %3265 = vmatpush.bf16.msra.mxu0 %v2302
    %3266 = vmatpush.bf16.msra.mxu0 %v2294
    %3267 = vmatpush.bf16.msra.mxu0 %v2286
    %3268 = vmatpush.bf16.msra.mxu0 %v2278
    %3269 = vmatmul.bf16.gmra.mxu0 %v208
    %v3270 = vpop.f32.mrf.mxu0
    %v3271 = vadd.f32 %v3258, %v3270
    %v3272 = vpop.f32.mrf.mxu0
    %3273 = vdwg.mxu0
    %3274 = vmatpush.bf16.msra.mxu0 0
    %3275 = vmatpush.bf16.msra.mxu0 0
    %3276 = vmatpush.bf16.msra.mxu0 0
    %3277 = vmatpush.bf16.msra.mxu0 0
    %3278 = vmatpush.bf16.msra.mxu0 0
    %3279 = vmatpush.bf16.msra.mxu0 0
    %3280 = vmatpush.bf16.msra.mxu0 0
    %3281 = vmatpush.bf16.msra.mxu0 %v2342
    %3282 = vmatmul.bf16.gmra.mxu0 %v2739
    %v3283 = vpop.f32.mrf.mxu0
    %v3284 = vadd.f32 %v3271, %v3283
    %v3285 = vpop.f32.mrf.mxu0
    %3286 = vdwg.mxu0
    %3287 = vmatpush.bf16.msra.mxu0 %v2015
    %3288 = vmatpush.bf16.msra.mxu0 %v2007
    %3289 = vmatpush.bf16.msra.mxu0 %v1999
    %3290 = vmatpush.bf16.msra.mxu0 %v1991
    %3291 = vmatpush.bf16.msra.mxu0 %v1983
    %3292 = vmatpush.bf16.msra.mxu0 %v1975
    %3293 = vmatpush.bf16.msra.mxu0 %v1967
    %3294 = vmatpush.bf16.msra.mxu0 %v1959
    %3295 = vmatmul.bf16.gmra.mxu0 %v203
    %v3296 = vpop.f32.mrf.mxu0
    %v3297 = vadd.f32 %v761, %v3296
    %v3298 = vpop.f32.mrf.mxu0
    %3299 = vdwg.mxu0
    %3300 = vmatpush.bf16.msra.mxu0 %v2079
    %3301 = vmatpush.bf16.msra.mxu0 %v2071
    %3302 = vmatpush.bf16.msra.mxu0 %v2063
    %3303 = vmatpush.bf16.msra.mxu0 %v2055
    %3304 = vmatpush.bf16.msra.mxu0 %v2047
    %3305 = vmatpush.bf16.msra.mxu0 %v2039
    %3306 = vmatpush.bf16.msra.mxu0 %v2031
    %3307 = vmatpush.bf16.msra.mxu0 %v2023
    %3308 = vmatmul.bf16.gmra.mxu0 %v204
    %v3309 = vpop.f32.mrf.mxu0
    %v3310 = vadd.f32 %v3297, %v3309
    %v3311 = vpop.f32.mrf.mxu0
    %3312 = vdwg.mxu0
    %3313 = vmatpush.bf16.msra.mxu0 %v2143
    %3314 = vmatpush.bf16.msra.mxu0 %v2135
    %3315 = vmatpush.bf16.msra.mxu0 %v2127
    %3316 = vmatpush.bf16.msra.mxu0 %v2119
    %3317 = vmatpush.bf16.msra.mxu0 %v2111
    %3318 = vmatpush.bf16.msra.mxu0 %v2103
    %3319 = vmatpush.bf16.msra.mxu0 %v2095
    %3320 = vmatpush.bf16.msra.mxu0 %v2087
    %3321 = vmatmul.bf16.gmra.mxu0 %v205
    %v3322 = vpop.f32.mrf.mxu0
    %v3323 = vadd.f32 %v3310, %v3322
    %v3324 = vpop.f32.mrf.mxu0
    %3325 = vdwg.mxu0
    %3326 = vmatpush.bf16.msra.mxu0 %v2207
    %3327 = vmatpush.bf16.msra.mxu0 %v2199
    %3328 = vmatpush.bf16.msra.mxu0 %v2191
    %3329 = vmatpush.bf16.msra.mxu0 %v2183
    %3330 = vmatpush.bf16.msra.mxu0 %v2175
    %3331 = vmatpush.bf16.msra.mxu0 %v2167
    %3332 = vmatpush.bf16.msra.mxu0 %v2159
    %3333 = vmatpush.bf16.msra.mxu0 %v2151
    %3334 = vmatmul.bf16.gmra.mxu0 %v206
    %v3335 = vpop.f32.mrf.mxu0
    %v3336 = vadd.f32 %v3323, %v3335
    %v3337 = vpop.f32.mrf.mxu0
    %3338 = vdwg.mxu0
    %3339 = vmatpush.bf16.msra.mxu0 %v2271
    %3340 = vmatpush.bf16.msra.mxu0 %v2263
    %3341 = vmatpush.bf16.msra.mxu0 %v2255
    %3342 = vmatpush.bf16.msra.mxu0 %v2247
    %3343 = vmatpush.bf16.msra.mxu0 %v2239
    %3344 = vmatpush.bf16.msra.mxu0 %v2231
    %3345 = vmatpush.bf16.msra.mxu0 %v2223
    %3346 = vmatpush.bf16.msra.mxu0 %v2215
    %3347 = vmatmul.bf16.gmra.mxu0 %v207
    %v3348 = vpop.f32.mrf.mxu0
    %v3349 = vadd.f32 %v3336, %v3348
    %v3350 = vpop.f32.mrf.mxu0
    %3351 = vdwg.mxu0
    %3352 = vmatpush.bf16.msra.mxu0 %v2335
    %3353 = vmatpush.bf16.msra.mxu0 %v2327
    %3354 = vmatpush.bf16.msra.mxu0 %v2319
    %3355 = vmatpush.bf16.msra.mxu0 %v2311
    %3356 = vmatpush.bf16.msra.mxu0 %v2303
    %3357 = vmatpush.bf16.msra.mxu0 %v2295
    %3358 = vmatpush.bf16.msra.mxu0 %v2287
    %3359 = vmatpush.bf16.msra.mxu0 %v2279
    %3360 = vmatmul.bf16.gmra.mxu0 %v208
    %v3361 = vpop.f32.mrf.mxu0
    %v3362 = vadd.f32 %v3349, %v3361
    %v3363 = vpop.f32.mrf.mxu0
    %3364 = vdwg.mxu0
    %3365 = vmatpush.bf16.msra.mxu0 0
    %3366 = vmatpush.bf16.msra.mxu0 0
    %3367 = vmatpush.bf16.msra.mxu0 0
    %3368 = vmatpush.bf16.msra.mxu0 0
    %3369 = vmatpush.bf16.msra.mxu0 0
    %3370 = vmatpush.bf16.msra.mxu0 0
    %3371 = vmatpush.bf16.msra.mxu0 0
    %3372 = vmatpush.bf16.msra.mxu0 %v2343
    %3373 = vmatmul.bf16.gmra.mxu0 %v2739
    %v3374 = vpop.f32.mrf.mxu0
    %v3375 = vadd.f32 %v3362, %v3374
    %v3376 = vpop.f32.mrf.mxu0
    %3377 = vdwg.mxu0
    %3378 = vmatpush.bf16.msra.mxu0 %v2016
    %3379 = vmatpush.bf16.msra.mxu0 %v2008
    %3380 = vmatpush.bf16.msra.mxu0 %v2000
    %3381 = vmatpush.bf16.msra.mxu0 %v1992
    %3382 = vmatpush.bf16.msra.mxu0 %v1984
    %3383 = vmatpush.bf16.msra.mxu0 %v1976
    %3384 = vmatpush.bf16.msra.mxu0 %v1968
    %3385 = vmatpush.bf16.msra.mxu0 %v1960
    %3386 = vmatmul.bf16.gmra.mxu0 %v203
    %v3387 = vpop.f32.mrf.mxu0
    %v3388 = vadd.f32 %v774, %v3387
    %v3389 = vpop.f32.mrf.mxu0
    %3390 = vdwg.mxu0
    %3391 = vmatpush.bf16.msra.mxu0 %v2080
    %3392 = vmatpush.bf16.msra.mxu0 %v2072
    %3393 = vmatpush.bf16.msra.mxu0 %v2064
    %3394 = vmatpush.bf16.msra.mxu0 %v2056
    %3395 = vmatpush.bf16.msra.mxu0 %v2048
    %3396 = vmatpush.bf16.msra.mxu0 %v2040
    %3397 = vmatpush.bf16.msra.mxu0 %v2032
    %3398 = vmatpush.bf16.msra.mxu0 %v2024
    %3399 = vmatmul.bf16.gmra.mxu0 %v204
    %v3400 = vpop.f32.mrf.mxu0
    %v3401 = vadd.f32 %v3388, %v3400
    %v3402 = vpop.f32.mrf.mxu0
    %3403 = vdwg.mxu0
    %3404 = vmatpush.bf16.msra.mxu0 %v2144
    %3405 = vmatpush.bf16.msra.mxu0 %v2136
    %3406 = vmatpush.bf16.msra.mxu0 %v2128
    %3407 = vmatpush.bf16.msra.mxu0 %v2120
    %3408 = vmatpush.bf16.msra.mxu0 %v2112
    %3409 = vmatpush.bf16.msra.mxu0 %v2104
    %3410 = vmatpush.bf16.msra.mxu0 %v2096
    %3411 = vmatpush.bf16.msra.mxu0 %v2088
    %3412 = vmatmul.bf16.gmra.mxu0 %v205
    %v3413 = vpop.f32.mrf.mxu0
    %v3414 = vadd.f32 %v3401, %v3413
    %v3415 = vpop.f32.mrf.mxu0
    %3416 = vdwg.mxu0
    %3417 = vmatpush.bf16.msra.mxu0 %v2208
    %3418 = vmatpush.bf16.msra.mxu0 %v2200
    %3419 = vmatpush.bf16.msra.mxu0 %v2192
    %3420 = vmatpush.bf16.msra.mxu0 %v2184
    %3421 = vmatpush.bf16.msra.mxu0 %v2176
    %3422 = vmatpush.bf16.msra.mxu0 %v2168
    %3423 = vmatpush.bf16.msra.mxu0 %v2160
    %3424 = vmatpush.bf16.msra.mxu0 %v2152
    %3425 = vmatmul.bf16.gmra.mxu0 %v206
    %v3426 = vpop.f32.mrf.mxu0
    %v3427 = vadd.f32 %v3414, %v3426
    %v3428 = vpop.f32.mrf.mxu0
    %3429 = vdwg.mxu0
    %3430 = vmatpush.bf16.msra.mxu0 %v2272
    %3431 = vmatpush.bf16.msra.mxu0 %v2264
    %3432 = vmatpush.bf16.msra.mxu0 %v2256
    %3433 = vmatpush.bf16.msra.mxu0 %v2248
    %3434 = vmatpush.bf16.msra.mxu0 %v2240
    %3435 = vmatpush.bf16.msra.mxu0 %v2232
    %3436 = vmatpush.bf16.msra.mxu0 %v2224
    %3437 = vmatpush.bf16.msra.mxu0 %v2216
    %3438 = vmatmul.bf16.gmra.mxu0 %v207
    %v3439 = vpop.f32.mrf.mxu0
    %v3440 = vadd.f32 %v3427, %v3439
    %v3441 = vpop.f32.mrf.mxu0
    %3442 = vdwg.mxu0
    %3443 = vmatpush.bf16.msra.mxu0 %v2336
    %3444 = vmatpush.bf16.msra.mxu0 %v2328
    %3445 = vmatpush.bf16.msra.mxu0 %v2320
    %3446 = vmatpush.bf16.msra.mxu0 %v2312
    %3447 = vmatpush.bf16.msra.mxu0 %v2304
    %3448 = vmatpush.bf16.msra.mxu0 %v2296
    %3449 = vmatpush.bf16.msra.mxu0 %v2288
    %3450 = vmatpush.bf16.msra.mxu0 %v2280
    %3451 = vmatmul.bf16.gmra.mxu0 %v208
    %v3452 = vpop.f32.mrf.mxu0
    %v3453 = vadd.f32 %v3440, %v3452
    %v3454 = vpop.f32.mrf.mxu0
    %3455 = vdwg.mxu0
    %3456 = vmatpush.bf16.msra.mxu0 0
    %3457 = vmatpush.bf16.msra.mxu0 0
    %3458 = vmatpush.bf16.msra.mxu0 0
    %3459 = vmatpush.bf16.msra.mxu0 0
    %3460 = vmatpush.bf16.msra.mxu0 0
    %3461 = vmatpush.bf16.msra.mxu0 0
    %3462 = vmatpush.bf16.msra.mxu0 0
    %3463 = vmatpush.bf16.msra.mxu0 %v2344
    %3464 = vmatmul.bf16.gmra.mxu0 %v2739
    %v3465 = vpop.f32.mrf.mxu0
    %v3466 = vadd.f32 %v3453, %v3465
    %v3467 = vpop.f32.mrf.mxu0
    %3468 = vdwg.mxu0
    %v3469 = vld [vmem:[#allocation7] sm:$0xff]
    %v3471 = vperm.slane %v3469, 0
    %v3472 = vperm.slane %v3469, 1
    %v3473 = vperm.slane %v3469, 2
    %v3474 = vperm.slane %v3469, 3
    %v3475 = vperm.slane %v3469, 4
    %v3476 = vperm.slane %v3469, 5
    %v3477 = vperm.slane %v3469, 6
    %v3478 = vperm.slane %v3469, 7
    %v3487 = vadd.f32 %v2829, %v3471
    %v3488 = vadd.f32 %v2920, %v3472
    %v3489 = vadd.f32 %v3011, %v3473
    %v3490 = vadd.f32 %v3102, %v3474
    %v3491 = vadd.f32 %v3193, %v3475
    %v3492 = vadd.f32 %v3284, %v3476
    %v3493 = vadd.f32 %v3375, %v3477
    %v3494 = vadd.f32 %v3466, %v3478
    %vm3495 = vcmp.gt.f32.partialorder %v3487, 0.0
    %vm3496 = vcmp.gt.f32.partialorder %v3488, 0.0
    %vm3497 = vcmp.gt.f32.partialorder %v3489, 0.0
    %vm3498 = vcmp.gt.f32.partialorder %v3490, 0.0
    %vm3499 = vcmp.gt.f32.partialorder %v3491, 0.0
    %vm3500 = vcmp.gt.f32.partialorder %v3492, 0.0
    %vm3501 = vcmp.gt.f32.partialorder %v3493, 0.0
    %vm3502 = vcmp.gt.f32.partialorder %v3494, 0.0
    %v3503 = vmul.f32 %v3487, 0.2
    %v3504 = vmul.f32 %v3488, 0.2
    %v3505 = vmul.f32 %v3489, 0.2
    %v3506 = vmul.f32 %v3490, 0.2
    %v3507 = vmul.f32 %v3491, 0.2
    %v3508 = vmul.f32 %v3492, 0.2
    %v3509 = vmul.f32 %v3493, 0.2
    %v3510 = vmul.f32 %v3494, 0.2
    %v3511 = vsel %vm3495, %v3487, %v3503
    %v3512 = vsel %vm3496, %v3488, %v3504
    %v3513 = vsel %vm3497, %v3489, %v3505
    %v3514 = vsel %vm3498, %v3490, %v3506
    %v3515 = vsel %vm3499, %v3491, %v3507
    %v3516 = vsel %vm3500, %v3492, %v3508
    %v3517 = vsel %vm3501, %v3493, %v3509
    %v3518 = vsel %vm3502, %v3494, %v3510
    %v3519 = vpack.c.bf16 %v3511, %v3511
    %v3520 = vpack.c.bf16 %v3512, %v3512
    %v3521 = vpack.c.bf16 %v3513, %v3513
    %v3522 = vpack.c.bf16 %v3514, %v3514
    %v3523 = vpack.c.bf16 %v3515, %v3515
    %v3524 = vpack.c.bf16 %v3516, %v3516
    %v3525 = vpack.c.bf16 %v3517, %v3517
    %v3526 = vpack.c.bf16 %v3518, %v3518
    %v3527 = vld [vmem:[#allocation8] sm:$0xff]
    %v3528 = vld [vmem:[#allocation8 + $0x8] sm:$0xff]
    %v3529 = vld [vmem:[#allocation8 + $0x10] sm:$0xff]
    %v3530 = vld [vmem:[#allocation8 + $0x18] sm:$0xff]
    %v3531 = vld [vmem:[#allocation8 + $0x20] sm:$0xff]
    %v3532 = vld [vmem:[#allocation8 + $0x28] sm:$0xff]
    %v3533 = vld [vmem:[#allocation8 + $0x30] sm:$0xff]
    %v3534 = vld [vmem:[#allocation8 + $0x38] sm:$0xff]
    %v3535 = vld [vmem:[#allocation8 + $0x40] sm:$0xff]
    %v3536 = vld [vmem:[#allocation8 + $0x48] sm:$0xff]
    %v3537 = vld [vmem:[#allocation8 + $0x50] sm:$0xff]
    %v3538 = vld [vmem:[#allocation8 + $0x58] sm:$0xff]
    %v3539 = vld [vmem:[#allocation8 + $0x60] sm:$0xff]
    %v3540 = vld [vmem:[#allocation8 + $0x68] sm:$0xff]
    %v3541 = vld [vmem:[#allocation8 + $0x70] sm:$0xff]
    %v3542 = vld [vmem:[#allocation8 + $0x78] sm:$0xff]
    %v3543 = vld [vmem:[#allocation8 + $0x80] sm:$0xff]
    %v3544 = vld [vmem:[#allocation8 + $0x88] sm:$0xff]
    %v3545 = vld [vmem:[#allocation8 + $0x90] sm:$0xff]
    %v3546 = vld [vmem:[#allocation8 + $0x98] sm:$0xff]
    %v3547 = vld [vmem:[#allocation8 + $0xa0] sm:$0xff]
    %v3548 = vld [vmem:[#allocation8 + $0xa8] sm:$0xff]
    %v3549 = vld [vmem:[#allocation8 + $0xb0] sm:$0xff]
    %v3550 = vld [vmem:[#allocation8 + $0xb8] sm:$0xff]
    %v3551 = vld [vmem:[#allocation8 + $0xc0] sm:$0xff]
    %v3552 = vld [vmem:[#allocation8 + $0xc8] sm:$0xff]
    %v3553 = vld [vmem:[#allocation8 + $0xd0] sm:$0xff]
    %v3554 = vld [vmem:[#allocation8 + $0xd8] sm:$0xff]
    %v3555 = vld [vmem:[#allocation8 + $0xe0] sm:$0xff]
    %v3556 = vld [vmem:[#allocation8 + $0xe8] sm:$0xff]
    %v3557 = vld [vmem:[#allocation8 + $0xf0] sm:$0xff]
    %v3558 = vld [vmem:[#allocation8 + $0xf8] sm:$0xff]
    %v3559 = vld [vmem:[#allocation8 + $0x100] sm:$0xff]
    %v3560 = vld [vmem:[#allocation8 + $0x108] sm:$0xff]
    %v3561 = vld [vmem:[#allocation8 + $0x110] sm:$0xff]
    %v3562 = vld [vmem:[#allocation8 + $0x118] sm:$0xff]
    %v3563 = vld [vmem:[#allocation8 + $0x120] sm:$0xff]
    %v3564 = vld [vmem:[#allocation8 + $0x128] sm:$0xff]
    %v3565 = vld [vmem:[#allocation8 + $0x130] sm:$0xff]
    %v3566 = vld [vmem:[#allocation8 + $0x138] sm:$0xff]
    %v3567 = vld [vmem:[#allocation8 + $0x140] sm:$0xff]
    %v3568 = vld [vmem:[#allocation8 + $0x148] sm:$0xff]
    %v3569 = vld [vmem:[#allocation8 + $0x150] sm:$0xff]
    %v3570 = vld [vmem:[#allocation8 + $0x158] sm:$0xff]
    %v3571 = vld [vmem:[#allocation8 + $0x160] sm:$0xff]
    %v3572 = vld [vmem:[#allocation8 + $0x168] sm:$0xff]
    %v3573 = vld [vmem:[#allocation8 + $0x170] sm:$0xff]
    %v3574 = vld [vmem:[#allocation8 + $0x178] sm:$0xff]
    %v3575 = vld [vmem:[#allocation8 + $0x180] sm:$0xff]
    %v3576 = vld [vmem:[#allocation8 + $0x188] sm:$0xff]
    %v3577 = vld [vmem:[#allocation8 + $0x190] sm:$0xff]
    %v3578 = vld [vmem:[#allocation8 + $0x198] sm:$0xff]
    %v3579 = vld [vmem:[#allocation8 + $0x1a0] sm:$0xff]
    %v3580 = vld [vmem:[#allocation8 + $0x1a8] sm:$0xff]
    %v3581 = vld [vmem:[#allocation8 + $0x1b0] sm:$0xff]
    %v3582 = vld [vmem:[#allocation8 + $0x1b8] sm:$0xff]
    %v3583 = vld [vmem:[#allocation8 + $0x1c0] sm:$0xff]
    %v3584 = vld [vmem:[#allocation8 + $0x1c8] sm:$0xff]
    %v3585 = vld [vmem:[#allocation8 + $0x1d0] sm:$0xff]
    %v3586 = vld [vmem:[#allocation8 + $0x1d8] sm:$0xff]
    %v3587 = vld [vmem:[#allocation8 + $0x1e0] sm:$0xff]
    %v3588 = vld [vmem:[#allocation8 + $0x1e8] sm:$0xff]
    %v3589 = vld [vmem:[#allocation8 + $0x1f0] sm:$0xff]
    %v3590 = vld [vmem:[#allocation8 + $0x1f8] sm:$0xff]
    %v3591 = vld [vmem:[#allocation8 + $0x200] sm:$0xff]
    %v3592 = vld [vmem:[#allocation8 + $0x208] sm:$0xff]
    %v3593 = vld [vmem:[#allocation8 + $0x210] sm:$0xff]
    %v3594 = vld [vmem:[#allocation8 + $0x218] sm:$0xff]
    %v3595 = vld [vmem:[#allocation8 + $0x220] sm:$0xff]
    %v3596 = vld [vmem:[#allocation8 + $0x228] sm:$0xff]
    %v3597 = vld [vmem:[#allocation8 + $0x230] sm:$0xff]
    %v3598 = vld [vmem:[#allocation8 + $0x238] sm:$0xff]
    %v3599 = vld [vmem:[#allocation8 + $0x240] sm:$0xff]
    %v3600 = vld [vmem:[#allocation8 + $0x248] sm:$0xff]
    %v3601 = vld [vmem:[#allocation8 + $0x250] sm:$0xff]
    %v3602 = vld [vmem:[#allocation8 + $0x258] sm:$0xff]
    %v3603 = vld [vmem:[#allocation8 + $0x260] sm:$0xff]
    %v3604 = vld [vmem:[#allocation8 + $0x268] sm:$0xff]
    %v3605 = vld [vmem:[#allocation8 + $0x270] sm:$0xff]
    %v3606 = vld [vmem:[#allocation8 + $0x278] sm:$0xff]
    %v3607 = vld [vmem:[#allocation8 + $0x280] sm:$0xff]
    %v3608 = vld [vmem:[#allocation8 + $0x288] sm:$0xff]
    %v3609 = vld [vmem:[#allocation8 + $0x290] sm:$0xff]
    %v3610 = vld [vmem:[#allocation8 + $0x298] sm:$0xff]
    %v3611 = vld [vmem:[#allocation8 + $0x2a0] sm:$0xff]
    %v3612 = vld [vmem:[#allocation8 + $0x2a8] sm:$0xff]
    %v3613 = vld [vmem:[#allocation8 + $0x2b0] sm:$0xff]
    %v3614 = vld [vmem:[#allocation8 + $0x2b8] sm:$0xff]
    %v3615 = vld [vmem:[#allocation8 + $0x2c0] sm:$0xff]
    %v3616 = vld [vmem:[#allocation8 + $0x2c8] sm:$0xff]
    %v3617 = vld [vmem:[#allocation8 + $0x2d0] sm:$0xff]
    %v3618 = vld [vmem:[#allocation8 + $0x2d8] sm:$0xff]
    %v3619 = vld [vmem:[#allocation8 + $0x2e0] sm:$0xff]
    %v3620 = vld [vmem:[#allocation8 + $0x2e8] sm:$0xff]
    %v3621 = vld [vmem:[#allocation8 + $0x2f0] sm:$0xff]
    %v3622 = vld [vmem:[#allocation8 + $0x2f8] sm:$0xff]
    %v3623 = vld [vmem:[#allocation8 + $0x300] sm:$0xff]
    %v3624 = vld [vmem:[#allocation8 + $0x308] sm:$0xff]
    %v3625 = vld [vmem:[#allocation8 + $0x310] sm:$0xff]
    %v3626 = vld [vmem:[#allocation8 + $0x318] sm:$0xff]
    %v3627 = vld [vmem:[#allocation8 + $0x320] sm:$0xff]
    %v3628 = vld [vmem:[#allocation8 + $0x328] sm:$0xff]
    %v3629 = vld [vmem:[#allocation8 + $0x330] sm:$0xff]
    %v3630 = vld [vmem:[#allocation8 + $0x338] sm:$0xff]
    %v3631 = vld [vmem:[#allocation8 + $0x340] sm:$0xff]
    %v3632 = vld [vmem:[#allocation8 + $0x348] sm:$0xff]
    %v3633 = vld [vmem:[#allocation8 + $0x350] sm:$0xff]
    %v3634 = vld [vmem:[#allocation8 + $0x358] sm:$0xff]
    %v3635 = vld [vmem:[#allocation8 + $0x360] sm:$0xff]
    %v3636 = vld [vmem:[#allocation8 + $0x368] sm:$0xff]
    %v3637 = vld [vmem:[#allocation8 + $0x370] sm:$0xff]
    %v3638 = vld [vmem:[#allocation8 + $0x378] sm:$0xff]
    %v3639 = vld [vmem:[#allocation8 + $0x380] sm:$0xff]
    %v3640 = vld [vmem:[#allocation8 + $0x388] sm:$0xff]
    %v3641 = vld [vmem:[#allocation8 + $0x390] sm:$0xff]
    %v3642 = vld [vmem:[#allocation8 + $0x398] sm:$0xff]
    %v3643 = vld [vmem:[#allocation8 + $0x3a0] sm:$0xff]
    %v3644 = vld [vmem:[#allocation8 + $0x3a8] sm:$0xff]
    %v3645 = vld [vmem:[#allocation8 + $0x3b0] sm:$0xff]
    %v3646 = vld [vmem:[#allocation8 + $0x3b8] sm:$0xff]
    %v3647 = vld [vmem:[#allocation8 + $0x3c0] sm:$0xff]
    %v3648 = vld [vmem:[#allocation8 + $0x3c8] sm:$0xff]
    %v3649 = vld [vmem:[#allocation8 + $0x3d0] sm:$0xff]
    %v3650 = vld [vmem:[#allocation8 + $0x3d8] sm:$0xff]
    %v3651 = vld [vmem:[#allocation8 + $0x3e0] sm:$0xff]
    %v3652 = vld [vmem:[#allocation8 + $0x3e8] sm:$0xff]
    %v3653 = vld [vmem:[#allocation8 + $0x3f0] sm:$0xff]
    %v3654 = vld [vmem:[#allocation8 + $0x3f8] sm:$0xff]
    %v3655 = vld [vmem:[#allocation8 + $0x400] sm:$0xff]
    %v3656 = vld [vmem:[#allocation8 + $0x408] sm:$0xff]
    %v3657 = vld [vmem:[#allocation8 + $0x410] sm:$0xff]
    %v3658 = vld [vmem:[#allocation8 + $0x418] sm:$0xff]
    %v3659 = vld [vmem:[#allocation8 + $0x420] sm:$0xff]
    %v3660 = vld [vmem:[#allocation8 + $0x428] sm:$0xff]
    %v3661 = vld [vmem:[#allocation8 + $0x430] sm:$0xff]
    %v3662 = vld [vmem:[#allocation8 + $0x438] sm:$0xff]
    %v3663 = vld [vmem:[#allocation8 + $0x440] sm:$0xff]
    %v3664 = vld [vmem:[#allocation8 + $0x448] sm:$0xff]
    %v3665 = vld [vmem:[#allocation8 + $0x450] sm:$0xff]
    %v3666 = vld [vmem:[#allocation8 + $0x458] sm:$0xff]
    %v3667 = vld [vmem:[#allocation8 + $0x460] sm:$0xff]
    %v3668 = vld [vmem:[#allocation8 + $0x468] sm:$0xff]
    %v3669 = vld [vmem:[#allocation8 + $0x470] sm:$0xff]
    %v3670 = vld [vmem:[#allocation8 + $0x478] sm:$0xff]
    %v3671 = vld [vmem:[#allocation8 + $0x480] sm:$0xff]
    %v3672 = vld [vmem:[#allocation8 + $0x488] sm:$0xff]
    %v3673 = vld [vmem:[#allocation8 + $0x490] sm:$0xff]
    %v3674 = vld [vmem:[#allocation8 + $0x498] sm:$0xff]
    %v3675 = vld [vmem:[#allocation8 + $0x4a0] sm:$0xff]
    %v3676 = vld [vmem:[#allocation8 + $0x4a8] sm:$0xff]
    %v3677 = vld [vmem:[#allocation8 + $0x4b0] sm:$0xff]
    %v3678 = vld [vmem:[#allocation8 + $0x4b8] sm:$0xff]
    %v3679 = vld [vmem:[#allocation8 + $0x4c0] sm:$0xff]
    %v3680 = vld [vmem:[#allocation8 + $0x4c8] sm:$0xff]
    %v3681 = vld [vmem:[#allocation8 + $0x4d0] sm:$0xff]
    %v3682 = vld [vmem:[#allocation8 + $0x4d8] sm:$0xff]
    %v3683 = vld [vmem:[#allocation8 + $0x4e0] sm:$0xff]
    %v3684 = vld [vmem:[#allocation8 + $0x4e8] sm:$0xff]
    %v3685 = vld [vmem:[#allocation8 + $0x4f0] sm:$0xff]
    %v3686 = vld [vmem:[#allocation8 + $0x4f8] sm:$0xff]
    %v3687 = vld [vmem:[#allocation8 + $0x500] sm:$0xff]
    %v3688 = vld [vmem:[#allocation8 + $0x508] sm:$0xff]
    %v3689 = vld [vmem:[#allocation8 + $0x510] sm:$0xff]
    %v3690 = vld [vmem:[#allocation8 + $0x518] sm:$0xff]
    %v3691 = vld [vmem:[#allocation8 + $0x520] sm:$0xff]
    %v3692 = vld [vmem:[#allocation8 + $0x528] sm:$0xff]
    %v3693 = vld [vmem:[#allocation8 + $0x530] sm:$0xff]
    %v3694 = vld [vmem:[#allocation8 + $0x538] sm:$0xff]
    %v3695 = vld [vmem:[#allocation8 + $0x540] sm:$0xff]
    %v3696 = vld [vmem:[#allocation8 + $0x548] sm:$0xff]
    %v3697 = vld [vmem:[#allocation8 + $0x550] sm:$0xff]
    %v3698 = vld [vmem:[#allocation8 + $0x558] sm:$0xff]
    %v3699 = vld [vmem:[#allocation8 + $0x560] sm:$0xff]
    %v3700 = vld [vmem:[#allocation8 + $0x568] sm:$0xff]
    %v3701 = vld [vmem:[#allocation8 + $0x570] sm:$0xff]
    %v3702 = vld [vmem:[#allocation8 + $0x578] sm:$0xff]
    %v3703 = vld [vmem:[#allocation8 + $0x580] sm:$0xff]
    %v3704 = vld [vmem:[#allocation8 + $0x588] sm:$0xff]
    %v3705 = vld [vmem:[#allocation8 + $0x590] sm:$0xff]
    %v3706 = vld [vmem:[#allocation8 + $0x598] sm:$0xff]
    %v3707 = vld [vmem:[#allocation8 + $0x5a0] sm:$0xff]
    %v3708 = vld [vmem:[#allocation8 + $0x5a8] sm:$0xff]
    %v3709 = vld [vmem:[#allocation8 + $0x5b0] sm:$0xff]
    %v3710 = vld [vmem:[#allocation8 + $0x5b8] sm:$0xff]
    %v3711 = vld [vmem:[#allocation8 + $0x5c0] sm:$0xff]
    %v3712 = vld [vmem:[#allocation8 + $0x5c8] sm:$0xff]
    %v3713 = vld [vmem:[#allocation8 + $0x5d0] sm:$0xff]
    %v3714 = vld [vmem:[#allocation8 + $0x5d8] sm:$0xff]
    %v3715 = vld [vmem:[#allocation8 + $0x5e0] sm:$0xff]
    %v3716 = vld [vmem:[#allocation8 + $0x5e8] sm:$0xff]
    %v3717 = vld [vmem:[#allocation8 + $0x5f0] sm:$0xff]
    %v3718 = vld [vmem:[#allocation8 + $0x5f8] sm:$0xff]
    %v3719 = vld [vmem:[#allocation8 + $0x600] sm:$0xff]
    %v3720 = vld [vmem:[#allocation8 + $0x608] sm:$0xff]
    %v3721 = vld [vmem:[#allocation8 + $0x610] sm:$0xff]
    %v3722 = vld [vmem:[#allocation8 + $0x618] sm:$0xff]
    %v3723 = vld [vmem:[#allocation8 + $0x620] sm:$0xff]
    %v3724 = vld [vmem:[#allocation8 + $0x628] sm:$0xff]
    %v3725 = vld [vmem:[#allocation8 + $0x630] sm:$0xff]
    %v3726 = vld [vmem:[#allocation8 + $0x638] sm:$0xff]
    %v3727 = vld [vmem:[#allocation8 + $0x640] sm:$0xff]
    %v3728 = vld [vmem:[#allocation8 + $0x648] sm:$0xff]
    %v3729 = vld [vmem:[#allocation8 + $0x650] sm:$0xff]
    %v3730 = vld [vmem:[#allocation8 + $0x658] sm:$0xff]
    %v3731 = vld [vmem:[#allocation8 + $0x660] sm:$0xff]
    %v3732 = vld [vmem:[#allocation8 + $0x668] sm:$0xff]
    %v3733 = vld [vmem:[#allocation8 + $0x670] sm:$0xff]
    %v3734 = vld [vmem:[#allocation8 + $0x678] sm:$0xff]
    %v3735 = vld [vmem:[#allocation8 + $0x680] sm:$0xff]
    %v3736 = vld [vmem:[#allocation8 + $0x688] sm:$0xff]
    %v3737 = vld [vmem:[#allocation8 + $0x690] sm:$0xff]
    %v3738 = vld [vmem:[#allocation8 + $0x698] sm:$0xff]
    %v3739 = vld [vmem:[#allocation8 + $0x6a0] sm:$0xff]
    %v3740 = vld [vmem:[#allocation8 + $0x6a8] sm:$0xff]
    %v3741 = vld [vmem:[#allocation8 + $0x6b0] sm:$0xff]
    %v3742 = vld [vmem:[#allocation8 + $0x6b8] sm:$0xff]
    %v3743 = vld [vmem:[#allocation8 + $0x6c0] sm:$0xff]
    %v3744 = vld [vmem:[#allocation8 + $0x6c8] sm:$0xff]
    %v3745 = vld [vmem:[#allocation8 + $0x6d0] sm:$0xff]
    %v3746 = vld [vmem:[#allocation8 + $0x6d8] sm:$0xff]
    %v3747 = vld [vmem:[#allocation8 + $0x6e0] sm:$0xff]
    %v3748 = vld [vmem:[#allocation8 + $0x6e8] sm:$0xff]
    %v3749 = vld [vmem:[#allocation8 + $0x6f0] sm:$0xff]
    %v3750 = vld [vmem:[#allocation8 + $0x6f8] sm:$0xff]
    %v3751 = vld [vmem:[#allocation8 + $0x700] sm:$0xff]
    %v3752 = vld [vmem:[#allocation8 + $0x708] sm:$0xff]
    %v3753 = vld [vmem:[#allocation8 + $0x710] sm:$0xff]
    %v3754 = vld [vmem:[#allocation8 + $0x718] sm:$0xff]
    %v3755 = vld [vmem:[#allocation8 + $0x720] sm:$0xff]
    %v3756 = vld [vmem:[#allocation8 + $0x728] sm:$0xff]
    %v3757 = vld [vmem:[#allocation8 + $0x730] sm:$0xff]
    %v3758 = vld [vmem:[#allocation8 + $0x738] sm:$0xff]
    %v3759 = vld [vmem:[#allocation8 + $0x740] sm:$0xff]
    %v3760 = vld [vmem:[#allocation8 + $0x748] sm:$0xff]
    %v3761 = vld [vmem:[#allocation8 + $0x750] sm:$0xff]
    %v3762 = vld [vmem:[#allocation8 + $0x758] sm:$0xff]
    %v3763 = vld [vmem:[#allocation8 + $0x760] sm:$0xff]
    %v3764 = vld [vmem:[#allocation8 + $0x768] sm:$0xff]
    %v3765 = vld [vmem:[#allocation8 + $0x770] sm:$0xff]
    %v3766 = vld [vmem:[#allocation8 + $0x778] sm:$0xff]
    %v3767 = vld [vmem:[#allocation8 + $0x780] sm:$0xff]
    %v3768 = vld [vmem:[#allocation8 + $0x788] sm:$0xff]
    %v3769 = vld [vmem:[#allocation8 + $0x790] sm:$0xff]
    %v3770 = vld [vmem:[#allocation8 + $0x798] sm:$0xff]
    %v3771 = vld [vmem:[#allocation8 + $0x7a0] sm:$0xff]
    %v3772 = vld [vmem:[#allocation8 + $0x7a8] sm:$0xff]
    %v3773 = vld [vmem:[#allocation8 + $0x7b0] sm:$0xff]
    %v3774 = vld [vmem:[#allocation8 + $0x7b8] sm:$0xff]
    %v3775 = vld [vmem:[#allocation8 + $0x7c0] sm:$0xff]
    %v3776 = vld [vmem:[#allocation8 + $0x7c8] sm:$0xff]
    %v3777 = vld [vmem:[#allocation8 + $0x7d0] sm:$0xff]
    %v3778 = vld [vmem:[#allocation8 + $0x7d8] sm:$0xff]
    %v3779 = vld [vmem:[#allocation8 + $0x7e0] sm:$0xff]
    %v3780 = vld [vmem:[#allocation8 + $0x7e8] sm:$0xff]
    %v3781 = vld [vmem:[#allocation8 + $0x7f0] sm:$0xff]
    %v3782 = vld [vmem:[#allocation8 + $0x7f8] sm:$0xff]
    %v3783 = vld [vmem:[#allocation10] sm:$0xf]
    %v3785 = vperm.slane %v3783, 0
    %v3786 = vperm.slane %v3783, 1
    %v3787 = vperm.slane %v3783, 2
    %v3788 = vperm.slane %v3783, 3
    %v4049 = vunpack.c.l.b16 %v3527
    %v4050 = vunpack.c.h.b16 %v3527
    %v4051 = vunpack.c.l.b16 %v3528
    %v4052 = vunpack.c.h.b16 %v3528
    %v4053 = vunpack.c.l.b16 %v3529
    %v4054 = vunpack.c.h.b16 %v3529
    %v4055 = vunpack.c.l.b16 %v3530
    %v4056 = vunpack.c.h.b16 %v3530
    %v4057 = vunpack.c.l.b16 %v3531
    %v4058 = vunpack.c.h.b16 %v3531
    %v4059 = vunpack.c.l.b16 %v3532
    %v4060 = vunpack.c.h.b16 %v3532
    %v4061 = vunpack.c.l.b16 %v3533
    %v4062 = vunpack.c.h.b16 %v3533
    %v4063 = vunpack.c.l.b16 %v3534
    %v4064 = vunpack.c.h.b16 %v3534
    %v4065 = vunpack.c.l.b16 %v3535
    %v4066 = vunpack.c.h.b16 %v3535
    %v4067 = vunpack.c.l.b16 %v3536
    %v4068 = vunpack.c.h.b16 %v3536
    %v4069 = vunpack.c.l.b16 %v3537
    %v4070 = vunpack.c.h.b16 %v3537
    %v4071 = vunpack.c.l.b16 %v3538
    %v4072 = vunpack.c.h.b16 %v3538
    %v4073 = vunpack.c.l.b16 %v3539
    %v4074 = vunpack.c.h.b16 %v3539
    %v4075 = vunpack.c.l.b16 %v3540
    %v4076 = vunpack.c.h.b16 %v3540
    %v4077 = vunpack.c.l.b16 %v3541
    %v4078 = vunpack.c.h.b16 %v3541
    %v4079 = vunpack.c.l.b16 %v3542
    %v4080 = vunpack.c.h.b16 %v3542
    %v4081 = vunpack.c.l.b16 %v3543
    %v4082 = vunpack.c.h.b16 %v3543
    %v4083 = vunpack.c.l.b16 %v3544
    %v4084 = vunpack.c.h.b16 %v3544
    %v4085 = vunpack.c.l.b16 %v3545
    %v4086 = vunpack.c.h.b16 %v3545
    %v4087 = vunpack.c.l.b16 %v3546
    %v4088 = vunpack.c.h.b16 %v3546
    %v4089 = vunpack.c.l.b16 %v3547
    %v4090 = vunpack.c.h.b16 %v3547
    %v4091 = vunpack.c.l.b16 %v3548
    %v4092 = vunpack.c.h.b16 %v3548
    %v4093 = vunpack.c.l.b16 %v3549
    %v4094 = vunpack.c.h.b16 %v3549
    %v4095 = vunpack.c.l.b16 %v3550
    %v4096 = vunpack.c.h.b16 %v3550
    %v4097 = vunpack.c.l.b16 %v3551
    %v4098 = vunpack.c.h.b16 %v3551
    %v4099 = vunpack.c.l.b16 %v3552
    %v4100 = vunpack.c.h.b16 %v3552
    %v4101 = vunpack.c.l.b16 %v3553
    %v4102 = vunpack.c.h.b16 %v3553
    %v4103 = vunpack.c.l.b16 %v3554
    %v4104 = vunpack.c.h.b16 %v3554
    %v4105 = vunpack.c.l.b16 %v3555
    %v4106 = vunpack.c.h.b16 %v3555
    %v4107 = vunpack.c.l.b16 %v3556
    %v4108 = vunpack.c.h.b16 %v3556
    %v4109 = vunpack.c.l.b16 %v3557
    %v4110 = vunpack.c.h.b16 %v3557
    %v4111 = vunpack.c.l.b16 %v3558
    %v4112 = vunpack.c.h.b16 %v3558
    %v4113 = vunpack.c.l.b16 %v3559
    %v4114 = vunpack.c.h.b16 %v3559
    %v4115 = vunpack.c.l.b16 %v3560
    %v4116 = vunpack.c.h.b16 %v3560
    %v4117 = vunpack.c.l.b16 %v3561
    %v4118 = vunpack.c.h.b16 %v3561
    %v4119 = vunpack.c.l.b16 %v3562
    %v4120 = vunpack.c.h.b16 %v3562
    %v4121 = vunpack.c.l.b16 %v3563
    %v4122 = vunpack.c.h.b16 %v3563
    %v4123 = vunpack.c.l.b16 %v3564
    %v4124 = vunpack.c.h.b16 %v3564
    %v4125 = vunpack.c.l.b16 %v3565
    %v4126 = vunpack.c.h.b16 %v3565
    %v4127 = vunpack.c.l.b16 %v3566
    %v4128 = vunpack.c.h.b16 %v3566
    %v4129 = vunpack.c.l.b16 %v3567
    %v4130 = vunpack.c.h.b16 %v3567
    %v4131 = vunpack.c.l.b16 %v3568
    %v4132 = vunpack.c.h.b16 %v3568
    %v4133 = vunpack.c.l.b16 %v3569
    %v4134 = vunpack.c.h.b16 %v3569
    %v4135 = vunpack.c.l.b16 %v3570
    %v4136 = vunpack.c.h.b16 %v3570
    %v4137 = vunpack.c.l.b16 %v3571
    %v4138 = vunpack.c.h.b16 %v3571
    %v4139 = vunpack.c.l.b16 %v3572
    %v4140 = vunpack.c.h.b16 %v3572
    %v4141 = vunpack.c.l.b16 %v3573
    %v4142 = vunpack.c.h.b16 %v3573
    %v4143 = vunpack.c.l.b16 %v3574
    %v4144 = vunpack.c.h.b16 %v3574
    %v4145 = vunpack.c.l.b16 %v3575
    %v4146 = vunpack.c.h.b16 %v3575
    %v4147 = vunpack.c.l.b16 %v3576
    %v4148 = vunpack.c.h.b16 %v3576
    %v4149 = vunpack.c.l.b16 %v3577
    %v4150 = vunpack.c.h.b16 %v3577
    %v4151 = vunpack.c.l.b16 %v3578
    %v4152 = vunpack.c.h.b16 %v3578
    %v4153 = vunpack.c.l.b16 %v3579
    %v4154 = vunpack.c.h.b16 %v3579
    %v4155 = vunpack.c.l.b16 %v3580
    %v4156 = vunpack.c.h.b16 %v3580
    %v4157 = vunpack.c.l.b16 %v3581
    %v4158 = vunpack.c.h.b16 %v3581
    %v4159 = vunpack.c.l.b16 %v3582
    %v4160 = vunpack.c.h.b16 %v3582
    %v4161 = vunpack.c.l.b16 %v3583
    %v4162 = vunpack.c.h.b16 %v3583
    %v4163 = vunpack.c.l.b16 %v3584
    %v4164 = vunpack.c.h.b16 %v3584
    %v4165 = vunpack.c.l.b16 %v3585
    %v4166 = vunpack.c.h.b16 %v3585
    %v4167 = vunpack.c.l.b16 %v3586
    %v4168 = vunpack.c.h.b16 %v3586
    %v4169 = vunpack.c.l.b16 %v3587
    %v4170 = vunpack.c.h.b16 %v3587
    %v4171 = vunpack.c.l.b16 %v3588
    %v4172 = vunpack.c.h.b16 %v3588
    %v4173 = vunpack.c.l.b16 %v3589
    %v4174 = vunpack.c.h.b16 %v3589
    %v4175 = vunpack.c.l.b16 %v3590
    %v4176 = vunpack.c.h.b16 %v3590
    %v4177 = vunpack.c.l.b16 %v3591
    %v4178 = vunpack.c.h.b16 %v3591
    %v4179 = vunpack.c.l.b16 %v3592
    %v4180 = vunpack.c.h.b16 %v3592
    %v4181 = vunpack.c.l.b16 %v3593
    %v4182 = vunpack.c.h.b16 %v3593
    %v4183 = vunpack.c.l.b16 %v3594
    %v4184 = vunpack.c.h.b16 %v3594
    %v4185 = vunpack.c.l.b16 %v3595
    %v4186 = vunpack.c.h.b16 %v3595
    %v4187 = vunpack.c.l.b16 %v3596
    %v4188 = vunpack.c.h.b16 %v3596
    %v4189 = vunpack.c.l.b16 %v3597
    %v4190 = vunpack.c.h.b16 %v3597
    %v4191 = vunpack.c.l.b16 %v3598
    %v4192 = vunpack.c.h.b16 %v3598
    %v4193 = vunpack.c.l.b16 %v3599
    %v4194 = vunpack.c.h.b16 %v3599
    %v4195 = vunpack.c.l.b16 %v3600
    %v4196 = vunpack.c.h.b16 %v3600
    %v4197 = vunpack.c.l.b16 %v3601
    %v4198 = vunpack.c.h.b16 %v3601
    %v4199 = vunpack.c.l.b16 %v3602
    %v4200 = vunpack.c.h.b16 %v3602
    %v4201 = vunpack.c.l.b16 %v3603
    %v4202 = vunpack.c.h.b16 %v3603
    %v4203 = vunpack.c.l.b16 %v3604
    %v4204 = vunpack.c.h.b16 %v3604
    %v4205 = vunpack.c.l.b16 %v3605
    %v4206 = vunpack.c.h.b16 %v3605
    %v4207 = vunpack.c.l.b16 %v3606
    %v4208 = vunpack.c.h.b16 %v3606
    %v4209 = vunpack.c.l.b16 %v3607
    %v4210 = vunpack.c.h.b16 %v3607
    %v4211 = vunpack.c.l.b16 %v3608
    %v4212 = vunpack.c.h.b16 %v3608
    %v4213 = vunpack.c.l.b16 %v3609
    %v4214 = vunpack.c.h.b16 %v3609
    %v4215 = vunpack.c.l.b16 %v3610
    %v4216 = vunpack.c.h.b16 %v3610
    %v4217 = vunpack.c.l.b16 %v3611
    %v4218 = vunpack.c.h.b16 %v3611
    %v4219 = vunpack.c.l.b16 %v3612
    %v4220 = vunpack.c.h.b16 %v3612
    %v4221 = vunpack.c.l.b16 %v3613
    %v4222 = vunpack.c.h.b16 %v3613
    %v4223 = vunpack.c.l.b16 %v3614
    %v4224 = vunpack.c.h.b16 %v3614
    %v4225 = vunpack.c.l.b16 %v3615
    %v4226 = vunpack.c.h.b16 %v3615
    %v4227 = vunpack.c.l.b16 %v3616
    %v4228 = vunpack.c.h.b16 %v3616
    %v4229 = vunpack.c.l.b16 %v3617
    %v4230 = vunpack.c.h.b16 %v3617
    %v4231 = vunpack.c.l.b16 %v3618
    %v4232 = vunpack.c.h.b16 %v3618
    %v4233 = vunpack.c.l.b16 %v3619
    %v4234 = vunpack.c.h.b16 %v3619
    %v4235 = vunpack.c.l.b16 %v3620
    %v4236 = vunpack.c.h.b16 %v3620
    %v4237 = vunpack.c.l.b16 %v3621
    %v4238 = vunpack.c.h.b16 %v3621
    %v4239 = vunpack.c.l.b16 %v3622
    %v4240 = vunpack.c.h.b16 %v3622
    %v4241 = vunpack.c.l.b16 %v3623
    %v4242 = vunpack.c.h.b16 %v3623
    %v4243 = vunpack.c.l.b16 %v3624
    %v4244 = vunpack.c.h.b16 %v3624
    %v4245 = vunpack.c.l.b16 %v3625
    %v4246 = vunpack.c.h.b16 %v3625
    %v4247 = vunpack.c.l.b16 %v3626
    %v4248 = vunpack.c.h.b16 %v3626
    %v4249 = vunpack.c.l.b16 %v3627
    %v4250 = vunpack.c.h.b16 %v3627
    %v4251 = vunpack.c.l.b16 %v3628
    %v4252 = vunpack.c.h.b16 %v3628
    %v4253 = vunpack.c.l.b16 %v3629
    %v4254 = vunpack.c.h.b16 %v3629
    %v4255 = vunpack.c.l.b16 %v3630
    %v4256 = vunpack.c.h.b16 %v3630
    %v4257 = vunpack.c.l.b16 %v3631
    %v4258 = vunpack.c.h.b16 %v3631
    %v4259 = vunpack.c.l.b16 %v3632
    %v4260 = vunpack.c.h.b16 %v3632
    %v4261 = vunpack.c.l.b16 %v3633
    %v4262 = vunpack.c.h.b16 %v3633
    %v4263 = vunpack.c.l.b16 %v3634
    %v4264 = vunpack.c.h.b16 %v3634
    %v4265 = vunpack.c.l.b16 %v3635
    %v4266 = vunpack.c.h.b16 %v3635
    %v4267 = vunpack.c.l.b16 %v3636
    %v4268 = vunpack.c.h.b16 %v3636
    %v4269 = vunpack.c.l.b16 %v3637
    %v4270 = vunpack.c.h.b16 %v3637
    %v4271 = vunpack.c.l.b16 %v3638
    %v4272 = vunpack.c.h.b16 %v3638
    %v4273 = vunpack.c.l.b16 %v3639
    %v4274 = vunpack.c.h.b16 %v3639
    %v4275 = vunpack.c.l.b16 %v3640
    %v4276 = vunpack.c.h.b16 %v3640
    %v4277 = vunpack.c.l.b16 %v3641
    %v4278 = vunpack.c.h.b16 %v3641
    %v4279 = vunpack.c.l.b16 %v3642
    %v4280 = vunpack.c.h.b16 %v3642
    %v4281 = vunpack.c.l.b16 %v3643
    %v4282 = vunpack.c.h.b16 %v3643
    %v4283 = vunpack.c.l.b16 %v3644
    %v4284 = vunpack.c.h.b16 %v3644
    %v4285 = vunpack.c.l.b16 %v3645
    %v4286 = vunpack.c.h.b16 %v3645
    %v4287 = vunpack.c.l.b16 %v3646
    %v4288 = vunpack.c.h.b16 %v3646
    %v4289 = vunpack.c.l.b16 %v3647
    %v4290 = vunpack.c.h.b16 %v3647
    %v4291 = vunpack.c.l.b16 %v3648
    %v4292 = vunpack.c.h.b16 %v3648
    %v4293 = vunpack.c.l.b16 %v3649
    %v4294 = vunpack.c.h.b16 %v3649
    %v4295 = vunpack.c.l.b16 %v3650
    %v4296 = vunpack.c.h.b16 %v3650
    %v4297 = vunpack.c.l.b16 %v3651
    %v4298 = vunpack.c.h.b16 %v3651
    %v4299 = vunpack.c.l.b16 %v3652
    %v4300 = vunpack.c.h.b16 %v3652
    %v4301 = vunpack.c.l.b16 %v3653
    %v4302 = vunpack.c.h.b16 %v3653
    %v4303 = vunpack.c.l.b16 %v3654
    %v4304 = vunpack.c.h.b16 %v3654
    %v4305 = vunpack.c.l.b16 %v3655
    %v4306 = vunpack.c.h.b16 %v3655
    %v4307 = vunpack.c.l.b16 %v3656
    %v4308 = vunpack.c.h.b16 %v3656
    %v4309 = vunpack.c.l.b16 %v3657
    %v4310 = vunpack.c.h.b16 %v3657
    %v4311 = vunpack.c.l.b16 %v3658
    %v4312 = vunpack.c.h.b16 %v3658
    %v4313 = vunpack.c.l.b16 %v3659
    %v4314 = vunpack.c.h.b16 %v3659
    %v4315 = vunpack.c.l.b16 %v3660
    %v4316 = vunpack.c.h.b16 %v3660
    %v4317 = vunpack.c.l.b16 %v3661
    %v4318 = vunpack.c.h.b16 %v3661
    %v4319 = vunpack.c.l.b16 %v3662
    %v4320 = vunpack.c.h.b16 %v3662
    %v4321 = vunpack.c.l.b16 %v3663
    %v4322 = vunpack.c.h.b16 %v3663
    %v4323 = vunpack.c.l.b16 %v3664
    %v4324 = vunpack.c.h.b16 %v3664
    %v4325 = vunpack.c.l.b16 %v3665
    %v4326 = vunpack.c.h.b16 %v3665
    %v4327 = vunpack.c.l.b16 %v3666
    %v4328 = vunpack.c.h.b16 %v3666
    %v4329 = vunpack.c.l.b16 %v3667
    %v4330 = vunpack.c.h.b16 %v3667
    %v4331 = vunpack.c.l.b16 %v3668
    %v4332 = vunpack.c.h.b16 %v3668
    %v4333 = vunpack.c.l.b16 %v3669
    %v4334 = vunpack.c.h.b16 %v3669
    %v4335 = vunpack.c.l.b16 %v3670
    %v4336 = vunpack.c.h.b16 %v3670
    %v4337 = vunpack.c.l.b16 %v3671
    %v4338 = vunpack.c.h.b16 %v3671
    %v4339 = vunpack.c.l.b16 %v3672
    %v4340 = vunpack.c.h.b16 %v3672
    %v4341 = vunpack.c.l.b16 %v3673
    %v4342 = vunpack.c.h.b16 %v3673
    %v4343 = vunpack.c.l.b16 %v3674
    %v4344 = vunpack.c.h.b16 %v3674
    %v4345 = vunpack.c.l.b16 %v3675
    %v4346 = vunpack.c.h.b16 %v3675
    %v4347 = vunpack.c.l.b16 %v3676
    %v4348 = vunpack.c.h.b16 %v3676
    %v4349 = vunpack.c.l.b16 %v3677
    %v4350 = vunpack.c.h.b16 %v3677
    %v4351 = vunpack.c.l.b16 %v3678
    %v4352 = vunpack.c.h.b16 %v3678
    %v4353 = vunpack.c.l.b16 %v3679
    %v4354 = vunpack.c.h.b16 %v3679
    %v4355 = vunpack.c.l.b16 %v3680
    %v4356 = vunpack.c.h.b16 %v3680
    %v4357 = vunpack.c.l.b16 %v3681
    %v4358 = vunpack.c.h.b16 %v3681
    %v4359 = vunpack.c.l.b16 %v3682
    %v4360 = vunpack.c.h.b16 %v3682
    %v4361 = vunpack.c.l.b16 %v3683
    %v4362 = vunpack.c.h.b16 %v3683
    %v4363 = vunpack.c.l.b16 %v3684
    %v4364 = vunpack.c.h.b16 %v3684
    %v4365 = vunpack.c.l.b16 %v3685
    %v4366 = vunpack.c.h.b16 %v3685
    %v4367 = vunpack.c.l.b16 %v3686
    %v4368 = vunpack.c.h.b16 %v3686
    %v4369 = vunpack.c.l.b16 %v3687
    %v4370 = vunpack.c.h.b16 %v3687
    %v4371 = vunpack.c.l.b16 %v3688
    %v4372 = vunpack.c.h.b16 %v3688
    %v4373 = vunpack.c.l.b16 %v3689
    %v4374 = vunpack.c.h.b16 %v3689
    %v4375 = vunpack.c.l.b16 %v3690
    %v4376 = vunpack.c.h.b16 %v3690
    %v4377 = vunpack.c.l.b16 %v3691
    %v4378 = vunpack.c.h.b16 %v3691
    %v4379 = vunpack.c.l.b16 %v3692
    %v4380 = vunpack.c.h.b16 %v3692
    %v4381 = vunpack.c.l.b16 %v3693
    %v4382 = vunpack.c.h.b16 %v3693
    %v4383 = vunpack.c.l.b16 %v3694
    %v4384 = vunpack.c.h.b16 %v3694
    %v4385 = vunpack.c.l.b16 %v3695
    %v4386 = vunpack.c.h.b16 %v3695
    %v4387 = vunpack.c.l.b16 %v3696
    %v4388 = vunpack.c.h.b16 %v3696
    %v4389 = vunpack.c.l.b16 %v3697
    %v4390 = vunpack.c.h.b16 %v3697
    %v4391 = vunpack.c.l.b16 %v3698
    %v4392 = vunpack.c.h.b16 %v3698
    %v4393 = vunpack.c.l.b16 %v3699
    %v4394 = vunpack.c.h.b16 %v3699
    %v4395 = vunpack.c.l.b16 %v3700
    %v4396 = vunpack.c.h.b16 %v3700
    %v4397 = vunpack.c.l.b16 %v3701
    %v4398 = vunpack.c.h.b16 %v3701
    %v4399 = vunpack.c.l.b16 %v3702
    %v4400 = vunpack.c.h.b16 %v3702
    %v4401 = vunpack.c.l.b16 %v3703
    %v4402 = vunpack.c.h.b16 %v3703
    %v4403 = vunpack.c.l.b16 %v3704
    %v4404 = vunpack.c.h.b16 %v3704
    %v4405 = vunpack.c.l.b16 %v3705
    %v4406 = vunpack.c.h.b16 %v3705
    %v4407 = vunpack.c.l.b16 %v3706
    %v4408 = vunpack.c.h.b16 %v3706
    %v4409 = vunpack.c.l.b16 %v3707
    %v4410 = vunpack.c.h.b16 %v3707
    %v4411 = vunpack.c.l.b16 %v3708
    %v4412 = vunpack.c.h.b16 %v3708
    %v4413 = vunpack.c.l.b16 %v3709
    %v4414 = vunpack.c.h.b16 %v3709
    %v4415 = vunpack.c.l.b16 %v3710
    %v4416 = vunpack.c.h.b16 %v3710
    %v4417 = vunpack.c.l.b16 %v3711
    %v4418 = vunpack.c.h.b16 %v3711
    %v4419 = vunpack.c.l.b16 %v3712
    %v4420 = vunpack.c.h.b16 %v3712
    %v4421 = vunpack.c.l.b16 %v3713
    %v4422 = vunpack.c.h.b16 %v3713
    %v4423 = vunpack.c.l.b16 %v3714
    %v4424 = vunpack.c.h.b16 %v3714
    %v4425 = vunpack.c.l.b16 %v3715
    %v4426 = vunpack.c.h.b16 %v3715
    %v4427 = vunpack.c.l.b16 %v3716
    %v4428 = vunpack.c.h.b16 %v3716
    %v4429 = vunpack.c.l.b16 %v3717
    %v4430 = vunpack.c.h.b16 %v3717
    %v4431 = vunpack.c.l.b16 %v3718
    %v4432 = vunpack.c.h.b16 %v3718
    %v4433 = vunpack.c.l.b16 %v3719
    %v4434 = vunpack.c.h.b16 %v3719
    %v4435 = vunpack.c.l.b16 %v3720
    %v4436 = vunpack.c.h.b16 %v3720
    %v4437 = vunpack.c.l.b16 %v3721
    %v4438 = vunpack.c.h.b16 %v3721
    %v4439 = vunpack.c.l.b16 %v3722
    %v4440 = vunpack.c.h.b16 %v3722
    %v4441 = vunpack.c.l.b16 %v3723
    %v4442 = vunpack.c.h.b16 %v3723
    %v4443 = vunpack.c.l.b16 %v3724
    %v4444 = vunpack.c.h.b16 %v3724
    %v4445 = vunpack.c.l.b16 %v3725
    %v4446 = vunpack.c.h.b16 %v3725
    %v4447 = vunpack.c.l.b16 %v3726
    %v4448 = vunpack.c.h.b16 %v3726
    %v4449 = vunpack.c.l.b16 %v3727
    %v4450 = vunpack.c.h.b16 %v3727
    %v4451 = vunpack.c.l.b16 %v3728
    %v4452 = vunpack.c.h.b16 %v3728
    %v4453 = vunpack.c.l.b16 %v3729
    %v4454 = vunpack.c.h.b16 %v3729
    %v4455 = vunpack.c.l.b16 %v3730
    %v4456 = vunpack.c.h.b16 %v3730
    %v4457 = vunpack.c.l.b16 %v3731
    %v4458 = vunpack.c.h.b16 %v3731
    %v4459 = vunpack.c.l.b16 %v3732
    %v4460 = vunpack.c.h.b16 %v3732
    %v4461 = vunpack.c.l.b16 %v3733
    %v4462 = vunpack.c.h.b16 %v3733
    %v4463 = vunpack.c.l.b16 %v3734
    %v4464 = vunpack.c.h.b16 %v3734
    %v4465 = vunpack.c.l.b16 %v3735
    %v4466 = vunpack.c.h.b16 %v3735
    %v4467 = vunpack.c.l.b16 %v3736
    %v4468 = vunpack.c.h.b16 %v3736
    %v4469 = vunpack.c.l.b16 %v3737
    %v4470 = vunpack.c.h.b16 %v3737
    %v4471 = vunpack.c.l.b16 %v3738
    %v4472 = vunpack.c.h.b16 %v3738
    %v4473 = vunpack.c.l.b16 %v3739
    %v4474 = vunpack.c.h.b16 %v3739
    %v4475 = vunpack.c.l.b16 %v3740
    %v4476 = vunpack.c.h.b16 %v3740
    %v4477 = vunpack.c.l.b16 %v3741
    %v4478 = vunpack.c.h.b16 %v3741
    %v4479 = vunpack.c.l.b16 %v3742
    %v4480 = vunpack.c.h.b16 %v3742
    %v4481 = vunpack.c.l.b16 %v3743
    %v4482 = vunpack.c.h.b16 %v3743
    %v4483 = vunpack.c.l.b16 %v3744
    %v4484 = vunpack.c.h.b16 %v3744
    %v4485 = vunpack.c.l.b16 %v3745
    %v4486 = vunpack.c.h.b16 %v3745
    %v4487 = vunpack.c.l.b16 %v3746
    %v4488 = vunpack.c.h.b16 %v3746
    %v4489 = vunpack.c.l.b16 %v3747
    %v4490 = vunpack.c.h.b16 %v3747
    %v4491 = vunpack.c.l.b16 %v3748
    %v4492 = vunpack.c.h.b16 %v3748
    %v4493 = vunpack.c.l.b16 %v3749
    %v4494 = vunpack.c.h.b16 %v3749
    %v4495 = vunpack.c.l.b16 %v3750
    %v4496 = vunpack.c.h.b16 %v3750
    %v4497 = vunpack.c.l.b16 %v3751
    %v4498 = vunpack.c.h.b16 %v3751
    %v4499 = vunpack.c.l.b16 %v3752
    %v4500 = vunpack.c.h.b16 %v3752
    %v4501 = vunpack.c.l.b16 %v3753
    %v4502 = vunpack.c.h.b16 %v3753
    %v4503 = vunpack.c.l.b16 %v3754
    %v4504 = vunpack.c.h.b16 %v3754
    %v4505 = vunpack.c.l.b16 %v3755
    %v4506 = vunpack.c.h.b16 %v3755
    %v4507 = vunpack.c.l.b16 %v3756
    %v4508 = vunpack.c.h.b16 %v3756
    %v4509 = vunpack.c.l.b16 %v3757
    %v4510 = vunpack.c.h.b16 %v3757
    %v4511 = vunpack.c.l.b16 %v3758
    %v4512 = vunpack.c.h.b16 %v3758
    %v4513 = vunpack.c.l.b16 %v3759
    %v4514 = vunpack.c.h.b16 %v3759
    %v4515 = vunpack.c.l.b16 %v3760
    %v4516 = vunpack.c.h.b16 %v3760
    %v4517 = vunpack.c.l.b16 %v3761
    %v4518 = vunpack.c.h.b16 %v3761
    %v4519 = vunpack.c.l.b16 %v3762
    %v4520 = vunpack.c.h.b16 %v3762
    %v4521 = vunpack.c.l.b16 %v3763
    %v4522 = vunpack.c.h.b16 %v3763
    %v4523 = vunpack.c.l.b16 %v3764
    %v4524 = vunpack.c.h.b16 %v3764
    %v4525 = vunpack.c.l.b16 %v3765
    %v4526 = vunpack.c.h.b16 %v3765
    %v4527 = vunpack.c.l.b16 %v3766
    %v4528 = vunpack.c.h.b16 %v3766
    %v4529 = vunpack.c.l.b16 %v3767
    %v4530 = vunpack.c.h.b16 %v3767
    %v4531 = vunpack.c.l.b16 %v3768
    %v4532 = vunpack.c.h.b16 %v3768
    %v4533 = vunpack.c.l.b16 %v3769
    %v4534 = vunpack.c.h.b16 %v3769
    %v4535 = vunpack.c.l.b16 %v3770
    %v4536 = vunpack.c.h.b16 %v3770
    %v4537 = vunpack.c.l.b16 %v3771
    %v4538 = vunpack.c.h.b16 %v3771
    %v4539 = vunpack.c.l.b16 %v3772
    %v4540 = vunpack.c.h.b16 %v3772
    %v4541 = vunpack.c.l.b16 %v3773
    %v4542 = vunpack.c.h.b16 %v3773
    %v4543 = vunpack.c.l.b16 %v3774
    %v4544 = vunpack.c.h.b16 %v3774
    %v4545 = vunpack.c.l.b16 %v3775
    %v4546 = vunpack.c.h.b16 %v3775
    %v4547 = vunpack.c.l.b16 %v3776
    %v4548 = vunpack.c.h.b16 %v3776
    %v4549 = vunpack.c.l.b16 %v3777
    %v4550 = vunpack.c.h.b16 %v3777
    %v4551 = vunpack.c.l.b16 %v3778
    %v4552 = vunpack.c.h.b16 %v3778
    %v4553 = vunpack.c.l.b16 %v3779
    %v4554 = vunpack.c.h.b16 %v3779
    %v4555 = vunpack.c.l.b16 %v3780
    %v4556 = vunpack.c.h.b16 %v3780
    %v4557 = vunpack.c.l.b16 %v3781
    %v4558 = vunpack.c.h.b16 %v3781
    %v4559 = vunpack.c.l.b16 %v3782
    %v4560 = vunpack.c.h.b16 %v3782
    %v4561 = vpack.c.b16 %v4053, %v4049
    %v4562 = vpack.c.b16 %v4054, %v4050
    %v4563 = vpack.c.b16 %v4055, %v4051
    %v4564 = vpack.c.b16 %v4056, %v4052
    %v4565 = vpack.c.b16 %v4061, %v4057
    %v4566 = vpack.c.b16 %v4062, %v4058
    %v4567 = vpack.c.b16 %v4063, %v4059
    %v4568 = vpack.c.b16 %v4064, %v4060
    %v4569 = vpack.c.b16 %v4069, %v4065
    %v4570 = vpack.c.b16 %v4070, %v4066
    %v4571 = vpack.c.b16 %v4071, %v4067
    %v4572 = vpack.c.b16 %v4072, %v4068
    %v4573 = vpack.c.b16 %v4077, %v4073
    %v4574 = vpack.c.b16 %v4078, %v4074
    %v4575 = vpack.c.b16 %v4079, %v4075
    %v4576 = vpack.c.b16 %v4080, %v4076
    %v4577 = vpack.c.b16 %v4085, %v4081
    %v4578 = vpack.c.b16 %v4086, %v4082
    %v4579 = vpack.c.b16 %v4087, %v4083
    %v4580 = vpack.c.b16 %v4088, %v4084
    %v4581 = vpack.c.b16 %v4093, %v4089
    %v4582 = vpack.c.b16 %v4094, %v4090
    %v4583 = vpack.c.b16 %v4095, %v4091
    %v4584 = vpack.c.b16 %v4096, %v4092
    %v4585 = vpack.c.b16 %v4101, %v4097
    %v4586 = vpack.c.b16 %v4102, %v4098
    %v4587 = vpack.c.b16 %v4103, %v4099
    %v4588 = vpack.c.b16 %v4104, %v4100
    %v4589 = vpack.c.b16 %v4109, %v4105
    %v4590 = vpack.c.b16 %v4110, %v4106
    %v4591 = vpack.c.b16 %v4111, %v4107
    %v4592 = vpack.c.b16 %v4112, %v4108
    %v4593 = vpack.c.b16 %v4117, %v4113
    %v4594 = vpack.c.b16 %v4118, %v4114
    %v4595 = vpack.c.b16 %v4119, %v4115
    %v4596 = vpack.c.b16 %v4120, %v4116
    %v4597 = vpack.c.b16 %v4125, %v4121
    %v4598 = vpack.c.b16 %v4126, %v4122
    %v4599 = vpack.c.b16 %v4127, %v4123
    %v4600 = vpack.c.b16 %v4128, %v4124
    %v4601 = vpack.c.b16 %v4133, %v4129
    %v4602 = vpack.c.b16 %v4134, %v4130
    %v4603 = vpack.c.b16 %v4135, %v4131
    %v4604 = vpack.c.b16 %v4136, %v4132
    %v4605 = vpack.c.b16 %v4141, %v4137
    %v4606 = vpack.c.b16 %v4142, %v4138
    %v4607 = vpack.c.b16 %v4143, %v4139
    %v4608 = vpack.c.b16 %v4144, %v4140
    %v4609 = vpack.c.b16 %v4149, %v4145
    %v4610 = vpack.c.b16 %v4150, %v4146
    %v4611 = vpack.c.b16 %v4151, %v4147
    %v4612 = vpack.c.b16 %v4152, %v4148
    %v4613 = vpack.c.b16 %v4157, %v4153
    %v4614 = vpack.c.b16 %v4158, %v4154
    %v4615 = vpack.c.b16 %v4159, %v4155
    %v4616 = vpack.c.b16 %v4160, %v4156
    %v4617 = vpack.c.b16 %v4165, %v4161
    %v4618 = vpack.c.b16 %v4166, %v4162
    %v4619 = vpack.c.b16 %v4167, %v4163
    %v4620 = vpack.c.b16 %v4168, %v4164
    %v4621 = vpack.c.b16 %v4173, %v4169
    %v4622 = vpack.c.b16 %v4174, %v4170
    %v4623 = vpack.c.b16 %v4175, %v4171
    %v4624 = vpack.c.b16 %v4176, %v4172
    %v4625 = vpack.c.b16 %v4181, %v4177
    %v4626 = vpack.c.b16 %v4182, %v4178
    %v4627 = vpack.c.b16 %v4183, %v4179
    %v4628 = vpack.c.b16 %v4184, %v4180
    %v4629 = vpack.c.b16 %v4189, %v4185
    %v4630 = vpack.c.b16 %v4190, %v4186
    %v4631 = vpack.c.b16 %v4191, %v4187
    %v4632 = vpack.c.b16 %v4192, %v4188
    %v4633 = vpack.c.b16 %v4197, %v4193
    %v4634 = vpack.c.b16 %v4198, %v4194
    %v4635 = vpack.c.b16 %v4199, %v4195
    %v4636 = vpack.c.b16 %v4200, %v4196
    %v4637 = vpack.c.b16 %v4205, %v4201
    %v4638 = vpack.c.b16 %v4206, %v4202
    %v4639 = vpack.c.b16 %v4207, %v4203
    %v4640 = vpack.c.b16 %v4208, %v4204
    %v4641 = vpack.c.b16 %v4213, %v4209
    %v4642 = vpack.c.b16 %v4214, %v4210
    %v4643 = vpack.c.b16 %v4215, %v4211
    %v4644 = vpack.c.b16 %v4216, %v4212
    %v4645 = vpack.c.b16 %v4221, %v4217
    %v4646 = vpack.c.b16 %v4222, %v4218
    %v4647 = vpack.c.b16 %v4223, %v4219
    %v4648 = vpack.c.b16 %v4224, %v4220
    %v4649 = vpack.c.b16 %v4229, %v4225
    %v4650 = vpack.c.b16 %v4230, %v4226
    %v4651 = vpack.c.b16 %v4231, %v4227
    %v4652 = vpack.c.b16 %v4232, %v4228
    %v4653 = vpack.c.b16 %v4237, %v4233
    %v4654 = vpack.c.b16 %v4238, %v4234
    %v4655 = vpack.c.b16 %v4239, %v4235
    %v4656 = vpack.c.b16 %v4240, %v4236
    %v4657 = vpack.c.b16 %v4245, %v4241
    %v4658 = vpack.c.b16 %v4246, %v4242
    %v4659 = vpack.c.b16 %v4247, %v4243
    %v4660 = vpack.c.b16 %v4248, %v4244
    %v4661 = vpack.c.b16 %v4253, %v4249
    %v4662 = vpack.c.b16 %v4254, %v4250
    %v4663 = vpack.c.b16 %v4255, %v4251
    %v4664 = vpack.c.b16 %v4256, %v4252
    %v4665 = vpack.c.b16 %v4261, %v4257
    %v4666 = vpack.c.b16 %v4262, %v4258
    %v4667 = vpack.c.b16 %v4263, %v4259
    %v4668 = vpack.c.b16 %v4264, %v4260
    %v4669 = vpack.c.b16 %v4269, %v4265
    %v4670 = vpack.c.b16 %v4270, %v4266
    %v4671 = vpack.c.b16 %v4271, %v4267
    %v4672 = vpack.c.b16 %v4272, %v4268
    %v4673 = vpack.c.b16 %v4277, %v4273
    %v4674 = vpack.c.b16 %v4278, %v4274
    %v4675 = vpack.c.b16 %v4279, %v4275
    %v4676 = vpack.c.b16 %v4280, %v4276
    %v4677 = vpack.c.b16 %v4285, %v4281
    %v4678 = vpack.c.b16 %v4286, %v4282
    %v4679 = vpack.c.b16 %v4287, %v4283
    %v4680 = vpack.c.b16 %v4288, %v4284
    %v4681 = vpack.c.b16 %v4293, %v4289
    %v4682 = vpack.c.b16 %v4294, %v4290
    %v4683 = vpack.c.b16 %v4295, %v4291
    %v4684 = vpack.c.b16 %v4296, %v4292
    %v4685 = vpack.c.b16 %v4301, %v4297
    %v4686 = vpack.c.b16 %v4302, %v4298
    %v4687 = vpack.c.b16 %v4303, %v4299
    %v4688 = vpack.c.b16 %v4304, %v4300
    %v4689 = vpack.c.b16 %v4309, %v4305
    %v4690 = vpack.c.b16 %v4310, %v4306
    %v4691 = vpack.c.b16 %v4311, %v4307
    %v4692 = vpack.c.b16 %v4312, %v4308
    %v4693 = vpack.c.b16 %v4317, %v4313
    %v4694 = vpack.c.b16 %v4318, %v4314
    %v4695 = vpack.c.b16 %v4319, %v4315
    %v4696 = vpack.c.b16 %v4320, %v4316
    %v4697 = vpack.c.b16 %v4325, %v4321
    %v4698 = vpack.c.b16 %v4326, %v4322
    %v4699 = vpack.c.b16 %v4327, %v4323
    %v4700 = vpack.c.b16 %v4328, %v4324
    %v4701 = vpack.c.b16 %v4333, %v4329
    %v4702 = vpack.c.b16 %v4334, %v4330
    %v4703 = vpack.c.b16 %v4335, %v4331
    %v4704 = vpack.c.b16 %v4336, %v4332
    %v4705 = vpack.c.b16 %v4341, %v4337
    %v4706 = vpack.c.b16 %v4342, %v4338
    %v4707 = vpack.c.b16 %v4343, %v4339
    %v4708 = vpack.c.b16 %v4344, %v4340
    %v4709 = vpack.c.b16 %v4349, %v4345
    %v4710 = vpack.c.b16 %v4350, %v4346
    %v4711 = vpack.c.b16 %v4351, %v4347
    %v4712 = vpack.c.b16 %v4352, %v4348
    %v4713 = vpack.c.b16 %v4357, %v4353
    %v4714 = vpack.c.b16 %v4358, %v4354
    %v4715 = vpack.c.b16 %v4359, %v4355
    %v4716 = vpack.c.b16 %v4360, %v4356
    %v4717 = vpack.c.b16 %v4365, %v4361
    %v4718 = vpack.c.b16 %v4366, %v4362
    %v4719 = vpack.c.b16 %v4367, %v4363
    %v4720 = vpack.c.b16 %v4368, %v4364
    %v4721 = vpack.c.b16 %v4373, %v4369
    %v4722 = vpack.c.b16 %v4374, %v4370
    %v4723 = vpack.c.b16 %v4375, %v4371
    %v4724 = vpack.c.b16 %v4376, %v4372
    %v4725 = vpack.c.b16 %v4381, %v4377
    %v4726 = vpack.c.b16 %v4382, %v4378
    %v4727 = vpack.c.b16 %v4383, %v4379
    %v4728 = vpack.c.b16 %v4384, %v4380
    %v4729 = vpack.c.b16 %v4389, %v4385
    %v4730 = vpack.c.b16 %v4390, %v4386
    %v4731 = vpack.c.b16 %v4391, %v4387
    %v4732 = vpack.c.b16 %v4392, %v4388
    %v4733 = vpack.c.b16 %v4397, %v4393
    %v4734 = vpack.c.b16 %v4398, %v4394
    %v4735 = vpack.c.b16 %v4399, %v4395
    %v4736 = vpack.c.b16 %v4400, %v4396
    %v4737 = vpack.c.b16 %v4405, %v4401
    %v4738 = vpack.c.b16 %v4406, %v4402
    %v4739 = vpack.c.b16 %v4407, %v4403
    %v4740 = vpack.c.b16 %v4408, %v4404
    %v4741 = vpack.c.b16 %v4413, %v4409
    %v4742 = vpack.c.b16 %v4414, %v4410
    %v4743 = vpack.c.b16 %v4415, %v4411
    %v4744 = vpack.c.b16 %v4416, %v4412
    %v4745 = vpack.c.b16 %v4421, %v4417
    %v4746 = vpack.c.b16 %v4422, %v4418
    %v4747 = vpack.c.b16 %v4423, %v4419
    %v4748 = vpack.c.b16 %v4424, %v4420
    %v4749 = vpack.c.b16 %v4429, %v4425
    %v4750 = vpack.c.b16 %v4430, %v4426
    %v4751 = vpack.c.b16 %v4431, %v4427
    %v4752 = vpack.c.b16 %v4432, %v4428
    %v4753 = vpack.c.b16 %v4437, %v4433
    %v4754 = vpack.c.b16 %v4438, %v4434
    %v4755 = vpack.c.b16 %v4439, %v4435
    %v4756 = vpack.c.b16 %v4440, %v4436
    %v4757 = vpack.c.b16 %v4445, %v4441
    %v4758 = vpack.c.b16 %v4446, %v4442
    %v4759 = vpack.c.b16 %v4447, %v4443
    %v4760 = vpack.c.b16 %v4448, %v4444
    %v4761 = vpack.c.b16 %v4453, %v4449
    %v4762 = vpack.c.b16 %v4454, %v4450
    %v4763 = vpack.c.b16 %v4455, %v4451
    %v4764 = vpack.c.b16 %v4456, %v4452
    %v4765 = vpack.c.b16 %v4461, %v4457
    %v4766 = vpack.c.b16 %v4462, %v4458
    %v4767 = vpack.c.b16 %v4463, %v4459
    %v4768 = vpack.c.b16 %v4464, %v4460
    %v4769 = vpack.c.b16 %v4469, %v4465
    %v4770 = vpack.c.b16 %v4470, %v4466
    %v4771 = vpack.c.b16 %v4471, %v4467
    %v4772 = vpack.c.b16 %v4472, %v4468
    %v4773 = vpack.c.b16 %v4477, %v4473
    %v4774 = vpack.c.b16 %v4478, %v4474
    %v4775 = vpack.c.b16 %v4479, %v4475
    %v4776 = vpack.c.b16 %v4480, %v4476
    %v4777 = vpack.c.b16 %v4485, %v4481
    %v4778 = vpack.c.b16 %v4486, %v4482
    %v4779 = vpack.c.b16 %v4487, %v4483
    %v4780 = vpack.c.b16 %v4488, %v4484
    %v4781 = vpack.c.b16 %v4493, %v4489
    %v4782 = vpack.c.b16 %v4494, %v4490
    %v4783 = vpack.c.b16 %v4495, %v4491
    %v4784 = vpack.c.b16 %v4496, %v4492
    %v4785 = vpack.c.b16 %v4501, %v4497
    %v4786 = vpack.c.b16 %v4502, %v4498
    %v4787 = vpack.c.b16 %v4503, %v4499
    %v4788 = vpack.c.b16 %v4504, %v4500
    %v4789 = vpack.c.b16 %v4509, %v4505
    %v4790 = vpack.c.b16 %v4510, %v4506
    %v4791 = vpack.c.b16 %v4511, %v4507
    %v4792 = vpack.c.b16 %v4512, %v4508
    %v4793 = vpack.c.b16 %v4517, %v4513
    %v4794 = vpack.c.b16 %v4518, %v4514
    %v4795 = vpack.c.b16 %v4519, %v4515
    %v4796 = vpack.c.b16 %v4520, %v4516
    %v4797 = vpack.c.b16 %v4525, %v4521
    %v4798 = vpack.c.b16 %v4526, %v4522
    %v4799 = vpack.c.b16 %v4527, %v4523
    %v4800 = vpack.c.b16 %v4528, %v4524
    %v4801 = vpack.c.b16 %v4533, %v4529
    %v4802 = vpack.c.b16 %v4534, %v4530
    %v4803 = vpack.c.b16 %v4535, %v4531
    %v4804 = vpack.c.b16 %v4536, %v4532
    %v4805 = vpack.c.b16 %v4541, %v4537
    %v4806 = vpack.c.b16 %v4542, %v4538
    %v4807 = vpack.c.b16 %v4543, %v4539
    %v4808 = vpack.c.b16 %v4544, %v4540
    %v4809 = vpack.c.b16 %v4549, %v4545
    %v4810 = vpack.c.b16 %v4550, %v4546
    %v4811 = vpack.c.b16 %v4551, %v4547
    %v4812 = vpack.c.b16 %v4552, %v4548
    %v4813 = vpack.c.b16 %v4557, %v4553
    %v4814 = vpack.c.b16 %v4558, %v4554
    %v4815 = vpack.c.b16 %v4559, %v4555
    %v4816 = vpack.c.b16 %v4560, %v4556
    %5073 = vmatpush.bf16.msra.mxu0 %v4589
    %5074 = vmatpush.bf16.msra.mxu0 %v4585
    %5075 = vmatpush.bf16.msra.mxu0 %v4581
    %5076 = vmatpush.bf16.msra.mxu0 %v4577
    %5077 = vmatpush.bf16.msra.mxu0 %v4573
    %5078 = vmatpush.bf16.msra.mxu0 %v4569
    %5079 = vmatpush.bf16.msra.mxu0 %v4565
    %5080 = vmatpush.bf16.msra.mxu0 %v4561
    %5081 = vmatmul.bf16.gmra.mxu0 %v3519
    %v5082 = vpop.f32.mrf.mxu0
    %v5083 = vadd.f32 %v3785, %v5082
    %v5084 = vpop.f32.mrf.mxu0
    %5085 = vdwg.mxu0
    %5086 = vmatpush.bf16.msra.mxu0 %v4621
    %5087 = vmatpush.bf16.msra.mxu0 %v4617
    %5088 = vmatpush.bf16.msra.mxu0 %v4613
    %5089 = vmatpush.bf16.msra.mxu0 %v4609
    %5090 = vmatpush.bf16.msra.mxu0 %v4605
    %5091 = vmatpush.bf16.msra.mxu0 %v4601
    %5092 = vmatpush.bf16.msra.mxu0 %v4597
    %5093 = vmatpush.bf16.msra.mxu0 %v4593
    %5094 = vmatmul.bf16.gmra.mxu0 %v3520
    %v5095 = vpop.f32.mrf.mxu0
    %v5096 = vadd.f32 %v5083, %v5095
    %v5097 = vpop.f32.mrf.mxu0
    %5098 = vdwg.mxu0
    %5099 = vmatpush.bf16.msra.mxu0 %v4653
    %5100 = vmatpush.bf16.msra.mxu0 %v4649
    %5101 = vmatpush.bf16.msra.mxu0 %v4645
    %5102 = vmatpush.bf16.msra.mxu0 %v4641
    %5103 = vmatpush.bf16.msra.mxu0 %v4637
    %5104 = vmatpush.bf16.msra.mxu0 %v4633
    %5105 = vmatpush.bf16.msra.mxu0 %v4629
    %5106 = vmatpush.bf16.msra.mxu0 %v4625
    %5107 = vmatmul.bf16.gmra.mxu0 %v3521
    %v5108 = vpop.f32.mrf.mxu0
    %v5109 = vadd.f32 %v5096, %v5108
    %v5110 = vpop.f32.mrf.mxu0
    %5111 = vdwg.mxu0
    %5112 = vmatpush.bf16.msra.mxu0 %v4685
    %5113 = vmatpush.bf16.msra.mxu0 %v4681
    %5114 = vmatpush.bf16.msra.mxu0 %v4677
    %5115 = vmatpush.bf16.msra.mxu0 %v4673
    %5116 = vmatpush.bf16.msra.mxu0 %v4669
    %5117 = vmatpush.bf16.msra.mxu0 %v4665
    %5118 = vmatpush.bf16.msra.mxu0 %v4661
    %5119 = vmatpush.bf16.msra.mxu0 %v4657
    %5120 = vmatmul.bf16.gmra.mxu0 %v3522
    %v5121 = vpop.f32.mrf.mxu0
    %v5122 = vadd.f32 %v5109, %v5121
    %v5123 = vpop.f32.mrf.mxu0
    %5124 = vdwg.mxu0
    %5125 = vmatpush.bf16.msra.mxu0 %v4717
    %5126 = vmatpush.bf16.msra.mxu0 %v4713
    %5127 = vmatpush.bf16.msra.mxu0 %v4709
    %5128 = vmatpush.bf16.msra.mxu0 %v4705
    %5129 = vmatpush.bf16.msra.mxu0 %v4701
    %5130 = vmatpush.bf16.msra.mxu0 %v4697
    %5131 = vmatpush.bf16.msra.mxu0 %v4693
    %5132 = vmatpush.bf16.msra.mxu0 %v4689
    %5133 = vmatmul.bf16.gmra.mxu0 %v3523
    %v5134 = vpop.f32.mrf.mxu0
    %v5135 = vadd.f32 %v5122, %v5134
    %v5136 = vpop.f32.mrf.mxu0
    %5137 = vdwg.mxu0
    %5138 = vmatpush.bf16.msra.mxu0 %v4749
    %5139 = vmatpush.bf16.msra.mxu0 %v4745
    %5140 = vmatpush.bf16.msra.mxu0 %v4741
    %5141 = vmatpush.bf16.msra.mxu0 %v4737
    %5142 = vmatpush.bf16.msra.mxu0 %v4733
    %5143 = vmatpush.bf16.msra.mxu0 %v4729
    %5144 = vmatpush.bf16.msra.mxu0 %v4725
    %5145 = vmatpush.bf16.msra.mxu0 %v4721
    %5146 = vmatmul.bf16.gmra.mxu0 %v3524
    %v5147 = vpop.f32.mrf.mxu0
    %v5148 = vadd.f32 %v5135, %v5147
    %v5149 = vpop.f32.mrf.mxu0
    %5150 = vdwg.mxu0
    %5151 = vmatpush.bf16.msra.mxu0 %v4781
    %5152 = vmatpush.bf16.msra.mxu0 %v4777
    %5153 = vmatpush.bf16.msra.mxu0 %v4773
    %5154 = vmatpush.bf16.msra.mxu0 %v4769
    %5155 = vmatpush.bf16.msra.mxu0 %v4765
    %5156 = vmatpush.bf16.msra.mxu0 %v4761
    %5157 = vmatpush.bf16.msra.mxu0 %v4757
    %5158 = vmatpush.bf16.msra.mxu0 %v4753
    %5159 = vmatmul.bf16.gmra.mxu0 %v3525
    %v5160 = vpop.f32.mrf.mxu0
    %v5161 = vadd.f32 %v5148, %v5160
    %v5162 = vpop.f32.mrf.mxu0
    %5163 = vdwg.mxu0
    %5164 = vmatpush.bf16.msra.mxu0 %v4813
    %5165 = vmatpush.bf16.msra.mxu0 %v4809
    %5166 = vmatpush.bf16.msra.mxu0 %v4805
    %5167 = vmatpush.bf16.msra.mxu0 %v4801
    %5168 = vmatpush.bf16.msra.mxu0 %v4797
    %5169 = vmatpush.bf16.msra.mxu0 %v4793
    %5170 = vmatpush.bf16.msra.mxu0 %v4789
    %5171 = vmatpush.bf16.msra.mxu0 %v4785
    %5172 = vmatmul.bf16.gmra.mxu0 %v3526
    %v5173 = vpop.f32.mrf.mxu0
    %v5174 = vadd.f32 %v5161, %v5173
    %v5175 = vpop.f32.mrf.mxu0
    %5176 = vdwg.mxu0
    %5177 = vmatpush.bf16.msra.mxu0 %v4590
    %5178 = vmatpush.bf16.msra.mxu0 %v4586
    %5179 = vmatpush.bf16.msra.mxu0 %v4582
    %5180 = vmatpush.bf16.msra.mxu0 %v4578
    %5181 = vmatpush.bf16.msra.mxu0 %v4574
    %5182 = vmatpush.bf16.msra.mxu0 %v4570
    %5183 = vmatpush.bf16.msra.mxu0 %v4566
    %5184 = vmatpush.bf16.msra.mxu0 %v4562
    %5185 = vmatmul.bf16.gmra.mxu0 %v3519
    %v5186 = vpop.f32.mrf.mxu0
    %v5187 = vadd.f32 %v3786, %v5186
    %v5188 = vpop.f32.mrf.mxu0
    %5189 = vdwg.mxu0
    %5190 = vmatpush.bf16.msra.mxu0 %v4622
    %5191 = vmatpush.bf16.msra.mxu0 %v4618
    %5192 = vmatpush.bf16.msra.mxu0 %v4614
    %5193 = vmatpush.bf16.msra.mxu0 %v4610
    %5194 = vmatpush.bf16.msra.mxu0 %v4606
    %5195 = vmatpush.bf16.msra.mxu0 %v4602
    %5196 = vmatpush.bf16.msra.mxu0 %v4598
    %5197 = vmatpush.bf16.msra.mxu0 %v4594
    %5198 = vmatmul.bf16.gmra.mxu0 %v3520
    %v5199 = vpop.f32.mrf.mxu0
    %v5200 = vadd.f32 %v5187, %v5199
    %v5201 = vpop.f32.mrf.mxu0
    %5202 = vdwg.mxu0
    %5203 = vmatpush.bf16.msra.mxu0 %v4654
    %5204 = vmatpush.bf16.msra.mxu0 %v4650
    %5205 = vmatpush.bf16.msra.mxu0 %v4646
    %5206 = vmatpush.bf16.msra.mxu0 %v4642
    %5207 = vmatpush.bf16.msra.mxu0 %v4638
    %5208 = vmatpush.bf16.msra.mxu0 %v4634
    %5209 = vmatpush.bf16.msra.mxu0 %v4630
    %5210 = vmatpush.bf16.msra.mxu0 %v4626
    %5211 = vmatmul.bf16.gmra.mxu0 %v3521
    %v5212 = vpop.f32.mrf.mxu0
    %v5213 = vadd.f32 %v5200, %v5212
    %v5214 = vpop.f32.mrf.mxu0
    %5215 = vdwg.mxu0
    %5216 = vmatpush.bf16.msra.mxu0 %v4686
    %5217 = vmatpush.bf16.msra.mxu0 %v4682
    %5218 = vmatpush.bf16.msra.mxu0 %v4678
    %5219 = vmatpush.bf16.msra.mxu0 %v4674
    %5220 = vmatpush.bf16.msra.mxu0 %v4670
    %5221 = vmatpush.bf16.msra.mxu0 %v4666
    %5222 = vmatpush.bf16.msra.mxu0 %v4662
    %5223 = vmatpush.bf16.msra.mxu0 %v4658
    %5224 = vmatmul.bf16.gmra.mxu0 %v3522
    %v5225 = vpop.f32.mrf.mxu0
    %v5226 = vadd.f32 %v5213, %v5225
    %v5227 = vpop.f32.mrf.mxu0
    %5228 = vdwg.mxu0
    %5229 = vmatpush.bf16.msra.mxu0 %v4718
    %5230 = vmatpush.bf16.msra.mxu0 %v4714
    %5231 = vmatpush.bf16.msra.mxu0 %v4710
    %5232 = vmatpush.bf16.msra.mxu0 %v4706
    %5233 = vmatpush.bf16.msra.mxu0 %v4702
    %5234 = vmatpush.bf16.msra.mxu0 %v4698
    %5235 = vmatpush.bf16.msra.mxu0 %v4694
    %5236 = vmatpush.bf16.msra.mxu0 %v4690
    %5237 = vmatmul.bf16.gmra.mxu0 %v3523
    %v5238 = vpop.f32.mrf.mxu0
    %v5239 = vadd.f32 %v5226, %v5238
    %v5240 = vpop.f32.mrf.mxu0
    %5241 = vdwg.mxu0
    %5242 = vmatpush.bf16.msra.mxu0 %v4750
    %5243 = vmatpush.bf16.msra.mxu0 %v4746
    %5244 = vmatpush.bf16.msra.mxu0 %v4742
    %5245 = vmatpush.bf16.msra.mxu0 %v4738
    %5246 = vmatpush.bf16.msra.mxu0 %v4734
    %5247 = vmatpush.bf16.msra.mxu0 %v4730
    %5248 = vmatpush.bf16.msra.mxu0 %v4726
    %5249 = vmatpush.bf16.msra.mxu0 %v4722
    %5250 = vmatmul.bf16.gmra.mxu0 %v3524
    %v5251 = vpop.f32.mrf.mxu0
    %v5252 = vadd.f32 %v5239, %v5251
    %v5253 = vpop.f32.mrf.mxu0
    %5254 = vdwg.mxu0
    %5255 = vmatpush.bf16.msra.mxu0 %v4782
    %5256 = vmatpush.bf16.msra.mxu0 %v4778
    %5257 = vmatpush.bf16.msra.mxu0 %v4774
    %5258 = vmatpush.bf16.msra.mxu0 %v4770
    %5259 = vmatpush.bf16.msra.mxu0 %v4766
    %5260 = vmatpush.bf16.msra.mxu0 %v4762
    %5261 = vmatpush.bf16.msra.mxu0 %v4758
    %5262 = vmatpush.bf16.msra.mxu0 %v4754
    %5263 = vmatmul.bf16.gmra.mxu0 %v3525
    %v5264 = vpop.f32.mrf.mxu0
    %v5265 = vadd.f32 %v5252, %v5264
    %v5266 = vpop.f32.mrf.mxu0
    %5267 = vdwg.mxu0
    %5268 = vmatpush.bf16.msra.mxu0 %v4814
    %5269 = vmatpush.bf16.msra.mxu0 %v4810
    %5270 = vmatpush.bf16.msra.mxu0 %v4806
    %5271 = vmatpush.bf16.msra.mxu0 %v4802
    %5272 = vmatpush.bf16.msra.mxu0 %v4798
    %5273 = vmatpush.bf16.msra.mxu0 %v4794
    %5274 = vmatpush.bf16.msra.mxu0 %v4790
    %5275 = vmatpush.bf16.msra.mxu0 %v4786
    %5276 = vmatmul.bf16.gmra.mxu0 %v3526
    %v5277 = vpop.f32.mrf.mxu0
    %v5278 = vadd.f32 %v5265, %v5277
    %v5279 = vpop.f32.mrf.mxu0
    %5280 = vdwg.mxu0
    %5281 = vmatpush.bf16.msra.mxu0 %v4591
    %5282 = vmatpush.bf16.msra.mxu0 %v4587
    %5283 = vmatpush.bf16.msra.mxu0 %v4583
    %5284 = vmatpush.bf16.msra.mxu0 %v4579
    %5285 = vmatpush.bf16.msra.mxu0 %v4575
    %5286 = vmatpush.bf16.msra.mxu0 %v4571
    %5287 = vmatpush.bf16.msra.mxu0 %v4567
    %5288 = vmatpush.bf16.msra.mxu0 %v4563
    %5289 = vmatmul.bf16.gmra.mxu0 %v3519
    %v5290 = vpop.f32.mrf.mxu0
    %v5291 = vadd.f32 %v3787, %v5290
    %v5292 = vpop.f32.mrf.mxu0
    %5293 = vdwg.mxu0
    %5294 = vmatpush.bf16.msra.mxu0 %v4623
    %5295 = vmatpush.bf16.msra.mxu0 %v4619
    %5296 = vmatpush.bf16.msra.mxu0 %v4615
    %5297 = vmatpush.bf16.msra.mxu0 %v4611
    %5298 = vmatpush.bf16.msra.mxu0 %v4607
    %5299 = vmatpush.bf16.msra.mxu0 %v4603
    %5300 = vmatpush.bf16.msra.mxu0 %v4599
    %5301 = vmatpush.bf16.msra.mxu0 %v4595
    %5302 = vmatmul.bf16.gmra.mxu0 %v3520
    %v5303 = vpop.f32.mrf.mxu0
    %v5304 = vadd.f32 %v5291, %v5303
    %v5305 = vpop.f32.mrf.mxu0
    %5306 = vdwg.mxu0
    %5307 = vmatpush.bf16.msra.mxu0 %v4655
    %5308 = vmatpush.bf16.msra.mxu0 %v4651
    %5309 = vmatpush.bf16.msra.mxu0 %v4647
    %5310 = vmatpush.bf16.msra.mxu0 %v4643
    %5311 = vmatpush.bf16.msra.mxu0 %v4639
    %5312 = vmatpush.bf16.msra.mxu0 %v4635
    %5313 = vmatpush.bf16.msra.mxu0 %v4631
    %5314 = vmatpush.bf16.msra.mxu0 %v4627
    %5315 = vmatmul.bf16.gmra.mxu0 %v3521
    %v5316 = vpop.f32.mrf.mxu0
    %v5317 = vadd.f32 %v5304, %v5316
    %v5318 = vpop.f32.mrf.mxu0
    %5319 = vdwg.mxu0
    %5320 = vmatpush.bf16.msra.mxu0 %v4687
    %5321 = vmatpush.bf16.msra.mxu0 %v4683
    %5322 = vmatpush.bf16.msra.mxu0 %v4679
    %5323 = vmatpush.bf16.msra.mxu0 %v4675
    %5324 = vmatpush.bf16.msra.mxu0 %v4671
    %5325 = vmatpush.bf16.msra.mxu0 %v4667
    %5326 = vmatpush.bf16.msra.mxu0 %v4663
    %5327 = vmatpush.bf16.msra.mxu0 %v4659
    %5328 = vmatmul.bf16.gmra.mxu0 %v3522
    %v5329 = vpop.f32.mrf.mxu0
    %v5330 = vadd.f32 %v5317, %v5329
    %v5331 = vpop.f32.mrf.mxu0
    %5332 = vdwg.mxu0
    %5333 = vmatpush.bf16.msra.mxu0 %v4719
    %5334 = vmatpush.bf16.msra.mxu0 %v4715
    %5335 = vmatpush.bf16.msra.mxu0 %v4711
    %5336 = vmatpush.bf16.msra.mxu0 %v4707
    %5337 = vmatpush.bf16.msra.mxu0 %v4703
    %5338 = vmatpush.bf16.msra.mxu0 %v4699
    %5339 = vmatpush.bf16.msra.mxu0 %v4695
    %5340 = vmatpush.bf16.msra.mxu0 %v4691
    %5341 = vmatmul.bf16.gmra.mxu0 %v3523
    %v5342 = vpop.f32.mrf.mxu0
    %v5343 = vadd.f32 %v5330, %v5342
    %v5344 = vpop.f32.mrf.mxu0
    %5345 = vdwg.mxu0
    %5346 = vmatpush.bf16.msra.mxu0 %v4751
    %5347 = vmatpush.bf16.msra.mxu0 %v4747
    %5348 = vmatpush.bf16.msra.mxu0 %v4743
    %5349 = vmatpush.bf16.msra.mxu0 %v4739
    %5350 = vmatpush.bf16.msra.mxu0 %v4735
    %5351 = vmatpush.bf16.msra.mxu0 %v4731
    %5352 = vmatpush.bf16.msra.mxu0 %v4727
    %5353 = vmatpush.bf16.msra.mxu0 %v4723
    %5354 = vmatmul.bf16.gmra.mxu0 %v3524
    %v5355 = vpop.f32.mrf.mxu0
    %v5356 = vadd.f32 %v5343, %v5355
    %v5357 = vpop.f32.mrf.mxu0
    %5358 = vdwg.mxu0
    %5359 = vmatpush.bf16.msra.mxu0 %v4783
    %5360 = vmatpush.bf16.msra.mxu0 %v4779
    %5361 = vmatpush.bf16.msra.mxu0 %v4775
    %5362 = vmatpush.bf16.msra.mxu0 %v4771
    %5363 = vmatpush.bf16.msra.mxu0 %v4767
    %5364 = vmatpush.bf16.msra.mxu0 %v4763
    %5365 = vmatpush.bf16.msra.mxu0 %v4759
    %5366 = vmatpush.bf16.msra.mxu0 %v4755
    %5367 = vmatmul.bf16.gmra.mxu0 %v3525
    %v5368 = vpop.f32.mrf.mxu0
    %v5369 = vadd.f32 %v5356, %v5368
    %v5370 = vpop.f32.mrf.mxu0
    %5371 = vdwg.mxu0
    %5372 = vmatpush.bf16.msra.mxu0 %v4815
    %5373 = vmatpush.bf16.msra.mxu0 %v4811
    %5374 = vmatpush.bf16.msra.mxu0 %v4807
    %5375 = vmatpush.bf16.msra.mxu0 %v4803
    %5376 = vmatpush.bf16.msra.mxu0 %v4799
    %5377 = vmatpush.bf16.msra.mxu0 %v4795
    %5378 = vmatpush.bf16.msra.mxu0 %v4791
    %5379 = vmatpush.bf16.msra.mxu0 %v4787
    %5380 = vmatmul.bf16.gmra.mxu0 %v3526
    %v5381 = vpop.f32.mrf.mxu0
    %v5382 = vadd.f32 %v5369, %v5381
    %v5383 = vpop.f32.mrf.mxu0
    %5384 = vdwg.mxu0
    %5385 = vmatpush.bf16.msra.mxu0 %v4592
    %5386 = vmatpush.bf16.msra.mxu0 %v4588
    %5387 = vmatpush.bf16.msra.mxu0 %v4584
    %5388 = vmatpush.bf16.msra.mxu0 %v4580
    %5389 = vmatpush.bf16.msra.mxu0 %v4576
    %5390 = vmatpush.bf16.msra.mxu0 %v4572
    %5391 = vmatpush.bf16.msra.mxu0 %v4568
    %5392 = vmatpush.bf16.msra.mxu0 %v4564
    %5393 = vmatmul.bf16.gmra.mxu0 %v3519
    %v5394 = vpop.f32.mrf.mxu0
    %v5395 = vadd.f32 %v3788, %v5394
    %v5396 = vpop.f32.mrf.mxu0
    %5397 = vdwg.mxu0
    %5398 = vmatpush.bf16.msra.mxu0 %v4624
    %5399 = vmatpush.bf16.msra.mxu0 %v4620
    %5400 = vmatpush.bf16.msra.mxu0 %v4616
    %5401 = vmatpush.bf16.msra.mxu0 %v4612
    %5402 = vmatpush.bf16.msra.mxu0 %v4608
    %5403 = vmatpush.bf16.msra.mxu0 %v4604
    %5404 = vmatpush.bf16.msra.mxu0 %v4600
    %5405 = vmatpush.bf16.msra.mxu0 %v4596
    %5406 = vmatmul.bf16.gmra.mxu0 %v3520
    %v5407 = vpop.f32.mrf.mxu0
    %v5408 = vadd.f32 %v5395, %v5407
    %v5409 = vpop.f32.mrf.mxu0
    %5410 = vdwg.mxu0
    %5411 = vmatpush.bf16.msra.mxu0 %v4656
    %5412 = vmatpush.bf16.msra.mxu0 %v4652
    %5413 = vmatpush.bf16.msra.mxu0 %v4648
    %5414 = vmatpush.bf16.msra.mxu0 %v4644
    %5415 = vmatpush.bf16.msra.mxu0 %v4640
    %5416 = vmatpush.bf16.msra.mxu0 %v4636
    %5417 = vmatpush.bf16.msra.mxu0 %v4632
    %5418 = vmatpush.bf16.msra.mxu0 %v4628
    %5419 = vmatmul.bf16.gmra.mxu0 %v3521
    %v5420 = vpop.f32.mrf.mxu0
    %v5421 = vadd.f32 %v5408, %v5420
    %v5422 = vpop.f32.mrf.mxu0
    %5423 = vdwg.mxu0
    %5424 = vmatpush.bf16.msra.mxu0 %v4688
    %5425 = vmatpush.bf16.msra.mxu0 %v4684
    %5426 = vmatpush.bf16.msra.mxu0 %v4680
    %5427 = vmatpush.bf16.msra.mxu0 %v4676
    %5428 = vmatpush.bf16.msra.mxu0 %v4672
    %5429 = vmatpush.bf16.msra.mxu0 %v4668
    %5430 = vmatpush.bf16.msra.mxu0 %v4664
    %5431 = vmatpush.bf16.msra.mxu0 %v4660
    %5432 = vmatmul.bf16.gmra.mxu0 %v3522
    %v5433 = vpop.f32.mrf.mxu0
    %v5434 = vadd.f32 %v5421, %v5433
    %v5435 = vpop.f32.mrf.mxu0
    %5436 = vdwg.mxu0
    %5437 = vmatpush.bf16.msra.mxu0 %v4720
    %5438 = vmatpush.bf16.msra.mxu0 %v4716
    %5439 = vmatpush.bf16.msra.mxu0 %v4712
    %5440 = vmatpush.bf16.msra.mxu0 %v4708
    %5441 = vmatpush.bf16.msra.mxu0 %v4704
    %5442 = vmatpush.bf16.msra.mxu0 %v4700
    %5443 = vmatpush.bf16.msra.mxu0 %v4696
    %5444 = vmatpush.bf16.msra.mxu0 %v4692
    %5445 = vmatmul.bf16.gmra.mxu0 %v3523
    %v5446 = vpop.f32.mrf.mxu0
    %v5447 = vadd.f32 %v5434, %v5446
    %v5448 = vpop.f32.mrf.mxu0
    %5449 = vdwg.mxu0
    %5450 = vmatpush.bf16.msra.mxu0 %v4752
    %5451 = vmatpush.bf16.msra.mxu0 %v4748
    %5452 = vmatpush.bf16.msra.mxu0 %v4744
    %5453 = vmatpush.bf16.msra.mxu0 %v4740
    %5454 = vmatpush.bf16.msra.mxu0 %v4736
    %5455 = vmatpush.bf16.msra.mxu0 %v4732
    %5456 = vmatpush.bf16.msra.mxu0 %v4728
    %5457 = vmatpush.bf16.msra.mxu0 %v4724
    %5458 = vmatmul.bf16.gmra.mxu0 %v3524
    %v5459 = vpop.f32.mrf.mxu0
    %v5460 = vadd.f32 %v5447, %v5459
    %v5461 = vpop.f32.mrf.mxu0
    %5462 = vdwg.mxu0
    %5463 = vmatpush.bf16.msra.mxu0 %v4784
    %5464 = vmatpush.bf16.msra.mxu0 %v4780
    %5465 = vmatpush.bf16.msra.mxu0 %v4776
    %5466 = vmatpush.bf16.msra.mxu0 %v4772
    %5467 = vmatpush.bf16.msra.mxu0 %v4768
    %5468 = vmatpush.bf16.msra.mxu0 %v4764
    %5469 = vmatpush.bf16.msra.mxu0 %v4760
    %5470 = vmatpush.bf16.msra.mxu0 %v4756
    %5471 = vmatmul.bf16.gmra.mxu0 %v3525
    %v5472 = vpop.f32.mrf.mxu0
    %v5473 = vadd.f32 %v5460, %v5472
    %v5474 = vpop.f32.mrf.mxu0
    %5475 = vdwg.mxu0
    %5476 = vmatpush.bf16.msra.mxu0 %v4816
    %5477 = vmatpush.bf16.msra.mxu0 %v4812
    %5478 = vmatpush.bf16.msra.mxu0 %v4808
    %5479 = vmatpush.bf16.msra.mxu0 %v4804
    %5480 = vmatpush.bf16.msra.mxu0 %v4800
    %5481 = vmatpush.bf16.msra.mxu0 %v4796
    %5482 = vmatpush.bf16.msra.mxu0 %v4792
    %5483 = vmatpush.bf16.msra.mxu0 %v4788
    %5484 = vmatmul.bf16.gmra.mxu0 %v3526
    %v5485 = vpop.f32.mrf.mxu0
    %v5486 = vadd.f32 %v5473, %v5485
    %v5487 = vpop.f32.mrf.mxu0
    %5488 = vdwg.mxu0
    %vm5489 = vcmp.gt.f32.partialorder %v5174, 0.0
    %vm5490 = vcmp.gt.f32.partialorder %v5278, 0.0
    %vm5491 = vcmp.gt.f32.partialorder %v5382, 0.0
    %vm5492 = vcmp.gt.f32.partialorder %v5486, 0.0
    %v5493 = vmul.f32 %v5174, 0.2
    %v5494 = vmul.f32 %v5278, 0.2
    %v5495 = vmul.f32 %v5382, 0.2
    %v5496 = vmul.f32 %v5486, 0.2
    %v5497 = vsel %vm5489, %v5174, %v5493
    %v5498 = vsel %vm5490, %v5278, %v5494
    %v5499 = vsel %vm5491, %v5382, %v5495
    %v5500 = vsel %vm5492, %v5486, %v5496
    %v5501 = vpack.c.bf16 %v5497, %v5497
    %v5502 = vpack.c.bf16 %v5498, %v5498
    %v5503 = vpack.c.bf16 %v5499, %v5499
    %v5504 = vpack.c.bf16 %v5500, %v5500
    %v5505 = vld [vmem:[#allocation11] sm:$0xff]
    %v5506 = vld [vmem:[#allocation11 + $0x8] sm:$0xff]
    %v5507 = vld [vmem:[#allocation11 + $0x10] sm:$0xff]
    %v5508 = vld [vmem:[#allocation11 + $0x18] sm:$0xff]
    %v5509 = vld [vmem:[#allocation11 + $0x20] sm:$0xff]
    %v5510 = vld [vmem:[#allocation11 + $0x28] sm:$0xff]
    %v5511 = vld [vmem:[#allocation11 + $0x30] sm:$0xff]
    %v5512 = vld [vmem:[#allocation11 + $0x38] sm:$0xff]
    %v5513 = vld [vmem:[#allocation11 + $0x40] sm:$0xff]
    %v5514 = vld [vmem:[#allocation11 + $0x48] sm:$0xff]
    %v5515 = vld [vmem:[#allocation11 + $0x50] sm:$0xff]
    %v5516 = vld [vmem:[#allocation11 + $0x58] sm:$0xff]
    %v5517 = vld [vmem:[#allocation11 + $0x60] sm:$0xff]
    %v5518 = vld [vmem:[#allocation11 + $0x68] sm:$0xff]
    %v5519 = vld [vmem:[#allocation11 + $0x70] sm:$0xff]
    %v5520 = vld [vmem:[#allocation11 + $0x78] sm:$0xff]
    %v5521 = vld [vmem:[#allocation11 + $0x80] sm:$0xff]
    %v5522 = vld [vmem:[#allocation11 + $0x88] sm:$0xff]
    %v5523 = vld [vmem:[#allocation11 + $0x90] sm:$0xff]
    %v5524 = vld [vmem:[#allocation11 + $0x98] sm:$0xff]
    %v5525 = vld [vmem:[#allocation11 + $0xa0] sm:$0xff]
    %v5526 = vld [vmem:[#allocation11 + $0xa8] sm:$0xff]
    %v5527 = vld [vmem:[#allocation11 + $0xb0] sm:$0xff]
    %v5528 = vld [vmem:[#allocation11 + $0xb8] sm:$0xff]
    %v5529 = vld [vmem:[#allocation11 + $0xc0] sm:$0xff]
    %v5530 = vld [vmem:[#allocation11 + $0xc8] sm:$0xff]
    %v5531 = vld [vmem:[#allocation11 + $0xd0] sm:$0xff]
    %v5532 = vld [vmem:[#allocation11 + $0xd8] sm:$0xff]
    %v5533 = vld [vmem:[#allocation11 + $0xe0] sm:$0xff]
    %v5534 = vld [vmem:[#allocation11 + $0xe8] sm:$0xff]
    %v5535 = vld [vmem:[#allocation11 + $0xf0] sm:$0xff]
    %v5536 = vld [vmem:[#allocation11 + $0xf8] sm:$0xff]
    %v5537 = vld [vmem:[#allocation11 + $0x100] sm:$0xff]
    %v5538 = vld [vmem:[#allocation11 + $0x108] sm:$0xff]
    %v5539 = vld [vmem:[#allocation11 + $0x110] sm:$0xff]
    %v5540 = vld [vmem:[#allocation11 + $0x118] sm:$0xff]
    %v5541 = vld [vmem:[#allocation11 + $0x120] sm:$0xff]
    %v5542 = vld [vmem:[#allocation11 + $0x128] sm:$0xff]
    %v5543 = vld [vmem:[#allocation11 + $0x130] sm:$0xff]
    %v5544 = vld [vmem:[#allocation11 + $0x138] sm:$0xff]
    %v5545 = vld [vmem:[#allocation11 + $0x140] sm:$0xff]
    %v5546 = vld [vmem:[#allocation11 + $0x148] sm:$0xff]
    %v5547 = vld [vmem:[#allocation11 + $0x150] sm:$0xff]
    %v5548 = vld [vmem:[#allocation11 + $0x158] sm:$0xff]
    %v5549 = vld [vmem:[#allocation11 + $0x160] sm:$0xff]
    %v5550 = vld [vmem:[#allocation11 + $0x168] sm:$0xff]
    %v5551 = vld [vmem:[#allocation11 + $0x170] sm:$0xff]
    %v5552 = vld [vmem:[#allocation11 + $0x178] sm:$0xff]
    %v5553 = vld [vmem:[#allocation11 + $0x180] sm:$0xff]
    %v5554 = vld [vmem:[#allocation11 + $0x188] sm:$0xff]
    %v5555 = vld [vmem:[#allocation11 + $0x190] sm:$0xff]
    %v5556 = vld [vmem:[#allocation11 + $0x198] sm:$0xff]
    %v5557 = vld [vmem:[#allocation11 + $0x1a0] sm:$0xff]
    %v5558 = vld [vmem:[#allocation11 + $0x1a8] sm:$0xff]
    %v5559 = vld [vmem:[#allocation11 + $0x1b0] sm:$0xff]
    %v5560 = vld [vmem:[#allocation11 + $0x1b8] sm:$0xff]
    %v5561 = vld [vmem:[#allocation11 + $0x1c0] sm:$0xff]
    %v5562 = vld [vmem:[#allocation11 + $0x1c8] sm:$0xff]
    %v5563 = vld [vmem:[#allocation11 + $0x1d0] sm:$0xff]
    %v5564 = vld [vmem:[#allocation11 + $0x1d8] sm:$0xff]
    %v5565 = vld [vmem:[#allocation11 + $0x1e0] sm:$0xff]
    %v5566 = vld [vmem:[#allocation11 + $0x1e8] sm:$0xff]
    %v5567 = vld [vmem:[#allocation11 + $0x1f0] sm:$0xff]
    %v5568 = vld [vmem:[#allocation11 + $0x1f8] sm:$0xff]
    %v5569 = vld [vmem:[#allocation13] sm:$0x3]
    %v5571 = vperm.slane %v5569, 0
    %v5572 = vperm.slane %v5569, 1
    %v5639 = vunpack.c.l.b16 %v5505
    %v5640 = vunpack.c.h.b16 %v5505
    %v5641 = vunpack.c.l.b16 %v5506
    %v5642 = vunpack.c.h.b16 %v5506
    %v5643 = vunpack.c.l.b16 %v5507
    %v5644 = vunpack.c.h.b16 %v5507
    %v5645 = vunpack.c.l.b16 %v5508
    %v5646 = vunpack.c.h.b16 %v5508
    %v5647 = vunpack.c.l.b16 %v5509
    %v5648 = vunpack.c.h.b16 %v5509
    %v5649 = vunpack.c.l.b16 %v5510
    %v5650 = vunpack.c.h.b16 %v5510
    %v5651 = vunpack.c.l.b16 %v5511
    %v5652 = vunpack.c.h.b16 %v5511
    %v5653 = vunpack.c.l.b16 %v5512
    %v5654 = vunpack.c.h.b16 %v5512
    %v5655 = vunpack.c.l.b16 %v5513
    %v5656 = vunpack.c.h.b16 %v5513
    %v5657 = vunpack.c.l.b16 %v5514
    %v5658 = vunpack.c.h.b16 %v5514
    %v5659 = vunpack.c.l.b16 %v5515
    %v5660 = vunpack.c.h.b16 %v5515
    %v5661 = vunpack.c.l.b16 %v5516
    %v5662 = vunpack.c.h.b16 %v5516
    %v5663 = vunpack.c.l.b16 %v5517
    %v5664 = vunpack.c.h.b16 %v5517
    %v5665 = vunpack.c.l.b16 %v5518
    %v5666 = vunpack.c.h.b16 %v5518
    %v5667 = vunpack.c.l.b16 %v5519
    %v5668 = vunpack.c.h.b16 %v5519
    %v5669 = vunpack.c.l.b16 %v5520
    %v5670 = vunpack.c.h.b16 %v5520
    %v5671 = vunpack.c.l.b16 %v5521
    %v5672 = vunpack.c.h.b16 %v5521
    %v5673 = vunpack.c.l.b16 %v5522
    %v5674 = vunpack.c.h.b16 %v5522
    %v5675 = vunpack.c.l.b16 %v5523
    %v5676 = vunpack.c.h.b16 %v5523
    %v5677 = vunpack.c.l.b16 %v5524
    %v5678 = vunpack.c.h.b16 %v5524
    %v5679 = vunpack.c.l.b16 %v5525
    %v5680 = vunpack.c.h.b16 %v5525
    %v5681 = vunpack.c.l.b16 %v5526
    %v5682 = vunpack.c.h.b16 %v5526
    %v5683 = vunpack.c.l.b16 %v5527
    %v5684 = vunpack.c.h.b16 %v5527
    %v5685 = vunpack.c.l.b16 %v5528
    %v5686 = vunpack.c.h.b16 %v5528
    %v5687 = vunpack.c.l.b16 %v5529
    %v5688 = vunpack.c.h.b16 %v5529
    %v5689 = vunpack.c.l.b16 %v5530
    %v5690 = vunpack.c.h.b16 %v5530
    %v5691 = vunpack.c.l.b16 %v5531
    %v5692 = vunpack.c.h.b16 %v5531
    %v5693 = vunpack.c.l.b16 %v5532
    %v5694 = vunpack.c.h.b16 %v5532
    %v5695 = vunpack.c.l.b16 %v5533
    %v5696 = vunpack.c.h.b16 %v5533
    %v5697 = vunpack.c.l.b16 %v5534
    %v5698 = vunpack.c.h.b16 %v5534
    %v5699 = vunpack.c.l.b16 %v5535
    %v5700 = vunpack.c.h.b16 %v5535
    %v5701 = vunpack.c.l.b16 %v5536
    %v5702 = vunpack.c.h.b16 %v5536
    %v5703 = vunpack.c.l.b16 %v5537
    %v5704 = vunpack.c.h.b16 %v5537
    %v5705 = vunpack.c.l.b16 %v5538
    %v5706 = vunpack.c.h.b16 %v5538
    %v5707 = vunpack.c.l.b16 %v5539
    %v5708 = vunpack.c.h.b16 %v5539
    %v5709 = vunpack.c.l.b16 %v5540
    %v5710 = vunpack.c.h.b16 %v5540
    %v5711 = vunpack.c.l.b16 %v5541
    %v5712 = vunpack.c.h.b16 %v5541
    %v5713 = vunpack.c.l.b16 %v5542
    %v5714 = vunpack.c.h.b16 %v5542
    %v5715 = vunpack.c.l.b16 %v5543
    %v5716 = vunpack.c.h.b16 %v5543
    %v5717 = vunpack.c.l.b16 %v5544
    %v5718 = vunpack.c.h.b16 %v5544
    %v5719 = vunpack.c.l.b16 %v5545
    %v5720 = vunpack.c.h.b16 %v5545
    %v5721 = vunpack.c.l.b16 %v5546
    %v5722 = vunpack.c.h.b16 %v5546
    %v5723 = vunpack.c.l.b16 %v5547
    %v5724 = vunpack.c.h.b16 %v5547
    %v5725 = vunpack.c.l.b16 %v5548
    %v5726 = vunpack.c.h.b16 %v5548
    %v5727 = vunpack.c.l.b16 %v5549
    %v5728 = vunpack.c.h.b16 %v5549
    %v5729 = vunpack.c.l.b16 %v5550
    %v5730 = vunpack.c.h.b16 %v5550
    %v5731 = vunpack.c.l.b16 %v5551
    %v5732 = vunpack.c.h.b16 %v5551
    %v5733 = vunpack.c.l.b16 %v5552
    %v5734 = vunpack.c.h.b16 %v5552
    %v5735 = vunpack.c.l.b16 %v5553
    %v5736 = vunpack.c.h.b16 %v5553
    %v5737 = vunpack.c.l.b16 %v5554
    %v5738 = vunpack.c.h.b16 %v5554
    %v5739 = vunpack.c.l.b16 %v5555
    %v5740 = vunpack.c.h.b16 %v5555
    %v5741 = vunpack.c.l.b16 %v5556
    %v5742 = vunpack.c.h.b16 %v5556
    %v5743 = vunpack.c.l.b16 %v5557
    %v5744 = vunpack.c.h.b16 %v5557
    %v5745 = vunpack.c.l.b16 %v5558
    %v5746 = vunpack.c.h.b16 %v5558
    %v5747 = vunpack.c.l.b16 %v5559
    %v5748 = vunpack.c.h.b16 %v5559
    %v5749 = vunpack.c.l.b16 %v5560
    %v5750 = vunpack.c.h.b16 %v5560
    %v5751 = vunpack.c.l.b16 %v5561
    %v5752 = vunpack.c.h.b16 %v5561
    %v5753 = vunpack.c.l.b16 %v5562
    %v5754 = vunpack.c.h.b16 %v5562
    %v5755 = vunpack.c.l.b16 %v5563
    %v5756 = vunpack.c.h.b16 %v5563
    %v5757 = vunpack.c.l.b16 %v5564
    %v5758 = vunpack.c.h.b16 %v5564
    %v5759 = vunpack.c.l.b16 %v5565
    %v5760 = vunpack.c.h.b16 %v5565
    %v5761 = vunpack.c.l.b16 %v5566
    %v5762 = vunpack.c.h.b16 %v5566
    %v5763 = vunpack.c.l.b16 %v5567
    %v5764 = vunpack.c.h.b16 %v5567
    %v5765 = vunpack.c.l.b16 %v5568
    %v5766 = vunpack.c.h.b16 %v5568
    %v5767 = vpack.c.b16 %v5641, %v5639
    %v5768 = vpack.c.b16 %v5642, %v5640
    %v5769 = vpack.c.b16 %v5645, %v5643
    %v5770 = vpack.c.b16 %v5646, %v5644
    %v5771 = vpack.c.b16 %v5649, %v5647
    %v5772 = vpack.c.b16 %v5650, %v5648
    %v5773 = vpack.c.b16 %v5653, %v5651
    %v5774 = vpack.c.b16 %v5654, %v5652
    %v5775 = vpack.c.b16 %v5657, %v5655
    %v5776 = vpack.c.b16 %v5658, %v5656
    %v5777 = vpack.c.b16 %v5661, %v5659
    %v5778 = vpack.c.b16 %v5662, %v5660
    %v5779 = vpack.c.b16 %v5665, %v5663
    %v5780 = vpack.c.b16 %v5666, %v5664
    %v5781 = vpack.c.b16 %v5669, %v5667
    %v5782 = vpack.c.b16 %v5670, %v5668
    %v5783 = vpack.c.b16 %v5673, %v5671
    %v5784 = vpack.c.b16 %v5674, %v5672
    %v5785 = vpack.c.b16 %v5677, %v5675
    %v5786 = vpack.c.b16 %v5678, %v5676
    %v5787 = vpack.c.b16 %v5681, %v5679
    %v5788 = vpack.c.b16 %v5682, %v5680
    %v5789 = vpack.c.b16 %v5685, %v5683
    %v5790 = vpack.c.b16 %v5686, %v5684
    %v5791 = vpack.c.b16 %v5689, %v5687
    %v5792 = vpack.c.b16 %v5690, %v5688
    %v5793 = vpack.c.b16 %v5693, %v5691
    %v5794 = vpack.c.b16 %v5694, %v5692
    %v5795 = vpack.c.b16 %v5697, %v5695
    %v5796 = vpack.c.b16 %v5698, %v5696
    %v5797 = vpack.c.b16 %v5701, %v5699
    %v5798 = vpack.c.b16 %v5702, %v5700
    %v5799 = vpack.c.b16 %v5705, %v5703
    %v5800 = vpack.c.b16 %v5706, %v5704
    %v5801 = vpack.c.b16 %v5709, %v5707
    %v5802 = vpack.c.b16 %v5710, %v5708
    %v5803 = vpack.c.b16 %v5713, %v5711
    %v5804 = vpack.c.b16 %v5714, %v5712
    %v5805 = vpack.c.b16 %v5717, %v5715
    %v5806 = vpack.c.b16 %v5718, %v5716
    %v5807 = vpack.c.b16 %v5721, %v5719
    %v5808 = vpack.c.b16 %v5722, %v5720
    %v5809 = vpack.c.b16 %v5725, %v5723
    %v5810 = vpack.c.b16 %v5726, %v5724
    %v5811 = vpack.c.b16 %v5729, %v5727
    %v5812 = vpack.c.b16 %v5730, %v5728
    %v5813 = vpack.c.b16 %v5733, %v5731
    %v5814 = vpack.c.b16 %v5734, %v5732
    %v5815 = vpack.c.b16 %v5737, %v5735
    %v5816 = vpack.c.b16 %v5738, %v5736
    %v5817 = vpack.c.b16 %v5741, %v5739
    %v5818 = vpack.c.b16 %v5742, %v5740
    %v5819 = vpack.c.b16 %v5745, %v5743
    %v5820 = vpack.c.b16 %v5746, %v5744
    %v5821 = vpack.c.b16 %v5749, %v5747
    %v5822 = vpack.c.b16 %v5750, %v5748
    %v5823 = vpack.c.b16 %v5753, %v5751
    %v5824 = vpack.c.b16 %v5754, %v5752
    %v5825 = vpack.c.b16 %v5757, %v5755
    %v5826 = vpack.c.b16 %v5758, %v5756
    %v5827 = vpack.c.b16 %v5761, %v5759
    %v5828 = vpack.c.b16 %v5762, %v5760
    %v5829 = vpack.c.b16 %v5765, %v5763
    %v5830 = vpack.c.b16 %v5766, %v5764
    %5895 = vmatpush.bf16.msra.mxu0 %v5781
    %5896 = vmatpush.bf16.msra.mxu0 %v5779
    %5897 = vmatpush.bf16.msra.mxu0 %v5777
    %5898 = vmatpush.bf16.msra.mxu0 %v5775
    %5899 = vmatpush.bf16.msra.mxu0 %v5773
    %5900 = vmatpush.bf16.msra.mxu0 %v5771
    %5901 = vmatpush.bf16.msra.mxu0 %v5769
    %5902 = vmatpush.bf16.msra.mxu0 %v5767
    %5903 = vmatmul.bf16.gmra.mxu0 %v5501
    %v5904 = vpop.f32.mrf.mxu0
    %v5905 = vadd.f32 %v5571, %v5904
    %v5906 = vpop.f32.mrf.mxu0
    %5907 = vdwg.mxu0
    %5908 = vmatpush.bf16.msra.mxu0 %v5797
    %5909 = vmatpush.bf16.msra.mxu0 %v5795
    %5910 = vmatpush.bf16.msra.mxu0 %v5793
    %5911 = vmatpush.bf16.msra.mxu0 %v5791
    %5912 = vmatpush.bf16.msra.mxu0 %v5789
    %5913 = vmatpush.bf16.msra.mxu0 %v5787
    %5914 = vmatpush.bf16.msra.mxu0 %v5785
    %5915 = vmatpush.bf16.msra.mxu0 %v5783
    %5916 = vmatmul.bf16.gmra.mxu0 %v5502
    %v5917 = vpop.f32.mrf.mxu0
    %v5918 = vadd.f32 %v5905, %v5917
    %v5919 = vpop.f32.mrf.mxu0
    %5920 = vdwg.mxu0
    %5921 = vmatpush.bf16.msra.mxu0 %v5813
    %5922 = vmatpush.bf16.msra.mxu0 %v5811
    %5923 = vmatpush.bf16.msra.mxu0 %v5809
    %5924 = vmatpush.bf16.msra.mxu0 %v5807
    %5925 = vmatpush.bf16.msra.mxu0 %v5805
    %5926 = vmatpush.bf16.msra.mxu0 %v5803
    %5927 = vmatpush.bf16.msra.mxu0 %v5801
    %5928 = vmatpush.bf16.msra.mxu0 %v5799
    %5929 = vmatmul.bf16.gmra.mxu0 %v5503
    %v5930 = vpop.f32.mrf.mxu0
    %v5931 = vadd.f32 %v5918, %v5930
    %v5932 = vpop.f32.mrf.mxu0
    %5933 = vdwg.mxu0
    %5934 = vmatpush.bf16.msra.mxu0 %v5829
    %5935 = vmatpush.bf16.msra.mxu0 %v5827
    %5936 = vmatpush.bf16.msra.mxu0 %v5825
    %5937 = vmatpush.bf16.msra.mxu0 %v5823
    %5938 = vmatpush.bf16.msra.mxu0 %v5821
    %5939 = vmatpush.bf16.msra.mxu0 %v5819
    %5940 = vmatpush.bf16.msra.mxu0 %v5817
    %5941 = vmatpush.bf16.msra.mxu0 %v5815
    %5942 = vmatmul.bf16.gmra.mxu0 %v5504
    %v5943 = vpop.f32.mrf.mxu0
    %v5944 = vadd.f32 %v5931, %v5943
    %v5945 = vpop.f32.mrf.mxu0
    %5946 = vdwg.mxu0
    %5947 = vmatpush.bf16.msra.mxu0 %v5782
    %5948 = vmatpush.bf16.msra.mxu0 %v5780
    %5949 = vmatpush.bf16.msra.mxu0 %v5778
    %5950 = vmatpush.bf16.msra.mxu0 %v5776
    %5951 = vmatpush.bf16.msra.mxu0 %v5774
    %5952 = vmatpush.bf16.msra.mxu0 %v5772
    %5953 = vmatpush.bf16.msra.mxu0 %v5770
    %5954 = vmatpush.bf16.msra.mxu0 %v5768
    %5955 = vmatmul.bf16.gmra.mxu0 %v5501
    %v5956 = vpop.f32.mrf.mxu0
    %v5957 = vadd.f32 %v5572, %v5956
    %v5958 = vpop.f32.mrf.mxu0
    %5959 = vdwg.mxu0
    %5960 = vmatpush.bf16.msra.mxu0 %v5798
    %5961 = vmatpush.bf16.msra.mxu0 %v5796
    %5962 = vmatpush.bf16.msra.mxu0 %v5794
    %5963 = vmatpush.bf16.msra.mxu0 %v5792
    %5964 = vmatpush.bf16.msra.mxu0 %v5790
    %5965 = vmatpush.bf16.msra.mxu0 %v5788
    %5966 = vmatpush.bf16.msra.mxu0 %v5786
    %5967 = vmatpush.bf16.msra.mxu0 %v5784
    %5968 = vmatmul.bf16.gmra.mxu0 %v5502
    %v5969 = vpop.f32.mrf.mxu0
    %v5970 = vadd.f32 %v5957, %v5969
    %v5971 = vpop.f32.mrf.mxu0
    %5972 = vdwg.mxu0
    %5973 = vmatpush.bf16.msra.mxu0 %v5814
    %5974 = vmatpush.bf16.msra.mxu0 %v5812
    %5975 = vmatpush.bf16.msra.mxu0 %v5810
    %5976 = vmatpush.bf16.msra.mxu0 %v5808
    %5977 = vmatpush.bf16.msra.mxu0 %v5806
    %5978 = vmatpush.bf16.msra.mxu0 %v5804
    %5979 = vmatpush.bf16.msra.mxu0 %v5802
    %5980 = vmatpush.bf16.msra.mxu0 %v5800
    %5981 = vmatmul.bf16.gmra.mxu0 %v5503
    %v5982 = vpop.f32.mrf.mxu0
    %v5983 = vadd.f32 %v5970, %v5982
    %v5984 = vpop.f32.mrf.mxu0
    %5985 = vdwg.mxu0
    %5986 = vmatpush.bf16.msra.mxu0 %v5830
    %5987 = vmatpush.bf16.msra.mxu0 %v5828
    %5988 = vmatpush.bf16.msra.mxu0 %v5826
    %5989 = vmatpush.bf16.msra.mxu0 %v5824
    %5990 = vmatpush.bf16.msra.mxu0 %v5822
    %5991 = vmatpush.bf16.msra.mxu0 %v5820
    %5992 = vmatpush.bf16.msra.mxu0 %v5818
    %5993 = vmatpush.bf16.msra.mxu0 %v5816
    %5994 = vmatmul.bf16.gmra.mxu0 %v5504
    %v5995 = vpop.f32.mrf.mxu0
    %v5996 = vadd.f32 %v5983, %v5995
    %v5997 = vpop.f32.mrf.mxu0
    %5998 = vdwg.mxu0
    %vm5999 = vcmp.gt.f32.partialorder %v5944, 0.0
    %vm6000 = vcmp.gt.f32.partialorder %v5996, 0.0
    %v6001 = vmul.f32 %v5944, 0.2
    %v6002 = vmul.f32 %v5996, 0.2
    %v6003 = vsel %vm5999, %v5944, %v6001
    %v6004 = vsel %vm6000, %v5996, %v6002
    %v6005 = vld [vmem:[#allocation14] sm:$0x3]
    %v6006 = vpack.c.bf16 %v6003, %v6003
    %v6007 = vpack.c.bf16 %v6004, %v6004
    %v6008 = vld [vmem:[#allocation2] sm:$0x1]
    %6010 = vset.pattern.permute.xlu0 0
    %6011 = vperm.xlu0 %6010, %v6008
    %v6012 = vpop.permute.xlu0 %6011
    %v6014 = vperm.slane %v6012, 0
    %6016 = vst [vmem:[#allocation1] ss:$9 sm:$0xff] %v6005
    %v6017 = vld [vmem:[#allocation1] sm:$0xff]
    %v6018 = vld [vmem:[#allocation1 + $0x9] sm:$0xff]
    %6021 = vmatpush.bf16.xpose.msra.mxu0 0
    %6022 = vmatpush.bf16.xpose.msra.mxu0 0
    %6023 = vmatpush.bf16.xpose.msra.mxu0 0
    %6024 = vmatpush.bf16.xpose.msra.mxu0 0
    %6025 = vmatpush.bf16.xpose.msra.mxu0 0
    %6026 = vmatpush.bf16.xpose.msra.mxu0 0
    %6027 = vmatpush.bf16.xpose.msra.mxu0 0
    %6028 = vmatpush.bf16.xpose.msra.mxu0 %v6006
    %6029 = vmatmul.bf16.gmra.mxu0 %v6017
    %v6030 = vpop.f32.mrf.mxu0
    %v6031 = vadd.f32 %v6014, %v6030
    %v6032 = vpop.f32.mrf.mxu0
    %6033 = vdwg.mxu0
    %6034 = vmatpush.bf16.xpose.msra.mxu0 0
    %6035 = vmatpush.bf16.xpose.msra.mxu0 0
    %6036 = vmatpush.bf16.xpose.msra.mxu0 0
    %6037 = vmatpush.bf16.xpose.msra.mxu0 0
    %6038 = vmatpush.bf16.xpose.msra.mxu0 0
    %6039 = vmatpush.bf16.xpose.msra.mxu0 0
    %6040 = vmatpush.bf16.xpose.msra.mxu0 0
    %6041 = vmatpush.bf16.xpose.msra.mxu0 %v6007
    %6042 = vmatmul.bf16.gmra.mxu0 %v6018
    %v6043 = vpop.f32.mrf.mxu0
    %v6044 = vadd.f32 %v6031, %v6043
    %v6045 = vpop.f32.mrf.mxu0
    %6046 = vdwg.mxu0
    %v6047 = vxor.u32 %v6044, 2147483648
    %v6048 = vmul.f32 %v6047, 1.442695
    %v6049 = vpow.pop %v6048
    %v6050 = vadd.f32 %v6049, 1.0
    %v6051 = vrcp.pop %v6050
    %v6052 = vmul.f32 %v6050, %v6051
    %v6053 = vsub.f32 1.0, %v6052
    %v6054 = vmul.f32 %v6051, %v6053
    %v6055 = vadd.f32 %v6051, %v6054
    %vm6056 = vweird.f32 %v6050
    %vm6057 = vweird.f32 %v6051
    %vm6058 = vmor %vm6056, %vm6057
    %v6059 = vsel %vm6058, %v6051, %v6055
    %v6060 = vand.u32 2147483647, %v6050
    %vm6061 = vcmp.eq.f32.partialorder %v6060, 8.507059e+37
    %v6062 = vand.u32 %v6050, 2147483648
    %v6063 = vor.u32 1.1754944e-38, %v6062
    %v6064 = vsel %vm6061, %v6063, %v6059
    %v6065 = vmul.f32 1.0, %v6064
    %vm6066 = vcmask 57344
    %6067 = vst.msk [vmem:[%s11] sm:$0x1] %vm6066, %v6065
    // Predicated region
    $region78: #{discriminator_forward.1} parent=1 // pred_check
      _
    $region79: #{discriminator_forward.1} parent=1 // pred_check_branch
      %6069 = sbr.rel (0) target = $region81
    $region80: #{discriminator_forward.1} parent=1 // pred_region
      _
    $region81: #{discriminator_forward.1} parent=1 // pred_fallthru
      _
    // Predicated region
    $region82: #{discriminator_forward.1} parent=1 // pred_check
      _
    $region83: #{discriminator_forward.1} parent=1 // pred_check_branch
      %6071 = sbr.rel (0) target = $region85
    $region84: #{discriminator_forward.1} parent=1 // pred_region
      _
    $region85: #{discriminator_forward.1} parent=1 // pred_fallthru
      _
    %6072 = vsyncpa [#allocation4], 1
    %6073 = vsyncpa [#allocation6], 1
    %6074 = vsyncpa [#allocation9], 1
    %6075 = vsyncpa [#allocation12], 1
    %6076 = vsyncpa [#allocation15], 1

</llo_original>
